<compile_context>
chip_gen: v7x
topology: tpu7x:2x2x1
jax: 0.10.0
libtpu: 0.0.40
codegen_flags: <defaults>
</compile_context>

<pallas_src>
import functools

import jax
import jax.numpy as jnp
from jax import lax
from jax.experimental import pallas as pl
from jax.experimental.pallas import tpu as pltpu

K = 7            # conv kernel size
PAD = K // 2     # 3


def _spatial_attention_kernel(H, W, C, TN, C_CHUNK, w_ref, x_ref, o_ref):
    # w_ref : SMEM (2*K*K,) f32  -- conv weights, flattened [c, ki, kj]
    # x_ref : VMEM (TN, C, H*W)  -- TN batch elements, lane-dense
    # o_ref : VMEM (TN, C, H*W)
    HW = H * W

    # ---- fused channel mean/max, chunked over C (no full f32 copy of x) ----
    s = jnp.zeros((TN, HW), jnp.float32)
    m = jnp.full((TN, HW), -jnp.inf, jnp.float32)
    for c0 in range(0, C, C_CHUNK):
        c1 = min(c0 + C_CHUNK, C)
        blk = x_ref[:, c0:c1, :].astype(jnp.float32)          # (TN, cc, HW)
        s = s + jnp.sum(blk, axis=1)
        m = jnp.maximum(m, jnp.max(blk, axis=1))
    avg = s * (1.0 / C)                                       # (TN, HW)

    # ---- 7x7 conv over the (avg, max) stack via roll + mask ----
    # Stack the two maps into one (2*TN, HW) slab: one XLU roll per tap.
    maps = jnp.concatenate([avg, m], axis=0)                  # (2*TN, HW) f32

    p = lax.broadcasted_iota(jnp.int32, (1, HW), 1)           # flat pos = h*W + w
    if (W & (W - 1)) == 0:
        col = jnp.bitwise_and(p, W - 1)
    else:
        col = p - (p // W) * W

    # Hoist the 7 distinct row masks / 7 col masks out of the 49-tap loop.
    row_ok = [(p >= (-d) * W) & (p < (H - d) * W) for d in range(-PAD, PAD + 1)]
    col_ok = [(col + d >= 0) & (col + d < W) for d in range(-PAD, PAD + 1)]

    acc = jnp.zeros((TN, HW), jnp.float32)
    for ki in range(K):
        di = ki - PAD
        for kj in range(K):
            dj = kj - PAD
            shift = (-(di * W + dj)) % HW
            sh = maps if shift == 0 else pltpu.roll(maps, shift, axis=1)
            tap = (w_ref[ki * K + kj] * sh[:TN]
                   + w_ref[K * K + ki * K + kj] * sh[TN:])
            acc = acc + jnp.where(row_ok[ki] & col_ok[kj], tap, 0.0)

    attn = jax.nn.sigmoid(acc)                                # (TN, HW) f32
    attn3 = attn.astype(o_ref.dtype).reshape(TN, 1, HW)       # bcast over C

    # ---- rescale + store, chunked over C, stays in the input dtype ----
    for c0 in range(0, C, C_CHUNK):
        c1 = min(c0 + C_CHUNK, C)
        xb = x_ref[:, c0:c1, :]
        o_ref[:, c0:c1, :] = (xb * attn3).astype(o_ref.dtype)


def _pick_tn(N, per_n_bytes):
    # >= 8 batch rows (full sublane use in the conv maps) and ~2 MiB blocks,
    # but keep the double-buffered in+out blocks comfortably under VMEM and
    # prefer a grid of length >= 2 when N allows (v7x: 2 TensorCores).
    tn = max(8, (2 << 20) // max(per_n_bytes, 1))              # ~2 MiB target
    tn = min(tn, max(1, (6 << 20) // max(per_n_bytes, 1)))     # <= ~6 MiB block
    tn_n = max(8, ((-(-N // 2) + 7) // 8) * 8)                 # keep >= 2 steps
    tn = min(tn, tn_n)
    if tn >= 8:
        tn = (tn // 8) * 8
    return max(1, tn)


def spatial_attention(x, conv_w):
    """x: (N, C, H, W); conv_w: (1, 2, K, K) -> (N, C, H, W)."""
    N, C, H, W = x.shape
    HW = H * W
    # TODO(synk): when H*W is not a multiple of 128 (e.g. 14x14 / 56x56 maps),
    # pad HW in the wrapper and extend the row/col masks to kill the pad lanes
    # so the output store stays an unmasked, lane-dense vst.

    itemsize = jnp.dtype(x.dtype).itemsize
    per_n = C * HW * itemsize
    TN = _pick_tn(N, per_n)
    n_blocks = -(-N // TN)
    N_pad = n_blocks * TN

    x_flat = x.reshape(N, C, HW)                               # lane-dense layout
    if N_pad != N:
        x_flat = jnp.pad(x_flat, ((0, N_pad - N), (0, 0), (0, 0)))
    w_flat = conv_w.reshape(-1).astype(jnp.float32)            # (2*K*K,)

    # Channel chunk for the in-kernel reduction / rescale loops: bounds the
    # f32 temporaries without a full f32 copy of x, with a bounded unroll.
    c_chunk = min(C, 8)
    if C // c_chunk > 32:
        c_chunk = ((-(-C // 32) + 7) // 8) * 8
    # TODO(synk): for very large C additionally tile over a C grid axis
    # (reduction pass + rescale pass) to keep v7x's 64 MiB VMEM happy.

    kernel = functools.partial(_spatial_attention_kernel, H, W, C, TN, c_chunk)

    block_bytes = TN * per_n
    vmem_limit = int(min(64 << 20, 4 * block_bytes + (16 << 20)))

    out_flat = pl.pallas_call(
        kernel,
        out_shape=jax.ShapeDtypeStruct((N_pad, C, HW), x.dtype),
        grid_spec=pltpu.PrefetchScalarGridSpec(
            num_scalar_prefetch=0,
            grid=(n_blocks,),
            in_specs=[
                pl.BlockSpec(memory_space=pltpu.MemorySpace.SMEM),  # conv weights
                pl.BlockSpec((TN, C, HW), lambda n: (n, 0, 0)),     # x block
            ],
            out_specs=pl.BlockSpec((TN, C, HW), lambda n: (n, 0, 0)),
        ),
        compiler_params=pltpu.CompilerParams(
            dimension_semantics=("parallel",),                 # batch-block axis
            vmem_limit_bytes=vmem_limit),
        # TODO(synk): pass input_output_aliases={1: 0} when the caller can
        # donate x, to save one activation-sized HBM allocation.
    )(w_flat, x_flat)

    if N_pad != N:
        out_flat = out_flat[:N]
    return out_flat.reshape(N, C, H, W)


def spatial_attention_ref(x, conv_w):
    """Pure-JAX reference matching the PyTorch module."""
    avg = jnp.mean(x, axis=1, keepdims=True)
    mx = jnp.max(x, axis=1, keepdims=True)
    xo = jnp.concatenate([avg, mx], axis=1)
    conv = jax.lax.conv_general_dilated(
        xo, conv_w, window_strides=(1, 1),
        padding=[(PAD, PAD), (PAD, PAD)],
        dimension_numbers=("NCHW", "OIHW", "NCHW"))
    return x * jax.nn.sigmoid(conv)


if __name__ == "__main__":
    key = jax.random.PRNGKey(0)
    kx, kw = jax.random.split(key)

    N, C, H, W = 2, 4, 16, 16
    x = jax.random.normal(kx, (N, C, H, W), dtype=jnp.float32)

    # Deterministic conv weight init (nn.Conv2d(2, 1, 7, bias=False) -> (1,2,7,7)),
    # kaiming-uniform-like bound = 1/sqrt(fan_in).
    fan_in = 2 * K * K
    bound = 1.0 / float(fan_in) ** 0.5
    conv_w = jax.random.uniform(kw, (1, 2, K, K), dtype=jnp.float32,
                                minval=-bound, maxval=bound)

    out = jax.block_until_ready(spatial_attention(x, conv_w))

    ref = spatial_attention_ref(x, conv_w)
    assert out.shape == ref.shape
    err = float(jnp.max(jnp.abs(out - ref)))
    assert jnp.allclose(out, ref, rtol=1e-4, atol=1e-4), err

    print("KERNEL_OK")
</pallas_src>

<mosaic_0001>
module attributes {stable_mosaic.version = 11 : i64} {
  func.func @_spatial_attention_kernel(%arg0: i32, %arg1: memref<98xf32, #tpu.memory_space<smem>>, %arg2: memref<8x4x256xf32, #tpu.memory_space<vmem>>, %arg3: memref<8x4x256xf32, #tpu.memory_space<vmem>>) attributes {dimension_semantics = [#tpu.dimension_semantics<parallel>], iteration_bounds = array<i64: 1>, scalar_prefetch = 0 : i64, scratch_operands = 0 : i64, tpu.core_type = #tpu.core_type<tc>, window_params = [{transform_indices = @transform_0, window_bounds = array<i64: 98>}, {transform_indices = @transform_1, window_bounds = array<i64: 8, 4, 256>}, {transform_indices = @transform_2, window_bounds = array<i64: 8, 4, 256>}]} {
    %cst = arith.constant 0.000000e+00 : f32
    %0 = vector.broadcast %cst : f32 to vector<8x256xf32>
    %cst_0 = arith.constant 0xFF800000 : f32
    %1 = vector.broadcast %cst_0 : f32 to vector<8x256xf32>
    %c0 = arith.constant 0 : index
    %c0_1 = arith.constant 0 : index
    %c0_2 = arith.constant 0 : index
    %2 = vector.load %arg2[%c0, %c0_1, %c0_2] : memref<8x4x256xf32, #tpu.memory_space<vmem>>, vector<8x4x256xf32>
    %cst_3 = arith.constant dense<0.000000e+00> : vector<8x256xf32>
    %3 = vector.multi_reduction <add>, %2, %cst_3 [1] : vector<8x4x256xf32> to vector<8x256xf32>
    %4 = arith.addf %0, %3 : vector<8x256xf32>
    %cst_4 = arith.constant dense<0xFF800000> : vector<8x256xf32>
    %5 = vector.multi_reduction <maximumf>, %2, %cst_4 [1] : vector<8x4x256xf32> to vector<8x256xf32>
    %6 = arith.maximumf %1, %5 : vector<8x256xf32>
    %cst_5 = arith.constant 2.500000e-01 : f32
    %7 = vector.broadcast %cst_5 : f32 to vector<8x256xf32>
    %8 = arith.mulf %4, %7 : vector<8x256xf32>
    %9 = tpu.concatenate %8, %6 in 0 : vector<8x256xf32>, vector<8x256xf32> -> vector<16x256xf32>
    %10 = tpu.iota {dimensions = array<i32: 1>} : vector<1x256xi32>
    %c15_i32 = arith.constant 15 : i32
    %11 = vector.broadcast %c15_i32 : i32 to vector<1x256xi32>
    %12 = arith.andi %10, %11 : vector<1x256xi32>
    %c48_i32 = arith.constant 48 : i32
    %13 = vector.broadcast %c48_i32 : i32 to vector<1x256xi32>
    %14 = arith.cmpi sge, %10, %13 : vector<1x256xi32>
    %c304_i32 = arith.constant 304 : i32
    %15 = vector.broadcast %c304_i32 : i32 to vector<1x256xi32>
    %16 = arith.cmpi slt, %10, %15 : vector<1x256xi32>
    %17 = arith.andi %14, %16 : vector<1x256xi1>
    %c32_i32 = arith.constant 32 : i32
    %18 = vector.broadcast %c32_i32 : i32 to vector<1x256xi32>
    %19 = arith.cmpi sge, %10, %18 : vector<1x256xi32>
    %c288_i32 = arith.constant 288 : i32
    %20 = vector.broadcast %c288_i32 : i32 to vector<1x256xi32>
    %21 = arith.cmpi slt, %10, %20 : vector<1x256xi32>
    %22 = arith.andi %19, %21 : vector<1x256xi1>
    %c16_i32 = arith.constant 16 : i32
    %23 = vector.broadcast %c16_i32 : i32 to vector<1x256xi32>
    %24 = arith.cmpi sge, %10, %23 : vector<1x256xi32>
    %c272_i32 = arith.constant 272 : i32
    %25 = vector.broadcast %c272_i32 : i32 to vector<1x256xi32>
    %26 = arith.cmpi slt, %10, %25 : vector<1x256xi32>
    %27 = arith.andi %24, %26 : vector<1x256xi1>
    %c0_i32 = arith.constant 0 : i32
    %28 = vector.broadcast %c0_i32 : i32 to vector<1x256xi32>
    %29 = arith.cmpi sge, %10, %28 : vector<1x256xi32>
    %c256_i32 = arith.constant 256 : i32
    %30 = vector.broadcast %c256_i32 : i32 to vector<1x256xi32>
    %31 = arith.cmpi slt, %10, %30 : vector<1x256xi32>
    %32 = arith.andi %29, %31 : vector<1x256xi1>
    %c-16_i32 = arith.constant -16 : i32
    %33 = vector.broadcast %c-16_i32 : i32 to vector<1x256xi32>
    %34 = arith.cmpi sge, %10, %33 : vector<1x256xi32>
    %c240_i32 = arith.constant 240 : i32
    %35 = vector.broadcast %c240_i32 : i32 to vector<1x256xi32>
    %36 = arith.cmpi slt, %10, %35 : vector<1x256xi32>
    %37 = arith.andi %34, %36 : vector<1x256xi1>
    %c-32_i32 = arith.constant -32 : i32
    %38 = vector.broadcast %c-32_i32 : i32 to vector<1x256xi32>
    %39 = arith.cmpi sge, %10, %38 : vector<1x256xi32>
    %c224_i32 = arith.constant 224 : i32
    %40 = vector.broadcast %c224_i32 : i32 to vector<1x256xi32>
    %41 = arith.cmpi slt, %10, %40 : vector<1x256xi32>
    %42 = arith.andi %39, %41 : vector<1x256xi1>
    %c-48_i32 = arith.constant -48 : i32
    %43 = vector.broadcast %c-48_i32 : i32 to vector<1x256xi32>
    %44 = arith.cmpi sge, %10, %43 : vector<1x256xi32>
    %c208_i32 = arith.constant 208 : i32
    %45 = vector.broadcast %c208_i32 : i32 to vector<1x256xi32>
    %46 = arith.cmpi slt, %10, %45 : vector<1x256xi32>
    %47 = arith.andi %44, %46 : vector<1x256xi1>
    %c-3_i32 = arith.constant -3 : i32
    %48 = vector.broadcast %c-3_i32 : i32 to vector<1x256xi32>
    %49 = arith.addi %12, %48 : vector<1x256xi32>
    %c0_i32_6 = arith.constant 0 : i32
    %50 = vector.broadcast %c0_i32_6 : i32 to vector<1x256xi32>
    %51 = arith.cmpi sge, %49, %50 : vector<1x256xi32>
    %c-3_i32_7 = arith.constant -3 : i32
    %52 = vector.broadcast %c-3_i32_7 : i32 to vector<1x256xi32>
    %53 = arith.addi %12, %52 : vector<1x256xi32>
    %c16_i32_8 = arith.constant 16 : i32
    %54 = vector.broadcast %c16_i32_8 : i32 to vector<1x256xi32>
    %55 = arith.cmpi slt, %53, %54 : vector<1x256xi32>
    %56 = arith.andi %51, %55 : vector<1x256xi1>
    %c-2_i32 = arith.constant -2 : i32
    %57 = vector.broadcast %c-2_i32 : i32 to vector<1x256xi32>
    %58 = arith.addi %12, %57 : vector<1x256xi32>
    %c0_i32_9 = arith.constant 0 : i32
    %59 = vector.broadcast %c0_i32_9 : i32 to vector<1x256xi32>
    %60 = arith.cmpi sge, %58, %59 : vector<1x256xi32>
    %c-2_i32_10 = arith.constant -2 : i32
    %61 = vector.broadcast %c-2_i32_10 : i32 to vector<1x256xi32>
    %62 = arith.addi %12, %61 : vector<1x256xi32>
    %c16_i32_11 = arith.constant 16 : i32
    %63 = vector.broadcast %c16_i32_11 : i32 to vector<1x256xi32>
    %64 = arith.cmpi slt, %62, %63 : vector<1x256xi32>
    %65 = arith.andi %60, %64 : vector<1x256xi1>
    %c-1_i32 = arith.constant -1 : i32
    %66 = vector.broadcast %c-1_i32 : i32 to vector<1x256xi32>
    %67 = arith.addi %12, %66 : vector<1x256xi32>
    %c0_i32_12 = arith.constant 0 : i32
    %68 = vector.broadcast %c0_i32_12 : i32 to vector<1x256xi32>
    %69 = arith.cmpi sge, %67, %68 : vector<1x256xi32>
    %c-1_i32_13 = arith.constant -1 : i32
    %70 = vector.broadcast %c-1_i32_13 : i32 to vector<1x256xi32>
    %71 = arith.addi %12, %70 : vector<1x256xi32>
    %c16_i32_14 = arith.constant 16 : i32
    %72 = vector.broadcast %c16_i32_14 : i32 to vector<1x256xi32>
    %73 = arith.cmpi slt, %71, %72 : vector<1x256xi32>
    %74 = arith.andi %69, %73 : vector<1x256xi1>
    %c0_i32_15 = arith.constant 0 : i32
    %75 = vector.broadcast %c0_i32_15 : i32 to vector<1x256xi32>
    %76 = arith.addi %12, %75 : vector<1x256xi32>
    %c0_i32_16 = arith.constant 0 : i32
    %77 = vector.broadcast %c0_i32_16 : i32 to vector<1x256xi32>
    %78 = arith.cmpi sge, %76, %77 : vector<1x256xi32>
    %c0_i32_17 = arith.constant 0 : i32
    %79 = vector.broadcast %c0_i32_17 : i32 to vector<1x256xi32>
    %80 = arith.addi %12, %79 : vector<1x256xi32>
    %c16_i32_18 = arith.constant 16 : i32
    %81 = vector.broadcast %c16_i32_18 : i32 to vector<1x256xi32>
    %82 = arith.cmpi slt, %80, %81 : vector<1x256xi32>
    %83 = arith.andi %78, %82 : vector<1x256xi1>
    %c1_i32 = arith.constant 1 : i32
    %84 = vector.broadcast %c1_i32 : i32 to vector<1x256xi32>
    %85 = arith.addi %12, %84 : vector<1x256xi32>
    %c0_i32_19 = arith.constant 0 : i32
    %86 = vector.broadcast %c0_i32_19 : i32 to vector<1x256xi32>
    %87 = arith.cmpi sge, %85, %86 : vector<1x256xi32>
    %c1_i32_20 = arith.constant 1 : i32
    %88 = vector.broadcast %c1_i32_20 : i32 to vector<1x256xi32>
    %89 = arith.addi %12, %88 : vector<1x256xi32>
    %c16_i32_21 = arith.constant 16 : i32
    %90 = vector.broadcast %c16_i32_21 : i32 to vector<1x256xi32>
    %91 = arith.cmpi slt, %89, %90 : vector<1x256xi32>
    %92 = arith.andi %87, %91 : vector<1x256xi1>
    %c2_i32 = arith.constant 2 : i32
    %93 = vector.broadcast %c2_i32 : i32 to vector<1x256xi32>
    %94 = arith.addi %12, %93 : vector<1x256xi32>
    %c0_i32_22 = arith.constant 0 : i32
    %95 = vector.broadcast %c0_i32_22 : i32 to vector<1x256xi32>
    %96 = arith.cmpi sge, %94, %95 : vector<1x256xi32>
    %c2_i32_23 = arith.constant 2 : i32
    %97 = vector.broadcast %c2_i32_23 : i32 to vector<1x256xi32>
    %98 = arith.addi %12, %97 : vector<1x256xi32>
    %c16_i32_24 = arith.constant 16 : i32
    %99 = vector.broadcast %c16_i32_24 : i32 to vector<1x256xi32>
    %100 = arith.cmpi slt, %98, %99 : vector<1x256xi32>
    %101 = arith.andi %96, %100 : vector<1x256xi1>
    %c3_i32 = arith.constant 3 : i32
    %102 = vector.broadcast %c3_i32 : i32 to vector<1x256xi32>
    %103 = arith.addi %12, %102 : vector<1x256xi32>
    %c0_i32_25 = arith.constant 0 : i32
    %104 = vector.broadcast %c0_i32_25 : i32 to vector<1x256xi32>
    %105 = arith.cmpi sge, %103, %104 : vector<1x256xi32>
    %c3_i32_26 = arith.constant 3 : i32
    %106 = vector.broadcast %c3_i32_26 : i32 to vector<1x256xi32>
    %107 = arith.addi %12, %106 : vector<1x256xi32>
    %c16_i32_27 = arith.constant 16 : i32
    %108 = vector.broadcast %c16_i32_27 : i32 to vector<1x256xi32>
    %109 = arith.cmpi slt, %107, %108 : vector<1x256xi32>
    %110 = arith.andi %105, %109 : vector<1x256xi1>
    %cst_28 = arith.constant 0.000000e+00 : f32
    %111 = vector.broadcast %cst_28 : f32 to vector<8x256xf32>
    %c51_i32 = arith.constant 51 : i32
    %112 = tpu.dynamic_rotate %9 by %c51_i32 dim 1 : vector<16x256xf32>, i32 -> vector<16x256xf32>
    %c0_29 = arith.constant 0 : index
    %113 = memref.load %arg1[%c0_29] : memref<98xf32, #tpu.memory_space<smem>>
    %114 = vector.extract_strided_slice %112 {offsets = [0, 0], sizes = [8, 256], strides = [1, 1]} : vector<16x256xf32> to vector<8x256xf32>
    %115 = vector.broadcast %113 : f32 to vector<8x256xf32>
    %116 = arith.mulf %115, %114 : vector<8x256xf32>
    %c49 = arith.constant 49 : index
    %117 = memref.load %arg1[%c49] : memref<98xf32, #tpu.memory_space<smem>>
    %118 = vector.extract_strided_slice %112 {offsets = [8, 0], sizes = [8, 256], strides = [1, 1]} : vector<16x256xf32> to vector<8x256xf32>
    %119 = vector.broadcast %117 : f32 to vector<8x256xf32>
    %120 = arith.mulf %119, %118 : vector<8x256xf32>
    %121 = arith.addf %116, %120 : vector<8x256xf32>
    %122 = arith.andi %17, %56 : vector<1x256xi1>
    %cst_30 = arith.constant 0.000000e+00 : f32
    %123 = vector.shape_cast %122 : vector<1x256xi1> to vector<1x256xi1>
    %124 = vector.broadcast %123 : vector<1x256xi1> to vector<8x256xi1>
    %125 = vector.broadcast %cst_30 : f32 to vector<8x256xf32>
    %126 = arith.select %124, %121, %125 : vector<8x256xi1>, vector<8x256xf32>
    %127 = arith.addf %111, %126 : vector<8x256xf32>
    %c50_i32 = arith.constant 50 : i32
    %128 = tpu.dynamic_rotate %9 by %c50_i32 dim 1 : vector<16x256xf32>, i32 -> vector<16x256xf32>
    %c1 = arith.constant 1 : index
    %129 = memref.load %arg1[%c1] : memref<98xf32, #tpu.memory_space<smem>>
    %130 = vector.extract_strided_slice %128 {offsets = [0, 0], sizes = [8, 256], strides = [1, 1]} : vector<16x256xf32> to vector<8x256xf32>
    %131 = vector.broadcast %129 : f32 to vector<8x256xf32>
    %132 = arith.mulf %131, %130 : vector<8x256xf32>
    %c50 = arith.constant 50 : index
    %133 = memref.load %arg1[%c50] : memref<98xf32, #tpu.memory_space<smem>>
    %134 = vector.extract_strided_slice %128 {offsets = [8, 0], sizes = [8, 256], strides = [1, 1]} : vector<16x256xf32> to vector<8x256xf32>
    %135 = vector.broadcast %133 : f32 to vector<8x256xf32>
    %136 = arith.mulf %135, %134 : vector<8x256xf32>
    %137 = arith.addf %132, %136 : vector<8x256xf32>
    %138 = arith.andi %17, %65 : vector<1x256xi1>
    %cst_31 = arith.constant 0.000000e+00 : f32
    %139 = vector.shape_cast %138 : vector<1x256xi1> to vector<1x256xi1>
    %140 = vector.broadcast %139 : vector<1x256xi1> to vector<8x256xi1>
    %141 = vector.broadcast %cst_31 : f32 to vector<8x256xf32>
    %142 = arith.select %140, %137, %141 : vector<8x256xi1>, vector<8x256xf32>
    %143 = arith.addf %127, %142 : vector<8x256xf32>
    %c49_i32 = arith.constant 49 : i32
    %144 = tpu.dynamic_rotate %9 by %c49_i32 dim 1 : vector<16x256xf32>, i32 -> vector<16x256xf32>
    %c2 = arith.constant 2 : index
    %145 = memref.load %arg1[%c2] : memref<98xf32, #tpu.memory_space<smem>>
    %146 = vector.extract_strided_slice %144 {offsets = [0, 0], sizes = [8, 256], strides = [1, 1]} : vector<16x256xf32> to vector<8x256xf32>
    %147 = vector.broadcast %145 : f32 to vector<8x256xf32>
    %148 = arith.mulf %147, %146 : vector<8x256xf32>
    %c51 = arith.constant 51 : index
    %149 = memref.load %arg1[%c51] : memref<98xf32, #tpu.memory_space<smem>>
    %150 = vector.extract_strided_slice %144 {offsets = [8, 0], sizes = [8, 256], strides = [1, 1]} : vector<16x256xf32> to vector<8x256xf32>
    %151 = vector.broadcast %149 : f32 to vector<8x256xf32>
    %152 = arith.mulf %151, %150 : vector<8x256xf32>
    %153 = arith.addf %148, %152 : vector<8x256xf32>
    %154 = arith.andi %17, %74 : vector<1x256xi1>
    %cst_32 = arith.constant 0.000000e+00 : f32
    %155 = vector.shape_cast %154 : vector<1x256xi1> to vector<1x256xi1>
    %156 = vector.broadcast %155 : vector<1x256xi1> to vector<8x256xi1>
    %157 = vector.broadcast %cst_32 : f32 to vector<8x256xf32>
    %158 = arith.select %156, %153, %157 : vector<8x256xi1>, vector<8x256xf32>
    %159 = arith.addf %143, %158 : vector<8x256xf32>
    %c48_i32_33 = arith.constant 48 : i32
    %160 = tpu.dynamic_rotate %9 by %c48_i32_33 dim 1 : vector<16x256xf32>, i32 -> vector<16x256xf32>
    %c3 = arith.constant 3 : index
    %161 = memref.load %arg1[%c3] : memref<98xf32, #tpu.memory_space<smem>>
    %162 = vector.extract_strided_slice %160 {offsets = [0, 0], sizes = [8, 256], strides = [1, 1]} : vector<16x256xf32> to vector<8x256xf32>
    %163 = vector.broadcast %161 : f32 to vector<8x256xf32>
    %164 = arith.mulf %163, %162 : vector<8x256xf32>
    %c52 = arith.constant 52 : index
    %165 = memref.load %arg1[%c52] : memref<98xf32, #tpu.memory_space<smem>>
    %166 = vector.extract_strided_slice %160 {offsets = [8, 0], sizes = [8, 256], strides = [1, 1]} : vector<16x256xf32> to vector<8x256xf32>
    %167 = vector.broadcast %165 : f32 to vector<8x256xf32>
    %168 = arith.mulf %167, %166 : vector<8x256xf32>
    %169 = arith.addf %164, %168 : vector<8x256xf32>
    %170 = arith.andi %17, %83 : vector<1x256xi1>
    %cst_34 = arith.constant 0.000000e+00 : f32
    %171 = vector.shape_cast %170 : vector<1x256xi1> to vector<1x256xi1>
    %172 = vector.broadcast %171 : vector<1x256xi1> to vector<8x256xi1>
    %173 = vector.broadcast %cst_34 : f32 to vector<8x256xf32>
    %174 = arith.select %172, %169, %173 : vector<8x256xi1>, vector<8x256xf32>
    %175 = arith.addf %159, %174 : vector<8x256xf32>
    %c47_i32 = arith.constant 47 : i32
    %176 = tpu.dynamic_rotate %9 by %c47_i32 dim 1 : vector<16x256xf32>, i32 -> vector<16x256xf32>
    %c4 = arith.constant 4 : index
    %177 = memref.load %arg1[%c4] : memref<98xf32, #tpu.memory_space<smem>>
    %178 = vector.extract_strided_slice %176 {offsets = [0, 0], sizes = [8, 256], strides = [1, 1]} : vector<16x256xf32> to vector<8x256xf32>
    %179 = vector.broadcast %177 : f32 to vector<8x256xf32>
    %180 = arith.mulf %179, %178 : vector<8x256xf32>
    %c53 = arith.constant 53 : index
    %181 = memref.load %arg1[%c53] : memref<98xf32, #tpu.memory_space<smem>>
    %182 = vector.extract_strided_slice %176 {offsets = [8, 0], sizes = [8, 256], strides = [1, 1]} : vector<16x256xf32> to vector<8x256xf32>
    %183 = vector.broadcast %181 : f32 to vector<8x256xf32>
    %184 = arith.mulf %183, %182 : vector<8x256xf32>
    %185 = arith.addf %180, %184 : vector<8x256xf32>
    %186 = arith.andi %17, %92 : vector<1x256xi1>
    %cst_35 = arith.constant 0.000000e+00 : f32
    %187 = vector.shape_cast %186 : vector<1x256xi1> to vector<1x256xi1>
    %188 = vector.broadcast %187 : vector<1x256xi1> to vector<8x256xi1>
    %189 = vector.broadcast %cst_35 : f32 to vector<8x256xf32>
    %190 = arith.select %188, %185, %189 : vector<8x256xi1>, vector<8x256xf32>
    %191 = arith.addf %175, %190 : vector<8x256xf32>
    %c46_i32 = arith.constant 46 : i32
    %192 = tpu.dynamic_rotate %9 by %c46_i32 dim 1 : vector<16x256xf32>, i32 -> vector<16x256xf32>
    %c5 = arith.constant 5 : index
    %193 = memref.load %arg1[%c5] : memref<98xf32, #tpu.memory_space<smem>>
    %194 = vector.extract_strided_slice %192 {offsets = [0, 0], sizes = [8, 256], strides = [1, 1]} : vector<16x256xf32> to vector<8x256xf32>
    %195 = vector.broadcast %193 : f32 to vector<8x256xf32>
    %196 = arith.mulf %195, %194 : vector<8x256xf32>
    %c54 = arith.constant 54 : index
    %197 = memref.load %arg1[%c54] : memref<98xf32, #tpu.memory_space<smem>>
    %198 = vector.extract_strided_slice %192 {offsets = [8, 0], sizes = [8, 256], strides = [1, 1]} : vector<16x256xf32> to vector<8x256xf32>
    %199 = vector.broadcast %197 : f32 to vector<8x256xf32>
    %200 = arith.mulf %199, %198 : vector<8x256xf32>
    %201 = arith.addf %196, %200 : vector<8x256xf32>
    %202 = arith.andi %17, %101 : vector<1x256xi1>
    %cst_36 = arith.constant 0.000000e+00 : f32
    %203 = vector.shape_cast %202 : vector<1x256xi1> to vector<1x256xi1>
    %204 = vector.broadcast %203 : vector<1x256xi1> to vector<8x256xi1>
    %205 = vector.broadcast %cst_36 : f32 to vector<8x256xf32>
    %206 = arith.select %204, %201, %205 : vector<8x256xi1>, vector<8x256xf32>
    %207 = arith.addf %191, %206 : vector<8x256xf32>
    %c45_i32 = arith.constant 45 : i32
    %208 = tpu.dynamic_rotate %9 by %c45_i32 dim 1 : vector<16x256xf32>, i32 -> vector<16x256xf32>
    %c6 = arith.constant 6 : index
    %209 = memref.load %arg1[%c6] : memref<98xf32, #tpu.memory_space<smem>>
    %210 = vector.extract_strided_slice %208 {offsets = [0, 0], sizes = [8, 256], strides = [1, 1]} : vector<16x256xf32> to vector<8x256xf32>
    %211 = vector.broadcast %209 : f32 to vector<8x256xf32>
    %212 = arith.mulf %211, %210 : vector<8x256xf32>
    %c55 = arith.constant 55 : index
    %213 = memref.load %arg1[%c55] : memref<98xf32, #tpu.memory_space<smem>>
    %214 = vector.extract_strided_slice %208 {offsets = [8, 0], sizes = [8, 256], strides = [1, 1]} : vector<16x256xf32> to vector<8x256xf32>
    %215 = vector.broadcast %213 : f32 to vector<8x256xf32>
    %216 = arith.mulf %215, %214 : vector<8x256xf32>
    %217 = arith.addf %212, %216 : vector<8x256xf32>
    %218 = arith.andi %17, %110 : vector<1x256xi1>
    %cst_37 = arith.constant 0.000000e+00 : f32
    %219 = vector.shape_cast %218 : vector<1x256xi1> to vector<1x256xi1>
    %220 = vector.broadcast %219 : vector<1x256xi1> to vector<8x256xi1>
    %221 = vector.broadcast %cst_37 : f32 to vector<8x256xf32>
    %222 = arith.select %220, %217, %221 : vector<8x256xi1>, vector<8x256xf32>
    %223 = arith.addf %207, %222 : vector<8x256xf32>
    %c35_i32 = arith.constant 35 : i32
    %224 = tpu.dynamic_rotate %9 by %c35_i32 dim 1 : vector<16x256xf32>, i32 -> vector<16x256xf32>
    %c7 = arith.constant 7 : index
    %225 = memref.load %arg1[%c7] : memref<98xf32, #tpu.memory_space<smem>>
    %226 = vector.extract_strided_slice %224 {offsets = [0, 0], sizes = [8, 256], strides = [1, 1]} : vector<16x256xf32> to vector<8x256xf32>
    %227 = vector.broadcast %225 : f32 to vector<8x256xf32>
    %228 = arith.mulf %227, %226 : vector<8x256xf32>
    %c56 = arith.constant 56 : index
    %229 = memref.load %arg1[%c56] : memref<98xf32, #tpu.memory_space<smem>>
    %230 = vector.extract_strided_slice %224 {offsets = [8, 0], sizes = [8, 256], strides = [1, 1]} : vector<16x256xf32> to vector<8x256xf32>
    %231 = vector.broadcast %229 : f32 to vector<8x256xf32>
    %232 = arith.mulf %231, %230 : vector<8x256xf32>
    %233 = arith.addf %228, %232 : vector<8x256xf32>
    %234 = arith.andi %22, %56 : vector<1x256xi1>
    %cst_38 = arith.constant 0.000000e+00 : f32
    %235 = vector.shape_cast %234 : vector<1x256xi1> to vector<1x256xi1>
    %236 = vector.broadcast %235 : vector<1x256xi1> to vector<8x256xi1>
    %237 = vector.broadcast %cst_38 : f32 to vector<8x256xf32>
    %238 = arith.select %236, %233, %237 : vector<8x256xi1>, vector<8x256xf32>
    %239 = arith.addf %223, %238 : vector<8x256xf32>
    %c34_i32 = arith.constant 34 : i32
    %240 = tpu.dynamic_rotate %9 by %c34_i32 dim 1 : vector<16x256xf32>, i32 -> vector<16x256xf32>
    %c8 = arith.constant 8 : index
    %241 = memref.load %arg1[%c8] : memref<98xf32, #tpu.memory_space<smem>>
    %242 = vector.extract_strided_slice %240 {offsets = [0, 0], sizes = [8, 256], strides = [1, 1]} : vector<16x256xf32> to vector<8x256xf32>
    %243 = vector.broadcast %241 : f32 to vector<8x256xf32>
    %244 = arith.mulf %243, %242 : vector<8x256xf32>
    %c57 = arith.constant 57 : index
    %245 = memref.load %arg1[%c57] : memref<98xf32, #tpu.memory_space<smem>>
    %246 = vector.extract_strided_slice %240 {offsets = [8, 0], sizes = [8, 256], strides = [1, 1]} : vector<16x256xf32> to vector<8x256xf32>
    %247 = vector.broadcast %245 : f32 to vector<8x256xf32>
    %248 = arith.mulf %247, %246 : vector<8x256xf32>
    %249 = arith.addf %244, %248 : vector<8x256xf32>
    %250 = arith.andi %22, %65 : vector<1x256xi1>
    %cst_39 = arith.constant 0.000000e+00 : f32
    %251 = vector.shape_cast %250 : vector<1x256xi1> to vector<1x256xi1>
    %252 = vector.broadcast %251 : vector<1x256xi1> to vector<8x256xi1>
    %253 = vector.broadcast %cst_39 : f32 to vector<8x256xf32>
    %254 = arith.select %252, %249, %253 : vector<8x256xi1>, vector<8x256xf32>
    %255 = arith.addf %239, %254 : vector<8x256xf32>
    %c33_i32 = arith.constant 33 : i32
    %256 = tpu.dynamic_rotate %9 by %c33_i32 dim 1 : vector<16x256xf32>, i32 -> vector<16x256xf32>
    %c9 = arith.constant 9 : index
    %257 = memref.load %arg1[%c9] : memref<98xf32, #tpu.memory_space<smem>>
    %258 = vector.extract_strided_slice %256 {offsets = [0, 0], sizes = [8, 256], strides = [1, 1]} : vector<16x256xf32> to vector<8x256xf32>
    %259 = vector.broadcast %257 : f32 to vector<8x256xf32>
    %260 = arith.mulf %259, %258 : vector<8x256xf32>
    %c58 = arith.constant 58 : index
    %261 = memref.load %arg1[%c58] : memref<98xf32, #tpu.memory_space<smem>>
    %262 = vector.extract_strided_slice %256 {offsets = [8, 0], sizes = [8, 256], strides = [1, 1]} : vector<16x256xf32> to vector<8x256xf32>
    %263 = vector.broadcast %261 : f32 to vector<8x256xf32>
    %264 = arith.mulf %263, %262 : vector<8x256xf32>
    %265 = arith.addf %260, %264 : vector<8x256xf32>
    %266 = arith.andi %22, %74 : vector<1x256xi1>
    %cst_40 = arith.constant 0.000000e+00 : f32
    %267 = vector.shape_cast %266 : vector<1x256xi1> to vector<1x256xi1>
    %268 = vector.broadcast %267 : vector<1x256xi1> to vector<8x256xi1>
    %269 = vector.broadcast %cst_40 : f32 to vector<8x256xf32>
    %270 = arith.select %268, %265, %269 : vector<8x256xi1>, vector<8x256xf32>
    %271 = arith.addf %255, %270 : vector<8x256xf32>
    %c32_i32_41 = arith.constant 32 : i32
    %272 = tpu.dynamic_rotate %9 by %c32_i32_41 dim 1 : vector<16x256xf32>, i32 -> vector<16x256xf32>
    %c10 = arith.constant 10 : index
    %273 = memref.load %arg1[%c10] : memref<98xf32, #tpu.memory_space<smem>>
    %274 = vector.extract_strided_slice %272 {offsets = [0, 0], sizes = [8, 256], strides = [1, 1]} : vector<16x256xf32> to vector<8x256xf32>
    %275 = vector.broadcast %273 : f32 to vector<8x256xf32>
    %276 = arith.mulf %275, %274 : vector<8x256xf32>
    %c59 = arith.constant 59 : index
    %277 = memref.load %arg1[%c59] : memref<98xf32, #tpu.memory_space<smem>>
    %278 = vector.extract_strided_slice %272 {offsets = [8, 0], sizes = [8, 256], strides = [1, 1]} : vector<16x256xf32> to vector<8x256xf32>
    %279 = vector.broadcast %277 : f32 to vector<8x256xf32>
    %280 = arith.mulf %279, %278 : vector<8x256xf32>
    %281 = arith.addf %276, %280 : vector<8x256xf32>
    %282 = arith.andi %22, %83 : vector<1x256xi1>
    %cst_42 = arith.constant 0.000000e+00 : f32
    %283 = vector.shape_cast %282 : vector<1x256xi1> to vector<1x256xi1>
    %284 = vector.broadcast %283 : vector<1x256xi1> to vector<8x256xi1>
    %285 = vector.broadcast %cst_42 : f32 to vector<8x256xf32>
    %286 = arith.select %284, %281, %285 : vector<8x256xi1>, vector<8x256xf32>
    %287 = arith.addf %271, %286 : vector<8x256xf32>
    %c31_i32 = arith.constant 31 : i32
    %288 = tpu.dynamic_rotate %9 by %c31_i32 dim 1 : vector<16x256xf32>, i32 -> vector<16x256xf32>
    %c11 = arith.constant 11 : index
    %289 = memref.load %arg1[%c11] : memref<98xf32, #tpu.memory_space<smem>>
    %290 = vector.extract_strided_slice %288 {offsets = [0, 0], sizes = [8, 256], strides = [1, 1]} : vector<16x256xf32> to vector<8x256xf32>
    %291 = vector.broadcast %289 : f32 to vector<8x256xf32>
    %292 = arith.mulf %291, %290 : vector<8x256xf32>
    %c60 = arith.constant 60 : index
    %293 = memref.load %arg1[%c60] : memref<98xf32, #tpu.memory_space<smem>>
    %294 = vector.extract_strided_slice %288 {offsets = [8, 0], sizes = [8, 256], strides = [1, 1]} : vector<16x256xf32> to vector<8x256xf32>
    %295 = vector.broadcast %293 : f32 to vector<8x256xf32>
    %296 = arith.mulf %295, %294 : vector<8x256xf32>
    %297 = arith.addf %292, %296 : vector<8x256xf32>
    %298 = arith.andi %22, %92 : vector<1x256xi1>
    %cst_43 = arith.constant 0.000000e+00 : f32
    %299 = vector.shape_cast %298 : vector<1x256xi1> to vector<1x256xi1>
    %300 = vector.broadcast %299 : vector<1x256xi1> to vector<8x256xi1>
    %301 = vector.broadcast %cst_43 : f32 to vector<8x256xf32>
    %302 = arith.select %300, %297, %301 : vector<8x256xi1>, vector<8x256xf32>
    %303 = arith.addf %287, %302 : vector<8x256xf32>
    %c30_i32 = arith.constant 30 : i32
    %304 = tpu.dynamic_rotate %9 by %c30_i32 dim 1 : vector<16x256xf32>, i32 -> vector<16x256xf32>
    %c12 = arith.constant 12 : index
    %305 = memref.load %arg1[%c12] : memref<98xf32, #tpu.memory_space<smem>>
    %306 = vector.extract_strided_slice %304 {offsets = [0, 0], sizes = [8, 256], strides = [1, 1]} : vector<16x256xf32> to vector<8x256xf32>
    %307 = vector.broadcast %305 : f32 to vector<8x256xf32>
    %308 = arith.mulf %307, %306 : vector<8x256xf32>
    %c61 = arith.constant 61 : index
    %309 = memref.load %arg1[%c61] : memref<98xf32, #tpu.memory_space<smem>>
    %310 = vector.extract_strided_slice %304 {offsets = [8, 0], sizes = [8, 256], strides = [1, 1]} : vector<16x256xf32> to vector<8x256xf32>
    %311 = vector.broadcast %309 : f32 to vector<8x256xf32>
    %312 = arith.mulf %311, %310 : vector<8x256xf32>
    %313 = arith.addf %308, %312 : vector<8x256xf32>
    %314 = arith.andi %22, %101 : vector<1x256xi1>
    %cst_44 = arith.constant 0.000000e+00 : f32
    %315 = vector.shape_cast %314 : vector<1x256xi1> to vector<1x256xi1>
    %316 = vector.broadcast %315 : vector<1x256xi1> to vector<8x256xi1>
    %317 = vector.broadcast %cst_44 : f32 to vector<8x256xf32>
    %318 = arith.select %316, %313, %317 : vector<8x256xi1>, vector<8x256xf32>
    %319 = arith.addf %303, %318 : vector<8x256xf32>
    %c29_i32 = arith.constant 29 : i32
    %320 = tpu.dynamic_rotate %9 by %c29_i32 dim 1 : vector<16x256xf32>, i32 -> vector<16x256xf32>
    %c13 = arith.constant 13 : index
    %321 = memref.load %arg1[%c13] : memref<98xf32, #tpu.memory_space<smem>>
    %322 = vector.extract_strided_slice %320 {offsets = [0, 0], sizes = [8, 256], strides = [1, 1]} : vector<16x256xf32> to vector<8x256xf32>
    %323 = vector.broadcast %321 : f32 to vector<8x256xf32>
    %324 = arith.mulf %323, %322 : vector<8x256xf32>
    %c62 = arith.constant 62 : index
    %325 = memref.load %arg1[%c62] : memref<98xf32, #tpu.memory_space<smem>>
    %326 = vector.extract_strided_slice %320 {offsets = [8, 0], sizes = [8, 256], strides = [1, 1]} : vector<16x256xf32> to vector<8x256xf32>
    %327 = vector.broadcast %325 : f32 to vector<8x256xf32>
    %328 = arith.mulf %327, %326 : vector<8x256xf32>
    %329 = arith.addf %324, %328 : vector<8x256xf32>
    %330 = arith.andi %22, %110 : vector<1x256xi1>
    %cst_45 = arith.constant 0.000000e+00 : f32
    %331 = vector.shape_cast %330 : vector<1x256xi1> to vector<1x256xi1>
    %332 = vector.broadcast %331 : vector<1x256xi1> to vector<8x256xi1>
    %333 = vector.broadcast %cst_45 : f32 to vector<8x256xf32>
    %334 = arith.select %332, %329, %333 : vector<8x256xi1>, vector<8x256xf32>
    %335 = arith.addf %319, %334 : vector<8x256xf32>
    %c19_i32 = arith.constant 19 : i32
    %336 = tpu.dynamic_rotate %9 by %c19_i32 dim 1 : vector<16x256xf32>, i32 -> vector<16x256xf32>
    %c14 = arith.constant 14 : index
    %337 = memref.load %arg1[%c14] : memref<98xf32, #tpu.memory_space<smem>>
    %338 = vector.extract_strided_slice %336 {offsets = [0, 0], sizes = [8, 256], strides = [1, 1]} : vector<16x256xf32> to vector<8x256xf32>
    %339 = vector.broadcast %337 : f32 to vector<8x256xf32>
    %340 = arith.mulf %339, %338 : vector<8x256xf32>
    %c63 = arith.constant 63 : index
    %341 = memref.load %arg1[%c63] : memref<98xf32, #tpu.memory_space<smem>>
    %342 = vector.extract_strided_slice %336 {offsets = [8, 0], sizes = [8, 256], strides = [1, 1]} : vector<16x256xf32> to vector<8x256xf32>
    %343 = vector.broadcast %341 : f32 to vector<8x256xf32>
    %344 = arith.mulf %343, %342 : vector<8x256xf32>
    %345 = arith.addf %340, %344 : vector<8x256xf32>
    %346 = arith.andi %27, %56 : vector<1x256xi1>
    %cst_46 = arith.constant 0.000000e+00 : f32
    %347 = vector.shape_cast %346 : vector<1x256xi1> to vector<1x256xi1>
    %348 = vector.broadcast %347 : vector<1x256xi1> to vector<8x256xi1>
    %349 = vector.broadcast %cst_46 : f32 to vector<8x256xf32>
    %350 = arith.select %348, %345, %349 : vector<8x256xi1>, vector<8x256xf32>
    %351 = arith.addf %335, %350 : vector<8x256xf32>
    %c18_i32 = arith.constant 18 : i32
    %352 = tpu.dynamic_rotate %9 by %c18_i32 dim 1 : vector<16x256xf32>, i32 -> vector<16x256xf32>
    %c15 = arith.constant 15 : index
    %353 = memref.load %arg1[%c15] : memref<98xf32, #tpu.memory_space<smem>>
    %354 = vector.extract_strided_slice %352 {offsets = [0, 0], sizes = [8, 256], strides = [1, 1]} : vector<16x256xf32> to vector<8x256xf32>
    %355 = vector.broadcast %353 : f32 to vector<8x256xf32>
    %356 = arith.mulf %355, %354 : vector<8x256xf32>
    %c64 = arith.constant 64 : index
    %357 = memref.load %arg1[%c64] : memref<98xf32, #tpu.memory_space<smem>>
    %358 = vector.extract_strided_slice %352 {offsets = [8, 0], sizes = [8, 256], strides = [1, 1]} : vector<16x256xf32> to vector<8x256xf32>
    %359 = vector.broadcast %357 : f32 to vector<8x256xf32>
    %360 = arith.mulf %359, %358 : vector<8x256xf32>
    %361 = arith.addf %356, %360 : vector<8x256xf32>
    %362 = arith.andi %27, %65 : vector<1x256xi1>
    %cst_47 = arith.constant 0.000000e+00 : f32
    %363 = vector.shape_cast %362 : vector<1x256xi1> to vector<1x256xi1>
    %364 = vector.broadcast %363 : vector<1x256xi1> to vector<8x256xi1>
    %365 = vector.broadcast %cst_47 : f32 to vector<8x256xf32>
    %366 = arith.select %364, %361, %365 : vector<8x256xi1>, vector<8x256xf32>
    %367 = arith.addf %351, %366 : vector<8x256xf32>
    %c17_i32 = arith.constant 17 : i32
    %368 = tpu.dynamic_rotate %9 by %c17_i32 dim 1 : vector<16x256xf32>, i32 -> vector<16x256xf32>
    %c16 = arith.constant 16 : index
    %369 = memref.load %arg1[%c16] : memref<98xf32, #tpu.memory_space<smem>>
    %370 = vector.extract_strided_slice %368 {offsets = [0, 0], sizes = [8, 256], strides = [1, 1]} : vector<16x256xf32> to vector<8x256xf32>
    %371 = vector.broadcast %369 : f32 to vector<8x256xf32>
    %372 = arith.mulf %371, %370 : vector<8x256xf32>
    %c65 = arith.constant 65 : index
    %373 = memref.load %arg1[%c65] : memref<98xf32, #tpu.memory_space<smem>>
    %374 = vector.extract_strided_slice %368 {offsets = [8, 0], sizes = [8, 256], strides = [1, 1]} : vector<16x256xf32> to vector<8x256xf32>
    %375 = vector.broadcast %373 : f32 to vector<8x256xf32>
    %376 = arith.mulf %375, %374 : vector<8x256xf32>
    %377 = arith.addf %372, %376 : vector<8x256xf32>
    %378 = arith.andi %27, %74 : vector<1x256xi1>
    %cst_48 = arith.constant 0.000000e+00 : f32
    %379 = vector.shape_cast %378 : vector<1x256xi1> to vector<1x256xi1>
    %380 = vector.broadcast %379 : vector<1x256xi1> to vector<8x256xi1>
    %381 = vector.broadcast %cst_48 : f32 to vector<8x256xf32>
    %382 = arith.select %380, %377, %381 : vector<8x256xi1>, vector<8x256xf32>
    %383 = arith.addf %367, %382 : vector<8x256xf32>
    %c16_i32_49 = arith.constant 16 : i32
    %384 = tpu.dynamic_rotate %9 by %c16_i32_49 dim 1 : vector<16x256xf32>, i32 -> vector<16x256xf32>
    %c17 = arith.constant 17 : index
    %385 = memref.load %arg1[%c17] : memref<98xf32, #tpu.memory_space<smem>>
    %386 = vector.extract_strided_slice %384 {offsets = [0, 0], sizes = [8, 256], strides = [1, 1]} : vector<16x256xf32> to vector<8x256xf32>
    %387 = vector.broadcast %385 : f32 to vector<8x256xf32>
    %388 = arith.mulf %387, %386 : vector<8x256xf32>
    %c66 = arith.constant 66 : index
    %389 = memref.load %arg1[%c66] : memref<98xf32, #tpu.memory_space<smem>>
    %390 = vector.extract_strided_slice %384 {offsets = [8, 0], sizes = [8, 256], strides = [1, 1]} : vector<16x256xf32> to vector<8x256xf32>
    %391 = vector.broadcast %389 : f32 to vector<8x256xf32>
    %392 = arith.mulf %391, %390 : vector<8x256xf32>
    %393 = arith.addf %388, %392 : vector<8x256xf32>
    %394 = arith.andi %27, %83 : vector<1x256xi1>
    %cst_50 = arith.constant 0.000000e+00 : f32
    %395 = vector.shape_cast %394 : vector<1x256xi1> to vector<1x256xi1>
    %396 = vector.broadcast %395 : vector<1x256xi1> to vector<8x256xi1>
    %397 = vector.broadcast %cst_50 : f32 to vector<8x256xf32>
    %398 = arith.select %396, %393, %397 : vector<8x256xi1>, vector<8x256xf32>
    %399 = arith.addf %383, %398 : vector<8x256xf32>
    %c15_i32_51 = arith.constant 15 : i32
    %400 = tpu.dynamic_rotate %9 by %c15_i32_51 dim 1 : vector<16x256xf32>, i32 -> vector<16x256xf32>
    %c18 = arith.constant 18 : index
    %401 = memref.load %arg1[%c18] : memref<98xf32, #tpu.memory_space<smem>>
    %402 = vector.extract_strided_slice %400 {offsets = [0, 0], sizes = [8, 256], strides = [1, 1]} : vector<16x256xf32> to vector<8x256xf32>
    %403 = vector.broadcast %401 : f32 to vector<8x256xf32>
    %404 = arith.mulf %403, %402 : vector<8x256xf32>
    %c67 = arith.constant 67 : index
    %405 = memref.load %arg1[%c67] : memref<98xf32, #tpu.memory_space<smem>>
    %406 = vector.extract_strided_slice %400 {offsets = [8, 0], sizes = [8, 256], strides = [1, 1]} : vector<16x256xf32> to vector<8x256xf32>
    %407 = vector.broadcast %405 : f32 to vector<8x256xf32>
    %408 = arith.mulf %407, %406 : vector<8x256xf32>
    %409 = arith.addf %404, %408 : vector<8x256xf32>
    %410 = arith.andi %27, %92 : vector<1x256xi1>
    %cst_52 = arith.constant 0.000000e+00 : f32
    %411 = vector.shape_cast %410 : vector<1x256xi1> to vector<1x256xi1>
    %412 = vector.broadcast %411 : vector<1x256xi1> to vector<8x256xi1>
    %413 = vector.broadcast %cst_52 : f32 to vector<8x256xf32>
    %414 = arith.select %412, %409, %413 : vector<8x256xi1>, vector<8x256xf32>
    %415 = arith.addf %399, %414 : vector<8x256xf32>
    %c14_i32 = arith.constant 14 : i32
    %416 = tpu.dynamic_rotate %9 by %c14_i32 dim 1 : vector<16x256xf32>, i32 -> vector<16x256xf32>
    %c19 = arith.constant 19 : index
    %417 = memref.load %arg1[%c19] : memref<98xf32, #tpu.memory_space<smem>>
    %418 = vector.extract_strided_slice %416 {offsets = [0, 0], sizes = [8, 256], strides = [1, 1]} : vector<16x256xf32> to vector<8x256xf32>
    %419 = vector.broadcast %417 : f32 to vector<8x256xf32>
    %420 = arith.mulf %419, %418 : vector<8x256xf32>
    %c68 = arith.constant 68 : index
    %421 = memref.load %arg1[%c68] : memref<98xf32, #tpu.memory_space<smem>>
    %422 = vector.extract_strided_slice %416 {offsets = [8, 0], sizes = [8, 256], strides = [1, 1]} : vector<16x256xf32> to vector<8x256xf32>
    %423 = vector.broadcast %421 : f32 to vector<8x256xf32>
    %424 = arith.mulf %423, %422 : vector<8x256xf32>
    %425 = arith.addf %420, %424 : vector<8x256xf32>
    %426 = arith.andi %27, %101 : vector<1x256xi1>
    %cst_53 = arith.constant 0.000000e+00 : f32
    %427 = vector.shape_cast %426 : vector<1x256xi1> to vector<1x256xi1>
    %428 = vector.broadcast %427 : vector<1x256xi1> to vector<8x256xi1>
    %429 = vector.broadcast %cst_53 : f32 to vector<8x256xf32>
    %430 = arith.select %428, %425, %429 : vector<8x256xi1>, vector<8x256xf32>
    %431 = arith.addf %415, %430 : vector<8x256xf32>
    %c13_i32 = arith.constant 13 : i32
    %432 = tpu.dynamic_rotate %9 by %c13_i32 dim 1 : vector<16x256xf32>, i32 -> vector<16x256xf32>
    %c20 = arith.constant 20 : index
    %433 = memref.load %arg1[%c20] : memref<98xf32, #tpu.memory_space<smem>>
    %434 = vector.extract_strided_slice %432 {offsets = [0, 0], sizes = [8, 256], strides = [1, 1]} : vector<16x256xf32> to vector<8x256xf32>
    %435 = vector.broadcast %433 : f32 to vector<8x256xf32>
    %436 = arith.mulf %435, %434 : vector<8x256xf32>
    %c69 = arith.constant 69 : index
    %437 = memref.load %arg1[%c69] : memref<98xf32, #tpu.memory_space<smem>>
    %438 = vector.extract_strided_slice %432 {offsets = [8, 0], sizes = [8, 256], strides = [1, 1]} : vector<16x256xf32> to vector<8x256xf32>
    %439 = vector.broadcast %437 : f32 to vector<8x256xf32>
    %440 = arith.mulf %439, %438 : vector<8x256xf32>
    %441 = arith.addf %436, %440 : vector<8x256xf32>
    %442 = arith.andi %27, %110 : vector<1x256xi1>
    %cst_54 = arith.constant 0.000000e+00 : f32
    %443 = vector.shape_cast %442 : vector<1x256xi1> to vector<1x256xi1>
    %444 = vector.broadcast %443 : vector<1x256xi1> to vector<8x256xi1>
    %445 = vector.broadcast %cst_54 : f32 to vector<8x256xf32>
    %446 = arith.select %444, %441, %445 : vector<8x256xi1>, vector<8x256xf32>
    %447 = arith.addf %431, %446 : vector<8x256xf32>
    %c3_i32_55 = arith.constant 3 : i32
    %448 = tpu.dynamic_rotate %9 by %c3_i32_55 dim 1 : vector<16x256xf32>, i32 -> vector<16x256xf32>
    %c21 = arith.constant 21 : index
    %449 = memref.load %arg1[%c21] : memref<98xf32, #tpu.memory_space<smem>>
    %450 = vector.extract_strided_slice %448 {offsets = [0, 0], sizes = [8, 256], strides = [1, 1]} : vector<16x256xf32> to vector<8x256xf32>
    %451 = vector.broadcast %449 : f32 to vector<8x256xf32>
    %452 = arith.mulf %451, %450 : vector<8x256xf32>
    %c70 = arith.constant 70 : index
    %453 = memref.load %arg1[%c70] : memref<98xf32, #tpu.memory_space<smem>>
    %454 = vector.extract_strided_slice %448 {offsets = [8, 0], sizes = [8, 256], strides = [1, 1]} : vector<16x256xf32> to vector<8x256xf32>
    %455 = vector.broadcast %453 : f32 to vector<8x256xf32>
    %456 = arith.mulf %455, %454 : vector<8x256xf32>
    %457 = arith.addf %452, %456 : vector<8x256xf32>
    %458 = arith.andi %32, %56 : vector<1x256xi1>
    %cst_56 = arith.constant 0.000000e+00 : f32
    %459 = vector.shape_cast %458 : vector<1x256xi1> to vector<1x256xi1>
    %460 = vector.broadcast %459 : vector<1x256xi1> to vector<8x256xi1>
    %461 = vector.broadcast %cst_56 : f32 to vector<8x256xf32>
    %462 = arith.select %460, %457, %461 : vector<8x256xi1>, vector<8x256xf32>
    %463 = arith.addf %447, %462 : vector<8x256xf32>
    %c2_i32_57 = arith.constant 2 : i32
    %464 = tpu.dynamic_rotate %9 by %c2_i32_57 dim 1 : vector<16x256xf32>, i32 -> vector<16x256xf32>
    %c22 = arith.constant 22 : index
    %465 = memref.load %arg1[%c22] : memref<98xf32, #tpu.memory_space<smem>>
    %466 = vector.extract_strided_slice %464 {offsets = [0, 0], sizes = [8, 256], strides = [1, 1]} : vector<16x256xf32> to vector<8x256xf32>
    %467 = vector.broadcast %465 : f32 to vector<8x256xf32>
    %468 = arith.mulf %467, %466 : vector<8x256xf32>
    %c71 = arith.constant 71 : index
    %469 = memref.load %arg1[%c71] : memref<98xf32, #tpu.memory_space<smem>>
    %470 = vector.extract_strided_slice %464 {offsets = [8, 0], sizes = [8, 256], strides = [1, 1]} : vector<16x256xf32> to vector<8x256xf32>
    %471 = vector.broadcast %469 : f32 to vector<8x256xf32>
    %472 = arith.mulf %471, %470 : vector<8x256xf32>
    %473 = arith.addf %468, %472 : vector<8x256xf32>
    %474 = arith.andi %32, %65 : vector<1x256xi1>
    %cst_58 = arith.constant 0.000000e+00 : f32
    %475 = vector.shape_cast %474 : vector<1x256xi1> to vector<1x256xi1>
    %476 = vector.broadcast %475 : vector<1x256xi1> to vector<8x256xi1>
    %477 = vector.broadcast %cst_58 : f32 to vector<8x256xf32>
    %478 = arith.select %476, %473, %477 : vector<8x256xi1>, vector<8x256xf32>
    %479 = arith.addf %463, %478 : vector<8x256xf32>
    %c1_i32_59 = arith.constant 1 : i32
    %480 = tpu.dynamic_rotate %9 by %c1_i32_59 dim 1 : vector<16x256xf32>, i32 -> vector<16x256xf32>
    %c23 = arith.constant 23 : index
    %481 = memref.load %arg1[%c23] : memref<98xf32, #tpu.memory_space<smem>>
    %482 = vector.extract_strided_slice %480 {offsets = [0, 0], sizes = [8, 256], strides = [1, 1]} : vector<16x256xf32> to vector<8x256xf32>
    %483 = vector.broadcast %481 : f32 to vector<8x256xf32>
    %484 = arith.mulf %483, %482 : vector<8x256xf32>
    %c72 = arith.constant 72 : index
    %485 = memref.load %arg1[%c72] : memref<98xf32, #tpu.memory_space<smem>>
    %486 = vector.extract_strided_slice %480 {offsets = [8, 0], sizes = [8, 256], strides = [1, 1]} : vector<16x256xf32> to vector<8x256xf32>
    %487 = vector.broadcast %485 : f32 to vector<8x256xf32>
    %488 = arith.mulf %487, %486 : vector<8x256xf32>
    %489 = arith.addf %484, %488 : vector<8x256xf32>
    %490 = arith.andi %32, %74 : vector<1x256xi1>
    %cst_60 = arith.constant 0.000000e+00 : f32
    %491 = vector.shape_cast %490 : vector<1x256xi1> to vector<1x256xi1>
    %492 = vector.broadcast %491 : vector<1x256xi1> to vector<8x256xi1>
    %493 = vector.broadcast %cst_60 : f32 to vector<8x256xf32>
    %494 = arith.select %492, %489, %493 : vector<8x256xi1>, vector<8x256xf32>
    %495 = arith.addf %479, %494 : vector<8x256xf32>
    %c24 = arith.constant 24 : index
    %496 = memref.load %arg1[%c24] : memref<98xf32, #tpu.memory_space<smem>>
    %497 = vector.extract_strided_slice %9 {offsets = [0, 0], sizes = [8, 256], strides = [1, 1]} : vector<16x256xf32> to vector<8x256xf32>
    %498 = vector.broadcast %496 : f32 to vector<8x256xf32>
    %499 = arith.mulf %498, %497 : vector<8x256xf32>
    %c73 = arith.constant 73 : index
    %500 = memref.load %arg1[%c73] : memref<98xf32, #tpu.memory_space<smem>>
    %501 = vector.extract_strided_slice %9 {offsets = [8, 0], sizes = [8, 256], strides = [1, 1]} : vector<16x256xf32> to vector<8x256xf32>
    %502 = vector.broadcast %500 : f32 to vector<8x256xf32>
    %503 = arith.mulf %502, %501 : vector<8x256xf32>
    %504 = arith.addf %499, %503 : vector<8x256xf32>
    %505 = arith.andi %32, %83 : vector<1x256xi1>
    %cst_61 = arith.constant 0.000000e+00 : f32
    %506 = vector.shape_cast %505 : vector<1x256xi1> to vector<1x256xi1>
    %507 = vector.broadcast %506 : vector<1x256xi1> to vector<8x256xi1>
    %508 = vector.broadcast %cst_61 : f32 to vector<8x256xf32>
    %509 = arith.select %507, %504, %508 : vector<8x256xi1>, vector<8x256xf32>
    %510 = arith.addf %495, %509 : vector<8x256xf32>
    %c255_i32 = arith.constant 255 : i32
    %511 = tpu.dynamic_rotate %9 by %c255_i32 dim 1 : vector<16x256xf32>, i32 -> vector<16x256xf32>
    %c25 = arith.constant 25 : index
    %512 = memref.load %arg1[%c25] : memref<98xf32, #tpu.memory_space<smem>>
    %513 = vector.extract_strided_slice %511 {offsets = [0, 0], sizes = [8, 256], strides = [1, 1]} : vector<16x256xf32> to vector<8x256xf32>
    %514 = vector.broadcast %512 : f32 to vector<8x256xf32>
    %515 = arith.mulf %514, %513 : vector<8x256xf32>
    %c74 = arith.constant 74 : index
    %516 = memref.load %arg1[%c74] : memref<98xf32, #tpu.memory_space<smem>>
    %517 = vector.extract_strided_slice %511 {offsets = [8, 0], sizes = [8, 256], strides = [1, 1]} : vector<16x256xf32> to vector<8x256xf32>
    %518 = vector.broadcast %516 : f32 to vector<8x256xf32>
    %519 = arith.mulf %518, %517 : vector<8x256xf32>
    %520 = arith.addf %515, %519 : vector<8x256xf32>
    %521 = arith.andi %32, %92 : vector<1x256xi1>
    %cst_62 = arith.constant 0.000000e+00 : f32
    %522 = vector.shape_cast %521 : vector<1x256xi1> to vector<1x256xi1>
    %523 = vector.broadcast %522 : vector<1x256xi1> to vector<8x256xi1>
    %524 = vector.broadcast %cst_62 : f32 to vector<8x256xf32>
    %525 = arith.select %523, %520, %524 : vector<8x256xi1>, vector<8x256xf32>
    %526 = arith.addf %510, %525 : vector<8x256xf32>
    %c254_i32 = arith.constant 254 : i32
    %527 = tpu.dynamic_rotate %9 by %c254_i32 dim 1 : vector<16x256xf32>, i32 -> vector<16x256xf32>
    %c26 = arith.constant 26 : index
    %528 = memref.load %arg1[%c26] : memref<98xf32, #tpu.memory_space<smem>>
    %529 = vector.extract_strided_slice %527 {offsets = [0, 0], sizes = [8, 256], strides = [1, 1]} : vector<16x256xf32> to vector<8x256xf32>
    %530 = vector.broadcast %528 : f32 to vector<8x256xf32>
    %531 = arith.mulf %530, %529 : vector<8x256xf32>
    %c75 = arith.constant 75 : index
    %532 = memref.load %arg1[%c75] : memref<98xf32, #tpu.memory_space<smem>>
    %533 = vector.extract_strided_slice %527 {offsets = [8, 0], sizes = [8, 256], strides = [1, 1]} : vector<16x256xf32> to vector<8x256xf32>
    %534 = vector.broadcast %532 : f32 to vector<8x256xf32>
    %535 = arith.mulf %534, %533 : vector<8x256xf32>
    %536 = arith.addf %531, %535 : vector<8x256xf32>
    %537 = arith.andi %32, %101 : vector<1x256xi1>
    %cst_63 = arith.constant 0.000000e+00 : f32
    %538 = vector.shape_cast %537 : vector<1x256xi1> to vector<1x256xi1>
    %539 = vector.broadcast %538 : vector<1x256xi1> to vector<8x256xi1>
    %540 = vector.broadcast %cst_63 : f32 to vector<8x256xf32>
    %541 = arith.select %539, %536, %540 : vector<8x256xi1>, vector<8x256xf32>
    %542 = arith.addf %526, %541 : vector<8x256xf32>
    %c253_i32 = arith.constant 253 : i32
    %543 = tpu.dynamic_rotate %9 by %c253_i32 dim 1 : vector<16x256xf32>, i32 -> vector<16x256xf32>
    %c27 = arith.constant 27 : index
    %544 = memref.load %arg1[%c27] : memref<98xf32, #tpu.memory_space<smem>>
    %545 = vector.extract_strided_slice %543 {offsets = [0, 0], sizes = [8, 256], strides = [1, 1]} : vector<16x256xf32> to vector<8x256xf32>
    %546 = vector.broadcast %544 : f32 to vector<8x256xf32>
    %547 = arith.mulf %546, %545 : vector<8x256xf32>
    %c76 = arith.constant 76 : index
    %548 = memref.load %arg1[%c76] : memref<98xf32, #tpu.memory_space<smem>>
    %549 = vector.extract_strided_slice %543 {offsets = [8, 0], sizes = [8, 256], strides = [1, 1]} : vector<16x256xf32> to vector<8x256xf32>
    %550 = vector.broadcast %548 : f32 to vector<8x256xf32>
    %551 = arith.mulf %550, %549 : vector<8x256xf32>
    %552 = arith.addf %547, %551 : vector<8x256xf32>
    %553 = arith.andi %32, %110 : vector<1x256xi1>
    %cst_64 = arith.constant 0.000000e+00 : f32
    %554 = vector.shape_cast %553 : vector<1x256xi1> to vector<1x256xi1>
    %555 = vector.broadcast %554 : vector<1x256xi1> to vector<8x256xi1>
    %556 = vector.broadcast %cst_64 : f32 to vector<8x256xf32>
    %557 = arith.select %555, %552, %556 : vector<8x256xi1>, vector<8x256xf32>
    %558 = arith.addf %542, %557 : vector<8x256xf32>
    %c243_i32 = arith.constant 243 : i32
    %559 = tpu.dynamic_rotate %9 by %c243_i32 dim 1 : vector<16x256xf32>, i32 -> vector<16x256xf32>
    %c28 = arith.constant 28 : index
    %560 = memref.load %arg1[%c28] : memref<98xf32, #tpu.memory_space<smem>>
    %561 = vector.extract_strided_slice %559 {offsets = [0, 0], sizes = [8, 256], strides = [1, 1]} : vector<16x256xf32> to vector<8x256xf32>
    %562 = vector.broadcast %560 : f32 to vector<8x256xf32>
    %563 = arith.mulf %562, %561 : vector<8x256xf32>
    %c77 = arith.constant 77 : index
    %564 = memref.load %arg1[%c77] : memref<98xf32, #tpu.memory_space<smem>>
    %565 = vector.extract_strided_slice %559 {offsets = [8, 0], sizes = [8, 256], strides = [1, 1]} : vector<16x256xf32> to vector<8x256xf32>
    %566 = vector.broadcast %564 : f32 to vector<8x256xf32>
    %567 = arith.mulf %566, %565 : vector<8x256xf32>
    %568 = arith.addf %563, %567 : vector<8x256xf32>
    %569 = arith.andi %37, %56 : vector<1x256xi1>
    %cst_65 = arith.constant 0.000000e+00 : f32
    %570 = vector.shape_cast %569 : vector<1x256xi1> to vector<1x256xi1>
    %571 = vector.broadcast %570 : vector<1x256xi1> to vector<8x256xi1>
    %572 = vector.broadcast %cst_65 : f32 to vector<8x256xf32>
    %573 = arith.select %571, %568, %572 : vector<8x256xi1>, vector<8x256xf32>
    %574 = arith.addf %558, %573 : vector<8x256xf32>
    %c242_i32 = arith.constant 242 : i32
    %575 = tpu.dynamic_rotate %9 by %c242_i32 dim 1 : vector<16x256xf32>, i32 -> vector<16x256xf32>
    %c29 = arith.constant 29 : index
    %576 = memref.load %arg1[%c29] : memref<98xf32, #tpu.memory_space<smem>>
    %577 = vector.extract_strided_slice %575 {offsets = [0, 0], sizes = [8, 256], strides = [1, 1]} : vector<16x256xf32> to vector<8x256xf32>
    %578 = vector.broadcast %576 : f32 to vector<8x256xf32>
    %579 = arith.mulf %578, %577 : vector<8x256xf32>
    %c78 = arith.constant 78 : index
    %580 = memref.load %arg1[%c78] : memref<98xf32, #tpu.memory_space<smem>>
    %581 = vector.extract_strided_slice %575 {offsets = [8, 0], sizes = [8, 256], strides = [1, 1]} : vector<16x256xf32> to vector<8x256xf32>
    %582 = vector.broadcast %580 : f32 to vector<8x256xf32>
    %583 = arith.mulf %582, %581 : vector<8x256xf32>
    %584 = arith.addf %579, %583 : vector<8x256xf32>
    %585 = arith.andi %37, %65 : vector<1x256xi1>
    %cst_66 = arith.constant 0.000000e+00 : f32
    %586 = vector.shape_cast %585 : vector<1x256xi1> to vector<1x256xi1>
    %587 = vector.broadcast %586 : vector<1x256xi1> to vector<8x256xi1>
    %588 = vector.broadcast %cst_66 : f32 to vector<8x256xf32>
    %589 = arith.select %587, %584, %588 : vector<8x256xi1>, vector<8x256xf32>
    %590 = arith.addf %574, %589 : vector<8x256xf32>
    %c241_i32 = arith.constant 241 : i32
    %591 = tpu.dynamic_rotate %9 by %c241_i32 dim 1 : vector<16x256xf32>, i32 -> vector<16x256xf32>
    %c30 = arith.constant 30 : index
    %592 = memref.load %arg1[%c30] : memref<98xf32, #tpu.memory_space<smem>>
    %593 = vector.extract_strided_slice %591 {offsets = [0, 0], sizes = [8, 256], strides = [1, 1]} : vector<16x256xf32> to vector<8x256xf32>
    %594 = vector.broadcast %592 : f32 to vector<8x256xf32>
    %595 = arith.mulf %594, %593 : vector<8x256xf32>
    %c79 = arith.constant 79 : index
    %596 = memref.load %arg1[%c79] : memref<98xf32, #tpu.memory_space<smem>>
    %597 = vector.extract_strided_slice %591 {offsets = [8, 0], sizes = [8, 256], strides = [1, 1]} : vector<16x256xf32> to vector<8x256xf32>
    %598 = vector.broadcast %596 : f32 to vector<8x256xf32>
    %599 = arith.mulf %598, %597 : vector<8x256xf32>
    %600 = arith.addf %595, %599 : vector<8x256xf32>
    %601 = arith.andi %37, %74 : vector<1x256xi1>
    %cst_67 = arith.constant 0.000000e+00 : f32
    %602 = vector.shape_cast %601 : vector<1x256xi1> to vector<1x256xi1>
    %603 = vector.broadcast %602 : vector<1x256xi1> to vector<8x256xi1>
    %604 = vector.broadcast %cst_67 : f32 to vector<8x256xf32>
    %605 = arith.select %603, %600, %604 : vector<8x256xi1>, vector<8x256xf32>
    %606 = arith.addf %590, %605 : vector<8x256xf32>
    %c240_i32_68 = arith.constant 240 : i32
    %607 = tpu.dynamic_rotate %9 by %c240_i32_68 dim 1 : vector<16x256xf32>, i32 -> vector<16x256xf32>
    %c31 = arith.constant 31 : index
    %608 = memref.load %arg1[%c31] : memref<98xf32, #tpu.memory_space<smem>>
    %609 = vector.extract_strided_slice %607 {offsets = [0, 0], sizes = [8, 256], strides = [1, 1]} : vector<16x256xf32> to vector<8x256xf32>
    %610 = vector.broadcast %608 : f32 to vector<8x256xf32>
    %611 = arith.mulf %610, %609 : vector<8x256xf32>
    %c80 = arith.constant 80 : index
    %612 = memref.load %arg1[%c80] : memref<98xf32, #tpu.memory_space<smem>>
    %613 = vector.extract_strided_slice %607 {offsets = [8, 0], sizes = [8, 256], strides = [1, 1]} : vector<16x256xf32> to vector<8x256xf32>
    %614 = vector.broadcast %612 : f32 to vector<8x256xf32>
    %615 = arith.mulf %614, %613 : vector<8x256xf32>
    %616 = arith.addf %611, %615 : vector<8x256xf32>
    %617 = arith.andi %37, %83 : vector<1x256xi1>
    %cst_69 = arith.constant 0.000000e+00 : f32
    %618 = vector.shape_cast %617 : vector<1x256xi1> to vector<1x256xi1>
    %619 = vector.broadcast %618 : vector<1x256xi1> to vector<8x256xi1>
    %620 = vector.broadcast %cst_69 : f32 to vector<8x256xf32>
    %621 = arith.select %619, %616, %620 : vector<8x256xi1>, vector<8x256xf32>
    %622 = arith.addf %606, %621 : vector<8x256xf32>
    %c239_i32 = arith.constant 239 : i32
    %623 = tpu.dynamic_rotate %9 by %c239_i32 dim 1 : vector<16x256xf32>, i32 -> vector<16x256xf32>
    %c32 = arith.constant 32 : index
    %624 = memref.load %arg1[%c32] : memref<98xf32, #tpu.memory_space<smem>>
    %625 = vector.extract_strided_slice %623 {offsets = [0, 0], sizes = [8, 256], strides = [1, 1]} : vector<16x256xf32> to vector<8x256xf32>
    %626 = vector.broadcast %624 : f32 to vector<8x256xf32>
    %627 = arith.mulf %626, %625 : vector<8x256xf32>
    %c81 = arith.constant 81 : index
    %628 = memref.load %arg1[%c81] : memref<98xf32, #tpu.memory_space<smem>>
    %629 = vector.extract_strided_slice %623 {offsets = [8, 0], sizes = [8, 256], strides = [1, 1]} : vector<16x256xf32> to vector<8x256xf32>
    %630 = vector.broadcast %628 : f32 to vector<8x256xf32>
    %631 = arith.mulf %630, %629 : vector<8x256xf32>
    %632 = arith.addf %627, %631 : vector<8x256xf32>
    %633 = arith.andi %37, %92 : vector<1x256xi1>
    %cst_70 = arith.constant 0.000000e+00 : f32
    %634 = vector.shape_cast %633 : vector<1x256xi1> to vector<1x256xi1>
    %635 = vector.broadcast %634 : vector<1x256xi1> to vector<8x256xi1>
    %636 = vector.broadcast %cst_70 : f32 to vector<8x256xf32>
    %637 = arith.select %635, %632, %636 : vector<8x256xi1>, vector<8x256xf32>
    %638 = arith.addf %622, %637 : vector<8x256xf32>
    %c238_i32 = arith.constant 238 : i32
    %639 = tpu.dynamic_rotate %9 by %c238_i32 dim 1 : vector<16x256xf32>, i32 -> vector<16x256xf32>
    %c33 = arith.constant 33 : index
    %640 = memref.load %arg1[%c33] : memref<98xf32, #tpu.memory_space<smem>>
    %641 = vector.extract_strided_slice %639 {offsets = [0, 0], sizes = [8, 256], strides = [1, 1]} : vector<16x256xf32> to vector<8x256xf32>
    %642 = vector.broadcast %640 : f32 to vector<8x256xf32>
    %643 = arith.mulf %642, %641 : vector<8x256xf32>
    %c82 = arith.constant 82 : index
    %644 = memref.load %arg1[%c82] : memref<98xf32, #tpu.memory_space<smem>>
    %645 = vector.extract_strided_slice %639 {offsets = [8, 0], sizes = [8, 256], strides = [1, 1]} : vector<16x256xf32> to vector<8x256xf32>
    %646 = vector.broadcast %644 : f32 to vector<8x256xf32>
    %647 = arith.mulf %646, %645 : vector<8x256xf32>
    %648 = arith.addf %643, %647 : vector<8x256xf32>
    %649 = arith.andi %37, %101 : vector<1x256xi1>
    %cst_71 = arith.constant 0.000000e+00 : f32
    %650 = vector.shape_cast %649 : vector<1x256xi1> to vector<1x256xi1>
    %651 = vector.broadcast %650 : vector<1x256xi1> to vector<8x256xi1>
    %652 = vector.broadcast %cst_71 : f32 to vector<8x256xf32>
    %653 = arith.select %651, %648, %652 : vector<8x256xi1>, vector<8x256xf32>
    %654 = arith.addf %638, %653 : vector<8x256xf32>
    %c237_i32 = arith.constant 237 : i32
    %655 = tpu.dynamic_rotate %9 by %c237_i32 dim 1 : vector<16x256xf32>, i32 -> vector<16x256xf32>
    %c34 = arith.constant 34 : index
    %656 = memref.load %arg1[%c34] : memref<98xf32, #tpu.memory_space<smem>>
    %657 = vector.extract_strided_slice %655 {offsets = [0, 0], sizes = [8, 256], strides = [1, 1]} : vector<16x256xf32> to vector<8x256xf32>
    %658 = vector.broadcast %656 : f32 to vector<8x256xf32>
    %659 = arith.mulf %658, %657 : vector<8x256xf32>
    %c83 = arith.constant 83 : index
    %660 = memref.load %arg1[%c83] : memref<98xf32, #tpu.memory_space<smem>>
    %661 = vector.extract_strided_slice %655 {offsets = [8, 0], sizes = [8, 256], strides = [1, 1]} : vector<16x256xf32> to vector<8x256xf32>
    %662 = vector.broadcast %660 : f32 to vector<8x256xf32>
    %663 = arith.mulf %662, %661 : vector<8x256xf32>
    %664 = arith.addf %659, %663 : vector<8x256xf32>
    %665 = arith.andi %37, %110 : vector<1x256xi1>
    %cst_72 = arith.constant 0.000000e+00 : f32
    %666 = vector.shape_cast %665 : vector<1x256xi1> to vector<1x256xi1>
    %667 = vector.broadcast %666 : vector<1x256xi1> to vector<8x256xi1>
    %668 = vector.broadcast %cst_72 : f32 to vector<8x256xf32>
    %669 = arith.select %667, %664, %668 : vector<8x256xi1>, vector<8x256xf32>
    %670 = arith.addf %654, %669 : vector<8x256xf32>
    %c227_i32 = arith.constant 227 : i32
    %671 = tpu.dynamic_rotate %9 by %c227_i32 dim 1 : vector<16x256xf32>, i32 -> vector<16x256xf32>
    %c35 = arith.constant 35 : index
    %672 = memref.load %arg1[%c35] : memref<98xf32, #tpu.memory_space<smem>>
    %673 = vector.extract_strided_slice %671 {offsets = [0, 0], sizes = [8, 256], strides = [1, 1]} : vector<16x256xf32> to vector<8x256xf32>
    %674 = vector.broadcast %672 : f32 to vector<8x256xf32>
    %675 = arith.mulf %674, %673 : vector<8x256xf32>
    %c84 = arith.constant 84 : index
    %676 = memref.load %arg1[%c84] : memref<98xf32, #tpu.memory_space<smem>>
    %677 = vector.extract_strided_slice %671 {offsets = [8, 0], sizes = [8, 256], strides = [1, 1]} : vector<16x256xf32> to vector<8x256xf32>
    %678 = vector.broadcast %676 : f32 to vector<8x256xf32>
    %679 = arith.mulf %678, %677 : vector<8x256xf32>
    %680 = arith.addf %675, %679 : vector<8x256xf32>
    %681 = arith.andi %42, %56 : vector<1x256xi1>
    %cst_73 = arith.constant 0.000000e+00 : f32
    %682 = vector.shape_cast %681 : vector<1x256xi1> to vector<1x256xi1>
    %683 = vector.broadcast %682 : vector<1x256xi1> to vector<8x256xi1>
    %684 = vector.broadcast %cst_73 : f32 to vector<8x256xf32>
    %685 = arith.select %683, %680, %684 : vector<8x256xi1>, vector<8x256xf32>
    %686 = arith.addf %670, %685 : vector<8x256xf32>
    %c226_i32 = arith.constant 226 : i32
    %687 = tpu.dynamic_rotate %9 by %c226_i32 dim 1 : vector<16x256xf32>, i32 -> vector<16x256xf32>
    %c36 = arith.constant 36 : index
    %688 = memref.load %arg1[%c36] : memref<98xf32, #tpu.memory_space<smem>>
    %689 = vector.extract_strided_slice %687 {offsets = [0, 0], sizes = [8, 256], strides = [1, 1]} : vector<16x256xf32> to vector<8x256xf32>
    %690 = vector.broadcast %688 : f32 to vector<8x256xf32>
    %691 = arith.mulf %690, %689 : vector<8x256xf32>
    %c85 = arith.constant 85 : index
    %692 = memref.load %arg1[%c85] : memref<98xf32, #tpu.memory_space<smem>>
    %693 = vector.extract_strided_slice %687 {offsets = [8, 0], sizes = [8, 256], strides = [1, 1]} : vector<16x256xf32> to vector<8x256xf32>
    %694 = vector.broadcast %692 : f32 to vector<8x256xf32>
    %695 = arith.mulf %694, %693 : vector<8x256xf32>
    %696 = arith.addf %691, %695 : vector<8x256xf32>
    %697 = arith.andi %42, %65 : vector<1x256xi1>
    %cst_74 = arith.constant 0.000000e+00 : f32
    %698 = vector.shape_cast %697 : vector<1x256xi1> to vector<1x256xi1>
    %699 = vector.broadcast %698 : vector<1x256xi1> to vector<8x256xi1>
    %700 = vector.broadcast %cst_74 : f32 to vector<8x256xf32>
    %701 = arith.select %699, %696, %700 : vector<8x256xi1>, vector<8x256xf32>
    %702 = arith.addf %686, %701 : vector<8x256xf32>
    %c225_i32 = arith.constant 225 : i32
    %703 = tpu.dynamic_rotate %9 by %c225_i32 dim 1 : vector<16x256xf32>, i32 -> vector<16x256xf32>
    %c37 = arith.constant 37 : index
    %704 = memref.load %arg1[%c37] : memref<98xf32, #tpu.memory_space<smem>>
    %705 = vector.extract_strided_slice %703 {offsets = [0, 0], sizes = [8, 256], strides = [1, 1]} : vector<16x256xf32> to vector<8x256xf32>
    %706 = vector.broadcast %704 : f32 to vector<8x256xf32>
    %707 = arith.mulf %706, %705 : vector<8x256xf32>
    %c86 = arith.constant 86 : index
    %708 = memref.load %arg1[%c86] : memref<98xf32, #tpu.memory_space<smem>>
    %709 = vector.extract_strided_slice %703 {offsets = [8, 0], sizes = [8, 256], strides = [1, 1]} : vector<16x256xf32> to vector<8x256xf32>
    %710 = vector.broadcast %708 : f32 to vector<8x256xf32>
    %711 = arith.mulf %710, %709 : vector<8x256xf32>
    %712 = arith.addf %707, %711 : vector<8x256xf32>
    %713 = arith.andi %42, %74 : vector<1x256xi1>
    %cst_75 = arith.constant 0.000000e+00 : f32
    %714 = vector.shape_cast %713 : vector<1x256xi1> to vector<1x256xi1>
    %715 = vector.broadcast %714 : vector<1x256xi1> to vector<8x256xi1>
    %716 = vector.broadcast %cst_75 : f32 to vector<8x256xf32>
    %717 = arith.select %715, %712, %716 : vector<8x256xi1>, vector<8x256xf32>
    %718 = arith.addf %702, %717 : vector<8x256xf32>
    %c224_i32_76 = arith.constant 224 : i32
    %719 = tpu.dynamic_rotate %9 by %c224_i32_76 dim 1 : vector<16x256xf32>, i32 -> vector<16x256xf32>
    %c38 = arith.constant 38 : index
    %720 = memref.load %arg1[%c38] : memref<98xf32, #tpu.memory_space<smem>>
    %721 = vector.extract_strided_slice %719 {offsets = [0, 0], sizes = [8, 256], strides = [1, 1]} : vector<16x256xf32> to vector<8x256xf32>
    %722 = vector.broadcast %720 : f32 to vector<8x256xf32>
    %723 = arith.mulf %722, %721 : vector<8x256xf32>
    %c87 = arith.constant 87 : index
    %724 = memref.load %arg1[%c87] : memref<98xf32, #tpu.memory_space<smem>>
    %725 = vector.extract_strided_slice %719 {offsets = [8, 0], sizes = [8, 256], strides = [1, 1]} : vector<16x256xf32> to vector<8x256xf32>
    %726 = vector.broadcast %724 : f32 to vector<8x256xf32>
    %727 = arith.mulf %726, %725 : vector<8x256xf32>
    %728 = arith.addf %723, %727 : vector<8x256xf32>
    %729 = arith.andi %42, %83 : vector<1x256xi1>
    %cst_77 = arith.constant 0.000000e+00 : f32
    %730 = vector.shape_cast %729 : vector<1x256xi1> to vector<1x256xi1>
    %731 = vector.broadcast %730 : vector<1x256xi1> to vector<8x256xi1>
    %732 = vector.broadcast %cst_77 : f32 to vector<8x256xf32>
    %733 = arith.select %731, %728, %732 : vector<8x256xi1>, vector<8x256xf32>
    %734 = arith.addf %718, %733 : vector<8x256xf32>
    %c223_i32 = arith.constant 223 : i32
    %735 = tpu.dynamic_rotate %9 by %c223_i32 dim 1 : vector<16x256xf32>, i32 -> vector<16x256xf32>
    %c39 = arith.constant 39 : index
    %736 = memref.load %arg1[%c39] : memref<98xf32, #tpu.memory_space<smem>>
    %737 = vector.extract_strided_slice %735 {offsets = [0, 0], sizes = [8, 256], strides = [1, 1]} : vector<16x256xf32> to vector<8x256xf32>
    %738 = vector.broadcast %736 : f32 to vector<8x256xf32>
    %739 = arith.mulf %738, %737 : vector<8x256xf32>
    %c88 = arith.constant 88 : index
    %740 = memref.load %arg1[%c88] : memref<98xf32, #tpu.memory_space<smem>>
    %741 = vector.extract_strided_slice %735 {offsets = [8, 0], sizes = [8, 256], strides = [1, 1]} : vector<16x256xf32> to vector<8x256xf32>
    %742 = vector.broadcast %740 : f32 to vector<8x256xf32>
    %743 = arith.mulf %742, %741 : vector<8x256xf32>
    %744 = arith.addf %739, %743 : vector<8x256xf32>
    %745 = arith.andi %42, %92 : vector<1x256xi1>
    %cst_78 = arith.constant 0.000000e+00 : f32
    %746 = vector.shape_cast %745 : vector<1x256xi1> to vector<1x256xi1>
    %747 = vector.broadcast %746 : vector<1x256xi1> to vector<8x256xi1>
    %748 = vector.broadcast %cst_78 : f32 to vector<8x256xf32>
    %749 = arith.select %747, %744, %748 : vector<8x256xi1>, vector<8x256xf32>
    %750 = arith.addf %734, %749 : vector<8x256xf32>
    %c222_i32 = arith.constant 222 : i32
    %751 = tpu.dynamic_rotate %9 by %c222_i32 dim 1 : vector<16x256xf32>, i32 -> vector<16x256xf32>
    %c40 = arith.constant 40 : index
    %752 = memref.load %arg1[%c40] : memref<98xf32, #tpu.memory_space<smem>>
    %753 = vector.extract_strided_slice %751 {offsets = [0, 0], sizes = [8, 256], strides = [1, 1]} : vector<16x256xf32> to vector<8x256xf32>
    %754 = vector.broadcast %752 : f32 to vector<8x256xf32>
    %755 = arith.mulf %754, %753 : vector<8x256xf32>
    %c89 = arith.constant 89 : index
    %756 = memref.load %arg1[%c89] : memref<98xf32, #tpu.memory_space<smem>>
    %757 = vector.extract_strided_slice %751 {offsets = [8, 0], sizes = [8, 256], strides = [1, 1]} : vector<16x256xf32> to vector<8x256xf32>
    %758 = vector.broadcast %756 : f32 to vector<8x256xf32>
    %759 = arith.mulf %758, %757 : vector<8x256xf32>
    %760 = arith.addf %755, %759 : vector<8x256xf32>
    %761 = arith.andi %42, %101 : vector<1x256xi1>
    %cst_79 = arith.constant 0.000000e+00 : f32
    %762 = vector.shape_cast %761 : vector<1x256xi1> to vector<1x256xi1>
    %763 = vector.broadcast %762 : vector<1x256xi1> to vector<8x256xi1>
    %764 = vector.broadcast %cst_79 : f32 to vector<8x256xf32>
    %765 = arith.select %763, %760, %764 : vector<8x256xi1>, vector<8x256xf32>
    %766 = arith.addf %750, %765 : vector<8x256xf32>
    %c221_i32 = arith.constant 221 : i32
    %767 = tpu.dynamic_rotate %9 by %c221_i32 dim 1 : vector<16x256xf32>, i32 -> vector<16x256xf32>
    %c41 = arith.constant 41 : index
    %768 = memref.load %arg1[%c41] : memref<98xf32, #tpu.memory_space<smem>>
    %769 = vector.extract_strided_slice %767 {offsets = [0, 0], sizes = [8, 256], strides = [1, 1]} : vector<16x256xf32> to vector<8x256xf32>
    %770 = vector.broadcast %768 : f32 to vector<8x256xf32>
    %771 = arith.mulf %770, %769 : vector<8x256xf32>
    %c90 = arith.constant 90 : index
    %772 = memref.load %arg1[%c90] : memref<98xf32, #tpu.memory_space<smem>>
    %773 = vector.extract_strided_slice %767 {offsets = [8, 0], sizes = [8, 256], strides = [1, 1]} : vector<16x256xf32> to vector<8x256xf32>
    %774 = vector.broadcast %772 : f32 to vector<8x256xf32>
    %775 = arith.mulf %774, %773 : vector<8x256xf32>
    %776 = arith.addf %771, %775 : vector<8x256xf32>
    %777 = arith.andi %42, %110 : vector<1x256xi1>
    %cst_80 = arith.constant 0.000000e+00 : f32
    %778 = vector.shape_cast %777 : vector<1x256xi1> to vector<1x256xi1>
    %779 = vector.broadcast %778 : vector<1x256xi1> to vector<8x256xi1>
    %780 = vector.broadcast %cst_80 : f32 to vector<8x256xf32>
    %781 = arith.select %779, %776, %780 : vector<8x256xi1>, vector<8x256xf32>
    %782 = arith.addf %766, %781 : vector<8x256xf32>
    %c211_i32 = arith.constant 211 : i32
    %783 = tpu.dynamic_rotate %9 by %c211_i32 dim 1 : vector<16x256xf32>, i32 -> vector<16x256xf32>
    %c42 = arith.constant 42 : index
    %784 = memref.load %arg1[%c42] : memref<98xf32, #tpu.memory_space<smem>>
    %785 = vector.extract_strided_slice %783 {offsets = [0, 0], sizes = [8, 256], strides = [1, 1]} : vector<16x256xf32> to vector<8x256xf32>
    %786 = vector.broadcast %784 : f32 to vector<8x256xf32>
    %787 = arith.mulf %786, %785 : vector<8x256xf32>
    %c91 = arith.constant 91 : index
    %788 = memref.load %arg1[%c91] : memref<98xf32, #tpu.memory_space<smem>>
    %789 = vector.extract_strided_slice %783 {offsets = [8, 0], sizes = [8, 256], strides = [1, 1]} : vector<16x256xf32> to vector<8x256xf32>
    %790 = vector.broadcast %788 : f32 to vector<8x256xf32>
    %791 = arith.mulf %790, %789 : vector<8x256xf32>
    %792 = arith.addf %787, %791 : vector<8x256xf32>
    %793 = arith.andi %47, %56 : vector<1x256xi1>
    %cst_81 = arith.constant 0.000000e+00 : f32
    %794 = vector.shape_cast %793 : vector<1x256xi1> to vector<1x256xi1>
    %795 = vector.broadcast %794 : vector<1x256xi1> to vector<8x256xi1>
    %796 = vector.broadcast %cst_81 : f32 to vector<8x256xf32>
    %797 = arith.select %795, %792, %796 : vector<8x256xi1>, vector<8x256xf32>
    %798 = arith.addf %782, %797 : vector<8x256xf32>
    %c210_i32 = arith.constant 210 : i32
    %799 = tpu.dynamic_rotate %9 by %c210_i32 dim 1 : vector<16x256xf32>, i32 -> vector<16x256xf32>
    %c43 = arith.constant 43 : index
    %800 = memref.load %arg1[%c43] : memref<98xf32, #tpu.memory_space<smem>>
    %801 = vector.extract_strided_slice %799 {offsets = [0, 0], sizes = [8, 256], strides = [1, 1]} : vector<16x256xf32> to vector<8x256xf32>
    %802 = vector.broadcast %800 : f32 to vector<8x256xf32>
    %803 = arith.mulf %802, %801 : vector<8x256xf32>
    %c92 = arith.constant 92 : index
    %804 = memref.load %arg1[%c92] : memref<98xf32, #tpu.memory_space<smem>>
    %805 = vector.extract_strided_slice %799 {offsets = [8, 0], sizes = [8, 256], strides = [1, 1]} : vector<16x256xf32> to vector<8x256xf32>
    %806 = vector.broadcast %804 : f32 to vector<8x256xf32>
    %807 = arith.mulf %806, %805 : vector<8x256xf32>
    %808 = arith.addf %803, %807 : vector<8x256xf32>
    %809 = arith.andi %47, %65 : vector<1x256xi1>
    %cst_82 = arith.constant 0.000000e+00 : f32
    %810 = vector.shape_cast %809 : vector<1x256xi1> to vector<1x256xi1>
    %811 = vector.broadcast %810 : vector<1x256xi1> to vector<8x256xi1>
    %812 = vector.broadcast %cst_82 : f32 to vector<8x256xf32>
    %813 = arith.select %811, %808, %812 : vector<8x256xi1>, vector<8x256xf32>
    %814 = arith.addf %798, %813 : vector<8x256xf32>
    %c209_i32 = arith.constant 209 : i32
    %815 = tpu.dynamic_rotate %9 by %c209_i32 dim 1 : vector<16x256xf32>, i32 -> vector<16x256xf32>
    %c44 = arith.constant 44 : index
    %816 = memref.load %arg1[%c44] : memref<98xf32, #tpu.memory_space<smem>>
    %817 = vector.extract_strided_slice %815 {offsets = [0, 0], sizes = [8, 256], strides = [1, 1]} : vector<16x256xf32> to vector<8x256xf32>
    %818 = vector.broadcast %816 : f32 to vector<8x256xf32>
    %819 = arith.mulf %818, %817 : vector<8x256xf32>
    %c93 = arith.constant 93 : index
    %820 = memref.load %arg1[%c93] : memref<98xf32, #tpu.memory_space<smem>>
    %821 = vector.extract_strided_slice %815 {offsets = [8, 0], sizes = [8, 256], strides = [1, 1]} : vector<16x256xf32> to vector<8x256xf32>
    %822 = vector.broadcast %820 : f32 to vector<8x256xf32>
    %823 = arith.mulf %822, %821 : vector<8x256xf32>
    %824 = arith.addf %819, %823 : vector<8x256xf32>
    %825 = arith.andi %47, %74 : vector<1x256xi1>
    %cst_83 = arith.constant 0.000000e+00 : f32
    %826 = vector.shape_cast %825 : vector<1x256xi1> to vector<1x256xi1>
    %827 = vector.broadcast %826 : vector<1x256xi1> to vector<8x256xi1>
    %828 = vector.broadcast %cst_83 : f32 to vector<8x256xf32>
    %829 = arith.select %827, %824, %828 : vector<8x256xi1>, vector<8x256xf32>
    %830 = arith.addf %814, %829 : vector<8x256xf32>
    %c208_i32_84 = arith.constant 208 : i32
    %831 = tpu.dynamic_rotate %9 by %c208_i32_84 dim 1 : vector<16x256xf32>, i32 -> vector<16x256xf32>
    %c45 = arith.constant 45 : index
    %832 = memref.load %arg1[%c45] : memref<98xf32, #tpu.memory_space<smem>>
    %833 = vector.extract_strided_slice %831 {offsets = [0, 0], sizes = [8, 256], strides = [1, 1]} : vector<16x256xf32> to vector<8x256xf32>
    %834 = vector.broadcast %832 : f32 to vector<8x256xf32>
    %835 = arith.mulf %834, %833 : vector<8x256xf32>
    %c94 = arith.constant 94 : index
    %836 = memref.load %arg1[%c94] : memref<98xf32, #tpu.memory_space<smem>>
    %837 = vector.extract_strided_slice %831 {offsets = [8, 0], sizes = [8, 256], strides = [1, 1]} : vector<16x256xf32> to vector<8x256xf32>
    %838 = vector.broadcast %836 : f32 to vector<8x256xf32>
    %839 = arith.mulf %838, %837 : vector<8x256xf32>
    %840 = arith.addf %835, %839 : vector<8x256xf32>
    %841 = arith.andi %47, %83 : vector<1x256xi1>
    %cst_85 = arith.constant 0.000000e+00 : f32
    %842 = vector.shape_cast %841 : vector<1x256xi1> to vector<1x256xi1>
    %843 = vector.broadcast %842 : vector<1x256xi1> to vector<8x256xi1>
    %844 = vector.broadcast %cst_85 : f32 to vector<8x256xf32>
    %845 = arith.select %843, %840, %844 : vector<8x256xi1>, vector<8x256xf32>
    %846 = arith.addf %830, %845 : vector<8x256xf32>
    %c207_i32 = arith.constant 207 : i32
    %847 = tpu.dynamic_rotate %9 by %c207_i32 dim 1 : vector<16x256xf32>, i32 -> vector<16x256xf32>
    %c46 = arith.constant 46 : index
    %848 = memref.load %arg1[%c46] : memref<98xf32, #tpu.memory_space<smem>>
    %849 = vector.extract_strided_slice %847 {offsets = [0, 0], sizes = [8, 256], strides = [1, 1]} : vector<16x256xf32> to vector<8x256xf32>
    %850 = vector.broadcast %848 : f32 to vector<8x256xf32>
    %851 = arith.mulf %850, %849 : vector<8x256xf32>
    %c95 = arith.constant 95 : index
    %852 = memref.load %arg1[%c95] : memref<98xf32, #tpu.memory_space<smem>>
    %853 = vector.extract_strided_slice %847 {offsets = [8, 0], sizes = [8, 256], strides = [1, 1]} : vector<16x256xf32> to vector<8x256xf32>
    %854 = vector.broadcast %852 : f32 to vector<8x256xf32>
    %855 = arith.mulf %854, %853 : vector<8x256xf32>
    %856 = arith.addf %851, %855 : vector<8x256xf32>
    %857 = arith.andi %47, %92 : vector<1x256xi1>
    %cst_86 = arith.constant 0.000000e+00 : f32
    %858 = vector.shape_cast %857 : vector<1x256xi1> to vector<1x256xi1>
    %859 = vector.broadcast %858 : vector<1x256xi1> to vector<8x256xi1>
    %860 = vector.broadcast %cst_86 : f32 to vector<8x256xf32>
    %861 = arith.select %859, %856, %860 : vector<8x256xi1>, vector<8x256xf32>
    %862 = arith.addf %846, %861 : vector<8x256xf32>
    %c206_i32 = arith.constant 206 : i32
    %863 = tpu.dynamic_rotate %9 by %c206_i32 dim 1 : vector<16x256xf32>, i32 -> vector<16x256xf32>
    %c47 = arith.constant 47 : index
    %864 = memref.load %arg1[%c47] : memref<98xf32, #tpu.memory_space<smem>>
    %865 = vector.extract_strided_slice %863 {offsets = [0, 0], sizes = [8, 256], strides = [1, 1]} : vector<16x256xf32> to vector<8x256xf32>
    %866 = vector.broadcast %864 : f32 to vector<8x256xf32>
    %867 = arith.mulf %866, %865 : vector<8x256xf32>
    %c96 = arith.constant 96 : index
    %868 = memref.load %arg1[%c96] : memref<98xf32, #tpu.memory_space<smem>>
    %869 = vector.extract_strided_slice %863 {offsets = [8, 0], sizes = [8, 256], strides = [1, 1]} : vector<16x256xf32> to vector<8x256xf32>
    %870 = vector.broadcast %868 : f32 to vector<8x256xf32>
    %871 = arith.mulf %870, %869 : vector<8x256xf32>
    %872 = arith.addf %867, %871 : vector<8x256xf32>
    %873 = arith.andi %47, %101 : vector<1x256xi1>
    %cst_87 = arith.constant 0.000000e+00 : f32
    %874 = vector.shape_cast %873 : vector<1x256xi1> to vector<1x256xi1>
    %875 = vector.broadcast %874 : vector<1x256xi1> to vector<8x256xi1>
    %876 = vector.broadcast %cst_87 : f32 to vector<8x256xf32>
    %877 = arith.select %875, %872, %876 : vector<8x256xi1>, vector<8x256xf32>
    %878 = arith.addf %862, %877 : vector<8x256xf32>
    %c205_i32 = arith.constant 205 : i32
    %879 = tpu.dynamic_rotate %9 by %c205_i32 dim 1 : vector<16x256xf32>, i32 -> vector<16x256xf32>
    %c48 = arith.constant 48 : index
    %880 = memref.load %arg1[%c48] : memref<98xf32, #tpu.memory_space<smem>>
    %881 = vector.extract_strided_slice %879 {offsets = [0, 0], sizes = [8, 256], strides = [1, 1]} : vector<16x256xf32> to vector<8x256xf32>
    %882 = vector.broadcast %880 : f32 to vector<8x256xf32>
    %883 = arith.mulf %882, %881 : vector<8x256xf32>
    %c97 = arith.constant 97 : index
    %884 = memref.load %arg1[%c97] : memref<98xf32, #tpu.memory_space<smem>>
    %885 = vector.extract_strided_slice %879 {offsets = [8, 0], sizes = [8, 256], strides = [1, 1]} : vector<16x256xf32> to vector<8x256xf32>
    %886 = vector.broadcast %884 : f32 to vector<8x256xf32>
    %887 = arith.mulf %886, %885 : vector<8x256xf32>
    %888 = arith.addf %883, %887 : vector<8x256xf32>
    %889 = arith.andi %47, %110 : vector<1x256xi1>
    %cst_88 = arith.constant 0.000000e+00 : f32
    %890 = vector.shape_cast %889 : vector<1x256xi1> to vector<1x256xi1>
    %891 = vector.broadcast %890 : vector<1x256xi1> to vector<8x256xi1>
    %892 = vector.broadcast %cst_88 : f32 to vector<8x256xf32>
    %893 = arith.select %891, %888, %892 : vector<8x256xi1>, vector<8x256xf32>
    %894 = arith.addf %878, %893 : vector<8x256xf32>
    %895 = arith.negf %894 : vector<8x256xf32>
    %896 = math.exp %895 : vector<8x256xf32>
    %cst_89 = arith.constant 1.000000e+00 : f32
    %897 = vector.broadcast %cst_89 : f32 to vector<8x256xf32>
    %898 = arith.addf %897, %896 : vector<8x256xf32>
    %899 = arith.divf %897, %898 : vector<8x256xf32>
    %900 = vector.shape_cast %899 : vector<8x256xf32> to vector<8x1x256xf32>
    %c0_90 = arith.constant 0 : index
    %c0_91 = arith.constant 0 : index
    %c0_92 = arith.constant 0 : index
    %901 = vector.load %arg2[%c0_90, %c0_91, %c0_92] : memref<8x4x256xf32, #tpu.memory_space<vmem>>, vector<8x4x256xf32>
    %902 = vector.broadcast %900 : vector<8x1x256xf32> to vector<8x4x256xf32>
    %903 = arith.mulf %901, %902 : vector<8x4x256xf32>
    %c0_93 = arith.constant 0 : index
    %c0_94 = arith.constant 0 : index
    %c0_95 = arith.constant 0 : index
    %904 = vector.load %arg3[%c0_93, %c0_94, %c0_95] : memref<8x4x256xf32, #tpu.memory_space<vmem>>, vector<8x4x256xf32>
    tpu.vector_store %arg3[%c0_93, %c0_94, %c0_95], %903 {strides = array<i32>} : memref<8x4x256xf32, #tpu.memory_space<vmem>>, vector<8x4x256xf32>,
    return
  }
  func.func @transform_0(%arg0: i32) -> i32 {
    %c0_i32 = arith.constant 0 : i32
    %c0_i32_0 = arith.constant 0 : i32
    return %c0_i32 : i32
  }
  func.func @transform_1(%arg0: i32) -> (i32, i32, i32) {
    %c0_i32 = arith.constant 0 : i32
    %c0_i32_0 = arith.constant 0 : i32
    %c0_i32_1 = arith.constant 0 : i32
    return %arg0, %c0_i32, %c0_i32_0 : i32, i32, i32
  }
  func.func @transform_2(%arg0: i32) -> (i32, i32, i32) {
    %c0_i32 = arith.constant 0 : i32
    %c0_i32_0 = arith.constant 0 : i32
    %c0_i32_1 = arith.constant 0 : i32
    return %arg0, %c0_i32, %c0_i32_0 : i32, i32, i32
  }
}

</mosaic_0001>

<llo_original>
// kernel: tpu_custom_call.1
$region0: #{tpu_custom_call.1}
  #allocation0 [shape = 'u32[]', space=smem, size = 0x4, offset = 0x4, fixed_abs, tag = 'smem constant byte address 0x4 - core index']
  #allocation1 [shape = 'u32[144,128]{1,0:T(1,128)}', space=vmem, size = 0x12000, scoped, tag = 'internal scratch']
  %s0 = inlined_call_operand.hbm [shape: f32[98], index: 0, kind: input, shape index: {}]
  %s1 = inlined_call_operand.hbm [shape: f32[8,4,256], index: 1, kind: input, shape index: {}]
  %s2 = inlined_call_operand.hbm [shape: f32[8,4,256], index: 2, kind: output, shape index: {}]
  %s3 = sld [smem:[#allocation0]]
  $region26: #{tpu_custom_call.1} parent=0
    _
  %s5 = ssub.s32 1, %s3
  %s6 = scalar_select 0, %s5, %s3
  $region1: #{tpu_custom_call.1} parent=0
    #allocation2 [shape = 'u8[512]{0}', space=smem, size = 0x200, scoped, tag = 'input window, operand 0, single buffered']
    #allocation3 [shape = 's32[1]{0}', space=sflag, size = 0x4, scoped, tag = 'scoped memory for tpu_custom_call.1']
    #allocation4 [shape = 's32[1]{0}', space=sflag, size = 0x4, scoped, tag = 'scoped memory for tpu_custom_call.1']
    #allocation5 [shape = 's32[1]{0}', space=sflag, size = 0x4, scoped, tag = 'scoped memory for tpu_custom_call.1']
    #allocation6 [shape = 'u8[32768]{0}', space=vmem, size = 0x8000, scoped, tag = 'input window, operand 1, single buffered']
    #allocation7 [shape = 'u8[32768]{0}', space=vmem, size = 0x8000, scoped, tag = 'output window, operand 0, single buffered']
    %7 = vsyncpa [#allocation5], 0
    %8 = vsyncpa [#allocation3], 0
    %9 = vsyncpa [#allocation4], 0
    // Predicated region
    $region2: #{tpu_custom_call.1} parent=1 // pred_check
      _
    $region3: #{tpu_custom_call.1} parent=1 // pred_check_branch
      %11 = sbr.rel (0) target = $region5
    $region4: #{tpu_custom_call.1} parent=1 // pred_region
      %s13 = ssub.s32 16, 16
      %14 = vsyncadd [#allocation5], %s13
      %17 = dma.hbm_to_smem %s0, 16, [#allocation2], [#allocation5]
    $region5: #{tpu_custom_call.1} parent=1 // pred_fallthru
      _
    // Predicated region
    $region6: #{tpu_custom_call.1} parent=1 // pred_check
      _
    $region7: #{tpu_custom_call.1} parent=1 // pred_check_branch
      %19 = sbr.rel (0) target = $region9
    $region8: #{tpu_custom_call.1} parent=1 // pred_region
      %s21 = ssub.s32 1024, 1024
      %22 = vsyncadd [#allocation3], %s21
      %s23 = sshll.u32 [#allocation6], 4
      %s24 = int_to_ptr.vmem [resolvable:$true] %s23
      %29 = dma.hbm_to_vmem [thread:$0]  %s1, 1024, %s24, [#allocation3], 128, 128, 8
    $region9: #{tpu_custom_call.1} parent=1 // pred_fallthru
      _
    // Predicated region
    $region10: #{tpu_custom_call.1} parent=1 // pred_check
      _
    $region11: #{tpu_custom_call.1} parent=1 // pred_check_branch
      %31 = sbr.rel (0) target = $region13
    $region12: #{tpu_custom_call.1} parent=1 // pred_region
      %32 = dma.done [#allocation5], 16
    $region13: #{tpu_custom_call.1} parent=1 // pred_fallthru
      _
    // Predicated region
    $region14: #{tpu_custom_call.1} parent=1 // pred_check
      _
    $region15: #{tpu_custom_call.1} parent=1 // pred_check_branch
      %34 = sbr.rel (0) target = $region17
    $region16: #{tpu_custom_call.1} parent=1 // pred_region
      %35 = dma.done [#allocation3], 1024
    $region17: #{tpu_custom_call.1} parent=1 // pred_fallthru
      _
    %36 = sfence
    %v37 = vld [vmem:[#allocation6] sm:$0xff]
    %v38 = vld [vmem:[#allocation6 + $0x8] sm:$0xff]
    %v39 = vld [vmem:[#allocation6 + $0x10] sm:$0xff]
    %v40 = vld [vmem:[#allocation6 + $0x18] sm:$0xff]
    %v41 = vld [vmem:[#allocation6 + $0x20] sm:$0xff]
    %v42 = vld [vmem:[#allocation6 + $0x28] sm:$0xff]
    %v43 = vld [vmem:[#allocation6 + $0x30] sm:$0xff]
    %v44 = vld [vmem:[#allocation6 + $0x38] sm:$0xff]
    %v53 = vcombine.high %v37, %v37
    %v54 = vcombine.high %v38, %v38
    %v55 = vcombine.high %v39, %v39
    %v56 = vcombine.high %v40, %v40
    %v57 = vcombine.high %v41, %v41
    %v58 = vcombine.high %v42, %v42
    %v59 = vcombine.high %v43, %v43
    %v60 = vcombine.high %v44, %v44
    %vm69 = vcmask 1043456
    %v70 = vsel %vm69, %v37, 0.0
    %v71 = vrot.slane %v70, 4
    %v72 = vadd.f32 %v70, %v71
    %v73 = vrot.slane %v72, 2
    %v74 = vadd.f32 %v72, %v73
    %v75 = vrot.slane %v74, 1
    %v76 = vadd.f32 %v74, %v75
    %v77 = vsel %vm69, %v53, 0.0
    %v78 = vrot.slane %v77, 4
    %v79 = vadd.f32 %v77, %v78
    %v80 = vrot.slane %v79, 2
    %v81 = vadd.f32 %v79, %v80
    %v82 = vrot.slane %v81, 1
    %v83 = vadd.f32 %v81, %v82
    %v84 = vsel %vm69, %v38, 0.0
    %v85 = vrot.slane %v84, 4
    %v86 = vadd.f32 %v84, %v85
    %v87 = vrot.slane %v86, 2
    %v88 = vadd.f32 %v86, %v87
    %v89 = vrot.slane %v88, 1
    %v90 = vadd.f32 %v88, %v89
    %v91 = vsel %vm69, %v54, 0.0
    %v92 = vrot.slane %v91, 4
    %v93 = vadd.f32 %v91, %v92
    %v94 = vrot.slane %v93, 2
    %v95 = vadd.f32 %v93, %v94
    %v96 = vrot.slane %v95, 1
    %v97 = vadd.f32 %v95, %v96
    %v98 = vsel %vm69, %v39, 0.0
    %v99 = vrot.slane %v98, 4
    %v100 = vadd.f32 %v98, %v99
    %v101 = vrot.slane %v100, 2
    %v102 = vadd.f32 %v100, %v101
    %v103 = vrot.slane %v102, 1
    %v104 = vadd.f32 %v102, %v103
    %v105 = vsel %vm69, %v55, 0.0
    %v106 = vrot.slane %v105, 4
    %v107 = vadd.f32 %v105, %v106
    %v108 = vrot.slane %v107, 2
    %v109 = vadd.f32 %v107, %v108
    %v110 = vrot.slane %v109, 1
    %v111 = vadd.f32 %v109, %v110
    %v112 = vsel %vm69, %v40, 0.0
    %v113 = vrot.slane %v112, 4
    %v114 = vadd.f32 %v112, %v113
    %v115 = vrot.slane %v114, 2
    %v116 = vadd.f32 %v114, %v115
    %v117 = vrot.slane %v116, 1
    %v118 = vadd.f32 %v116, %v117
    %v119 = vsel %vm69, %v56, 0.0
    %v120 = vrot.slane %v119, 4
    %v121 = vadd.f32 %v119, %v120
    %v122 = vrot.slane %v121, 2
    %v123 = vadd.f32 %v121, %v122
    %v124 = vrot.slane %v123, 1
    %v125 = vadd.f32 %v123, %v124
    %v126 = vsel %vm69, %v41, 0.0
    %v127 = vrot.slane %v126, 4
    %v128 = vadd.f32 %v126, %v127
    %v129 = vrot.slane %v128, 2
    %v130 = vadd.f32 %v128, %v129
    %v131 = vrot.slane %v130, 1
    %v132 = vadd.f32 %v130, %v131
    %v133 = vsel %vm69, %v57, 0.0
    %v134 = vrot.slane %v133, 4
    %v135 = vadd.f32 %v133, %v134
    %v136 = vrot.slane %v135, 2
    %v137 = vadd.f32 %v135, %v136
    %v138 = vrot.slane %v137, 1
    %v139 = vadd.f32 %v137, %v138
    %v140 = vsel %vm69, %v42, 0.0
    %v141 = vrot.slane %v140, 4
    %v142 = vadd.f32 %v140, %v141
    %v143 = vrot.slane %v142, 2
    %v144 = vadd.f32 %v142, %v143
    %v145 = vrot.slane %v144, 1
    %v146 = vadd.f32 %v144, %v145
    %v147 = vsel %vm69, %v58, 0.0
    %v148 = vrot.slane %v147, 4
    %v149 = vadd.f32 %v147, %v148
    %v150 = vrot.slane %v149, 2
    %v151 = vadd.f32 %v149, %v150
    %v152 = vrot.slane %v151, 1
    %v153 = vadd.f32 %v151, %v152
    %v154 = vsel %vm69, %v43, 0.0
    %v155 = vrot.slane %v154, 4
    %v156 = vadd.f32 %v154, %v155
    %v157 = vrot.slane %v156, 2
    %v158 = vadd.f32 %v156, %v157
    %v159 = vrot.slane %v158, 1
    %v160 = vadd.f32 %v158, %v159
    %v161 = vsel %vm69, %v59, 0.0
    %v162 = vrot.slane %v161, 4
    %v163 = vadd.f32 %v161, %v162
    %v164 = vrot.slane %v163, 2
    %v165 = vadd.f32 %v163, %v164
    %v166 = vrot.slane %v165, 1
    %v167 = vadd.f32 %v165, %v166
    %v168 = vsel %vm69, %v44, 0.0
    %v169 = vrot.slane %v168, 4
    %v170 = vadd.f32 %v168, %v169
    %v171 = vrot.slane %v170, 2
    %v172 = vadd.f32 %v170, %v171
    %v173 = vrot.slane %v172, 1
    %v174 = vadd.f32 %v172, %v173
    %v175 = vsel %vm69, %v60, 0.0
    %v176 = vrot.slane %v175, 4
    %v177 = vadd.f32 %v175, %v176
    %v178 = vrot.slane %v177, 2
    %v179 = vadd.f32 %v177, %v178
    %v180 = vrot.slane %v179, 1
    %v181 = vadd.f32 %v179, %v180
    %v182 = vadd.f32 %v76, 0.0
    %v183 = vadd.f32 %v83, 0.0
    %v184 = vadd.f32 %v90, 0.0
    %v185 = vadd.f32 %v97, 0.0
    %v186 = vadd.f32 %v104, 0.0
    %v187 = vadd.f32 %v111, 0.0
    %v188 = vadd.f32 %v118, 0.0
    %v189 = vadd.f32 %v125, 0.0
    %v190 = vadd.f32 %v132, 0.0
    %v191 = vadd.f32 %v139, 0.0
    %v192 = vadd.f32 %v146, 0.0
    %v193 = vadd.f32 %v153, 0.0
    %v194 = vadd.f32 %v160, 0.0
    %v195 = vadd.f32 %v167, 0.0
    %v196 = vadd.f32 %v174, 0.0
    %v197 = vadd.f32 %v181, 0.0
    %v198 = vsel %vm69, %v37, -inf
    %v199 = vrot.slane %v198, 4
    %v200 = vmax.f32 %v198, %v199
    %v201 = vrot.slane %v200, 2
    %v202 = vmax.f32 %v200, %v201
    %v203 = vrot.slane %v202, 1
    %v204 = vmax.f32 %v202, %v203
    %v205 = vsel %vm69, %v53, -inf
    %v206 = vrot.slane %v205, 4
    %v207 = vmax.f32 %v205, %v206
    %v208 = vrot.slane %v207, 2
    %v209 = vmax.f32 %v207, %v208
    %v210 = vrot.slane %v209, 1
    %v211 = vmax.f32 %v209, %v210
    %v212 = vsel %vm69, %v38, -inf
    %v213 = vrot.slane %v212, 4
    %v214 = vmax.f32 %v212, %v213
    %v215 = vrot.slane %v214, 2
    %v216 = vmax.f32 %v214, %v215
    %v217 = vrot.slane %v216, 1
    %v218 = vmax.f32 %v216, %v217
    %v219 = vsel %vm69, %v54, -inf
    %v220 = vrot.slane %v219, 4
    %v221 = vmax.f32 %v219, %v220
    %v222 = vrot.slane %v221, 2
    %v223 = vmax.f32 %v221, %v222
    %v224 = vrot.slane %v223, 1
    %v225 = vmax.f32 %v223, %v224
    %v226 = vsel %vm69, %v39, -inf
    %v227 = vrot.slane %v226, 4
    %v228 = vmax.f32 %v226, %v227
    %v229 = vrot.slane %v228, 2
    %v230 = vmax.f32 %v228, %v229
    %v231 = vrot.slane %v230, 1
    %v232 = vmax.f32 %v230, %v231
    %v233 = vsel %vm69, %v55, -inf
    %v234 = vrot.slane %v233, 4
    %v235 = vmax.f32 %v233, %v234
    %v236 = vrot.slane %v235, 2
    %v237 = vmax.f32 %v235, %v236
    %v238 = vrot.slane %v237, 1
    %v239 = vmax.f32 %v237, %v238
    %v240 = vsel %vm69, %v40, -inf
    %v241 = vrot.slane %v240, 4
    %v242 = vmax.f32 %v240, %v241
    %v243 = vrot.slane %v242, 2
    %v244 = vmax.f32 %v242, %v243
    %v245 = vrot.slane %v244, 1
    %v246 = vmax.f32 %v244, %v245
    %v247 = vsel %vm69, %v56, -inf
    %v248 = vrot.slane %v247, 4
    %v249 = vmax.f32 %v247, %v248
    %v250 = vrot.slane %v249, 2
    %v251 = vmax.f32 %v249, %v250
    %v252 = vrot.slane %v251, 1
    %v253 = vmax.f32 %v251, %v252
    %v254 = vsel %vm69, %v41, -inf
    %v255 = vrot.slane %v254, 4
    %v256 = vmax.f32 %v254, %v255
    %v257 = vrot.slane %v256, 2
    %v258 = vmax.f32 %v256, %v257
    %v259 = vrot.slane %v258, 1
    %v260 = vmax.f32 %v258, %v259
    %v261 = vsel %vm69, %v57, -inf
    %v262 = vrot.slane %v261, 4
    %v263 = vmax.f32 %v261, %v262
    %v264 = vrot.slane %v263, 2
    %v265 = vmax.f32 %v263, %v264
    %v266 = vrot.slane %v265, 1
    %v267 = vmax.f32 %v265, %v266
    %v268 = vsel %vm69, %v42, -inf
    %v269 = vrot.slane %v268, 4
    %v270 = vmax.f32 %v268, %v269
    %v271 = vrot.slane %v270, 2
    %v272 = vmax.f32 %v270, %v271
    %v273 = vrot.slane %v272, 1
    %v274 = vmax.f32 %v272, %v273
    %v275 = vsel %vm69, %v58, -inf
    %v276 = vrot.slane %v275, 4
    %v277 = vmax.f32 %v275, %v276
    %v278 = vrot.slane %v277, 2
    %v279 = vmax.f32 %v277, %v278
    %v280 = vrot.slane %v279, 1
    %v281 = vmax.f32 %v279, %v280
    %v282 = vsel %vm69, %v43, -inf
    %v283 = vrot.slane %v282, 4
    %v284 = vmax.f32 %v282, %v283
    %v285 = vrot.slane %v284, 2
    %v286 = vmax.f32 %v284, %v285
    %v287 = vrot.slane %v286, 1
    %v288 = vmax.f32 %v286, %v287
    %v289 = vsel %vm69, %v59, -inf
    %v290 = vrot.slane %v289, 4
    %v291 = vmax.f32 %v289, %v290
    %v292 = vrot.slane %v291, 2
    %v293 = vmax.f32 %v291, %v292
    %v294 = vrot.slane %v293, 1
    %v295 = vmax.f32 %v293, %v294
    %v296 = vsel %vm69, %v44, -inf
    %v297 = vrot.slane %v296, 4
    %v298 = vmax.f32 %v296, %v297
    %v299 = vrot.slane %v298, 2
    %v300 = vmax.f32 %v298, %v299
    %v301 = vrot.slane %v300, 1
    %v302 = vmax.f32 %v300, %v301
    %v303 = vsel %vm69, %v60, -inf
    %v304 = vrot.slane %v303, 4
    %v305 = vmax.f32 %v303, %v304
    %v306 = vrot.slane %v305, 2
    %v307 = vmax.f32 %v305, %v306
    %v308 = vrot.slane %v307, 1
    %v309 = vmax.f32 %v307, %v308
    %v310 = vmul.f32 %v182, 0.25
    %v311 = vmul.f32 %v183, 0.25
    %v312 = vmul.f32 %v184, 0.25
    %v313 = vmul.f32 %v185, 0.25
    %v314 = vmul.f32 %v186, 0.25
    %v315 = vmul.f32 %v187, 0.25
    %v316 = vmul.f32 %v188, 0.25
    %v317 = vmul.f32 %v189, 0.25
    %v318 = vmul.f32 %v190, 0.25
    %v319 = vmul.f32 %v191, 0.25
    %v320 = vmul.f32 %v192, 0.25
    %v321 = vmul.f32 %v193, 0.25
    %v322 = vmul.f32 %v194, 0.25
    %v323 = vmul.f32 %v195, 0.25
    %v324 = vmul.f32 %v196, 0.25
    %v325 = vmul.f32 %v197, 0.25
    %vm342 = vcmask 1041409
    %v343 = vsel %vm342, %v312, %v310
    %vm344 = vcmask 1042434
    %v345 = vsel %vm344, %v314, %v343
    %vm346 = vcmask 1043459
    %v347 = vsel %vm346, %v316, %v345
    %vm348 = vcmask 1044484
    %v349 = vsel %vm348, %v318, %v347
    %vm350 = vcmask 1045509
    %v351 = vsel %vm350, %v320, %v349
    %vm352 = vcmask 1046534
    %v353 = vsel %vm352, %v322, %v351
    %vm354 = vcmask 1047559
    %v355 = vsel %vm354, %v324, %v353
    %v356 = vsel %vm342, %v313, %v311
    %v357 = vsel %vm344, %v315, %v356
    %v358 = vsel %vm346, %v317, %v357
    %v359 = vsel %vm348, %v319, %v358
    %v360 = vsel %vm350, %v321, %v359
    %v361 = vsel %vm352, %v323, %v360
    %v362 = vsel %vm354, %v325, %v361
    %v381 = vsel %vm342, %v218, %v204
    %v382 = vsel %vm344, %v232, %v381
    %v383 = vsel %vm346, %v246, %v382
    %v384 = vsel %vm348, %v260, %v383
    %v385 = vsel %vm350, %v274, %v384
    %v386 = vsel %vm352, %v288, %v385
    %v387 = vsel %vm354, %v302, %v386
    %v388 = vsel %vm342, %v225, %v211
    %v389 = vsel %vm344, %v239, %v388
    %v390 = vsel %vm346, %v253, %v389
    %v391 = vsel %vm348, %v267, %v390
    %v392 = vsel %vm350, %v281, %v391
    %v393 = vsel %vm352, %v295, %v392
    %v394 = vsel %vm354, %v309, %v393
    %v397 = vlaneseq
    %v398 = vand.u32 %v397, 127
    %v399 = vadd.s32 %v398, 128
    %v400 = vand.u32 %v398, 15
    %v401 = vand.u32 %v399, 15
    %vm402 = vcmp.ge.s32.totalorder %v398, 48
    %vm403 = vcmp.ge.s32.totalorder %v399, 48
    %vm404 = vcmp.lt.s32.totalorder %v398, 304
    %vm405 = vcmp.lt.s32.totalorder %v399, 304
    %vm406 = vmand %vm402, %vm404
    %vm407 = vmand %vm403, %vm405
    %vm408 = vcmp.ge.s32.totalorder %v398, 32
    %vm409 = vcmp.ge.s32.totalorder %v399, 32
    %vm410 = vcmp.lt.s32.totalorder %v398, 288
    %vm411 = vcmp.lt.s32.totalorder %v399, 288
    %vm412 = vmand %vm408, %vm410
    %vm413 = vmand %vm409, %vm411
    %vm414 = vcmp.ge.s32.totalorder %v398, 16
    %vm415 = vcmp.ge.s32.totalorder %v399, 16
    %vm416 = vcmp.lt.s32.totalorder %v398, 272
    %vm417 = vcmp.lt.s32.totalorder %v399, 272
    %vm418 = vmand %vm414, %vm416
    %vm419 = vmand %vm415, %vm417
    %vm420 = vcmp.ge.s32.totalorder %v398, 0
    %vm421 = vcmp.ge.s32.totalorder %v399, 0
    %vm422 = vcmp.lt.s32.totalorder %v398, 256
    %vm423 = vcmp.lt.s32.totalorder %v399, 256
    %vm424 = vmand %vm420, %vm422
    %vm425 = vmand %vm421, %vm423
    %vm426 = vcmp.ge.s32.totalorder %v398, 4294967280
    %vm427 = vcmp.ge.s32.totalorder %v399, 4294967280
    %vm428 = vcmp.lt.s32.totalorder %v398, 240
    %vm429 = vcmp.lt.s32.totalorder %v399, 240
    %vm430 = vmand %vm426, %vm428
    %vm431 = vmand %vm427, %vm429
    %vm432 = vcmp.ge.s32.totalorder %v398, 4294967264
    %vm433 = vcmp.ge.s32.totalorder %v399, 4294967264
    %vm434 = vcmp.lt.s32.totalorder %v398, 224
    %vm435 = vcmp.lt.s32.totalorder %v399, 224
    %vm436 = vmand %vm432, %vm434
    %vm437 = vmand %vm433, %vm435
    %vm438 = vcmp.ge.s32.totalorder %v398, 4294967248
    %vm439 = vcmp.ge.s32.totalorder %v399, 4294967248
    %vm440 = vcmp.lt.s32.totalorder %v398, 208
    %vm441 = vcmp.lt.s32.totalorder %v399, 208
    %vm442 = vmand %vm438, %vm440
    %vm443 = vmand %vm439, %vm441
    %v444 = vadd.s32 %v400, 4294967293
    %v445 = vadd.s32 %v401, 4294967293
    %vm446 = vcmp.ge.s32.totalorder %v444, 0
    %vm447 = vcmp.ge.s32.totalorder %v445, 0
    %vm448 = vcmp.lt.s32.totalorder %v444, 16
    %vm449 = vcmp.lt.s32.totalorder %v445, 16
    %vm450 = vmand %vm446, %vm448
    %vm451 = vmand %vm447, %vm449
    %v452 = vadd.s32 %v400, 4294967294
    %v453 = vadd.s32 %v401, 4294967294
    %vm454 = vcmp.ge.s32.totalorder %v452, 0
    %vm455 = vcmp.ge.s32.totalorder %v453, 0
    %vm456 = vcmp.lt.s32.totalorder %v452, 16
    %vm457 = vcmp.lt.s32.totalorder %v453, 16
    %vm458 = vmand %vm454, %vm456
    %vm459 = vmand %vm455, %vm457
    %v460 = vadd.s32 %v400, 4294967295
    %v461 = vadd.s32 %v401, 4294967295
    %vm462 = vcmp.ge.s32.totalorder %v460, 0
    %vm463 = vcmp.ge.s32.totalorder %v461, 0
    %vm464 = vcmp.lt.s32.totalorder %v460, 16
    %vm465 = vcmp.lt.s32.totalorder %v461, 16
    %vm466 = vmand %vm462, %vm464
    %vm467 = vmand %vm463, %vm465
    %vm468 = vcmp.ge.s32.totalorder %v400, 0
    %vm469 = vcmp.ge.s32.totalorder %v401, 0
    %vm470 = vcmp.lt.s32.totalorder %v400, 16
    %vm471 = vcmp.lt.s32.totalorder %v401, 16
    %vm472 = vmand %vm468, %vm470
    %vm473 = vmand %vm469, %vm471
    %v474 = vadd.s32 %v400, 1
    %v475 = vadd.s32 %v401, 1
    %vm476 = vcmp.ge.s32.totalorder %v474, 0
    %vm477 = vcmp.ge.s32.totalorder %v475, 0
    %vm478 = vcmp.lt.s32.totalorder %v474, 16
    %vm479 = vcmp.lt.s32.totalorder %v475, 16
    %vm480 = vmand %vm476, %vm478
    %vm481 = vmand %vm477, %vm479
    %v482 = vadd.s32 %v400, 2
    %v483 = vadd.s32 %v401, 2
    %vm484 = vcmp.ge.s32.totalorder %v482, 0
    %vm485 = vcmp.ge.s32.totalorder %v483, 0
    %vm486 = vcmp.lt.s32.totalorder %v482, 16
    %vm487 = vcmp.lt.s32.totalorder %v483, 16
    %vm488 = vmand %vm484, %vm486
    %vm489 = vmand %vm485, %vm487
    %v490 = vadd.s32 %v400, 3
    %v491 = vadd.s32 %v401, 3
    %vm492 = vcmp.ge.s32.totalorder %v490, 0
    %vm493 = vcmp.ge.s32.totalorder %v491, 0
    %vm494 = vcmp.lt.s32.totalorder %v490, 16
    %vm495 = vcmp.lt.s32.totalorder %v491, 16
    %vm496 = vmand %vm492, %vm494
    %vm497 = vmand %vm493, %vm495
    %498 = vrot.lane.b32.xlu0 %v355, 51
    %v499 = vpop.permute.xlu0 %498
    %500 = vrot.lane.b32.xlu0 %v387, 51
    %v501 = vpop.permute.xlu0 %500
    %502 = vrot.lane.b32.xlu0 %v362, 51
    %v503 = vpop.permute.xlu0 %502
    %504 = vrot.lane.b32.xlu0 %v394, 51
    %v505 = vpop.permute.xlu0 %504
    %vm506 = vcmp.lt.s32.totalorder %v398, 51
    %v507 = vsel %vm506, %v499, %v503
    %v508 = vsel %vm506, %v501, %v505
    %v509 = vsel %vm506, %v503, %v499
    %v510 = vsel %vm506, %v505, %v501
    %s511 = sld [smem:[#allocation2]]
    %v512 = vstv %s511
    %v513 = vmul.f32 %v512, %v509
    %v514 = vmul.f32 %v512, %v507
    %s515 = sld [smem:[#allocation2 + $0x31]]
    %v516 = vstv %s515
    %v517 = vmul.f32 %v516, %v510
    %v518 = vmul.f32 %v516, %v508
    %v519 = vadd.f32 %v513, %v517
    %v520 = vadd.f32 %v514, %v518
    %vm521 = vmand %vm406, %vm450
    %vm522 = vmand %vm407, %vm451
    %v523 = vsel %vm521, 1, 0
    %v524 = vsel %vm522, 1, 0
    %vm525 = vcmp.eq.s32.totalorder %v523, 1
    %vm526 = vcmp.eq.s32.totalorder %v524, 1
    %v527 = vsel %vm525, %v519, 0.0
    %v528 = vsel %vm526, %v520, 0.0
    %v529 = vadd.f32 %v527, 0.0
    %v530 = vadd.f32 %v528, 0.0
    %531 = vrot.lane.b32.xlu0 %v355, 50
    %v532 = vpop.permute.xlu0 %531
    %533 = vrot.lane.b32.xlu0 %v387, 50
    %v534 = vpop.permute.xlu0 %533
    %535 = vrot.lane.b32.xlu0 %v362, 50
    %v536 = vpop.permute.xlu0 %535
    %537 = vrot.lane.b32.xlu0 %v394, 50
    %v538 = vpop.permute.xlu0 %537
    %vm539 = vcmp.lt.s32.totalorder %v398, 50
    %v540 = vsel %vm539, %v532, %v536
    %v541 = vsel %vm539, %v534, %v538
    %v542 = vsel %vm539, %v536, %v532
    %v543 = vsel %vm539, %v538, %v534
    %s544 = sld [smem:[#allocation2 + $0x1]]
    %v545 = vstv %s544
    %v546 = vmul.f32 %v545, %v542
    %v547 = vmul.f32 %v545, %v540
    %s548 = sld [smem:[#allocation2 + $0x32]]
    %v549 = vstv %s548
    %v550 = vmul.f32 %v549, %v543
    %v551 = vmul.f32 %v549, %v541
    %v552 = vadd.f32 %v546, %v550
    %v553 = vadd.f32 %v547, %v551
    %vm554 = vmand %vm406, %vm458
    %vm555 = vmand %vm407, %vm459
    %v556 = vsel %vm554, 1, 0
    %v557 = vsel %vm555, 1, 0
    %vm558 = vcmp.eq.s32.totalorder %v556, 1
    %vm559 = vcmp.eq.s32.totalorder %v557, 1
    %v560 = vsel %vm558, %v552, 0.0
    %v561 = vsel %vm559, %v553, 0.0
    %v562 = vadd.f32 %v529, %v560
    %v563 = vadd.f32 %v530, %v561
    %564 = vrot.lane.b32.xlu0 %v355, 49
    %v565 = vpop.permute.xlu0 %564
    %566 = vrot.lane.b32.xlu0 %v387, 49
    %v567 = vpop.permute.xlu0 %566
    %568 = vrot.lane.b32.xlu0 %v362, 49
    %v569 = vpop.permute.xlu0 %568
    %570 = vrot.lane.b32.xlu0 %v394, 49
    %v571 = vpop.permute.xlu0 %570
    %vm572 = vcmp.lt.s32.totalorder %v398, 49
    %v573 = vsel %vm572, %v565, %v569
    %v574 = vsel %vm572, %v567, %v571
    %v575 = vsel %vm572, %v569, %v565
    %v576 = vsel %vm572, %v571, %v567
    %s577 = sld [smem:[#allocation2 + $0x2]]
    %v578 = vstv %s577
    %v579 = vmul.f32 %v578, %v575
    %v580 = vmul.f32 %v578, %v573
    %s581 = sld [smem:[#allocation2 + $0x33]]
    %v582 = vstv %s581
    %v583 = vmul.f32 %v582, %v576
    %v584 = vmul.f32 %v582, %v574
    %v585 = vadd.f32 %v579, %v583
    %v586 = vadd.f32 %v580, %v584
    %vm587 = vmand %vm406, %vm466
    %vm588 = vmand %vm407, %vm467
    %v589 = vsel %vm587, 1, 0
    %v590 = vsel %vm588, 1, 0
    %vm591 = vcmp.eq.s32.totalorder %v589, 1
    %vm592 = vcmp.eq.s32.totalorder %v590, 1
    %v593 = vsel %vm591, %v585, 0.0
    %v594 = vsel %vm592, %v586, 0.0
    %v595 = vadd.f32 %v562, %v593
    %v596 = vadd.f32 %v563, %v594
    %597 = vrot.lane.b32.xlu0 %v355, 48
    %v598 = vpop.permute.xlu0 %597
    %599 = vrot.lane.b32.xlu0 %v387, 48
    %v600 = vpop.permute.xlu0 %599
    %601 = vrot.lane.b32.xlu0 %v362, 48
    %v602 = vpop.permute.xlu0 %601
    %603 = vrot.lane.b32.xlu0 %v394, 48
    %v604 = vpop.permute.xlu0 %603
    %vm605 = vcmp.lt.s32.totalorder %v398, 48
    %v606 = vsel %vm605, %v598, %v602
    %v607 = vsel %vm605, %v600, %v604
    %v608 = vsel %vm605, %v602, %v598
    %v609 = vsel %vm605, %v604, %v600
    %s610 = sld [smem:[#allocation2 + $0x3]]
    %v611 = vstv %s610
    %v612 = vmul.f32 %v611, %v608
    %v613 = vmul.f32 %v611, %v606
    %s614 = sld [smem:[#allocation2 + $0x34]]
    %v615 = vstv %s614
    %v616 = vmul.f32 %v615, %v609
    %v617 = vmul.f32 %v615, %v607
    %v618 = vadd.f32 %v612, %v616
    %v619 = vadd.f32 %v613, %v617
    %vm620 = vmand %vm406, %vm472
    %vm621 = vmand %vm407, %vm473
    %v622 = vsel %vm620, 1, 0
    %v623 = vsel %vm621, 1, 0
    %vm624 = vcmp.eq.s32.totalorder %v622, 1
    %vm625 = vcmp.eq.s32.totalorder %v623, 1
    %v626 = vsel %vm624, %v618, 0.0
    %v627 = vsel %vm625, %v619, 0.0
    %v628 = vadd.f32 %v595, %v626
    %v629 = vadd.f32 %v596, %v627
    %630 = vrot.lane.b32.xlu0 %v355, 47
    %v631 = vpop.permute.xlu0 %630
    %632 = vrot.lane.b32.xlu0 %v387, 47
    %v633 = vpop.permute.xlu0 %632
    %634 = vrot.lane.b32.xlu0 %v362, 47
    %v635 = vpop.permute.xlu0 %634
    %636 = vrot.lane.b32.xlu0 %v394, 47
    %v637 = vpop.permute.xlu0 %636
    %vm638 = vcmp.lt.s32.totalorder %v398, 47
    %v639 = vsel %vm638, %v631, %v635
    %v640 = vsel %vm638, %v633, %v637
    %v641 = vsel %vm638, %v635, %v631
    %v642 = vsel %vm638, %v637, %v633
    %s643 = sld [smem:[#allocation2 + $0x4]]
    %v644 = vstv %s643
    %v645 = vmul.f32 %v644, %v641
    %v646 = vmul.f32 %v644, %v639
    %s647 = sld [smem:[#allocation2 + $0x35]]
    %v648 = vstv %s647
    %v649 = vmul.f32 %v648, %v642
    %v650 = vmul.f32 %v648, %v640
    %v651 = vadd.f32 %v645, %v649
    %v652 = vadd.f32 %v646, %v650
    %vm653 = vmand %vm406, %vm480
    %vm654 = vmand %vm407, %vm481
    %v655 = vsel %vm653, 1, 0
    %v656 = vsel %vm654, 1, 0
    %vm657 = vcmp.eq.s32.totalorder %v655, 1
    %vm658 = vcmp.eq.s32.totalorder %v656, 1
    %v659 = vsel %vm657, %v651, 0.0
    %v660 = vsel %vm658, %v652, 0.0
    %v661 = vadd.f32 %v628, %v659
    %v662 = vadd.f32 %v629, %v660
    %663 = vrot.lane.b32.xlu0 %v355, 46
    %v664 = vpop.permute.xlu0 %663
    %665 = vrot.lane.b32.xlu0 %v387, 46
    %v666 = vpop.permute.xlu0 %665
    %667 = vrot.lane.b32.xlu0 %v362, 46
    %v668 = vpop.permute.xlu0 %667
    %669 = vrot.lane.b32.xlu0 %v394, 46
    %v670 = vpop.permute.xlu0 %669
    %vm671 = vcmp.lt.s32.totalorder %v398, 46
    %v672 = vsel %vm671, %v664, %v668
    %v673 = vsel %vm671, %v666, %v670
    %v674 = vsel %vm671, %v668, %v664
    %v675 = vsel %vm671, %v670, %v666
    %s676 = sld [smem:[#allocation2 + $0x5]]
    %v677 = vstv %s676
    %v678 = vmul.f32 %v677, %v674
    %v679 = vmul.f32 %v677, %v672
    %s680 = sld [smem:[#allocation2 + $0x36]]
    %v681 = vstv %s680
    %v682 = vmul.f32 %v681, %v675
    %v683 = vmul.f32 %v681, %v673
    %v684 = vadd.f32 %v678, %v682
    %v685 = vadd.f32 %v679, %v683
    %vm686 = vmand %vm406, %vm488
    %vm687 = vmand %vm407, %vm489
    %v688 = vsel %vm686, 1, 0
    %v689 = vsel %vm687, 1, 0
    %vm690 = vcmp.eq.s32.totalorder %v688, 1
    %vm691 = vcmp.eq.s32.totalorder %v689, 1
    %v692 = vsel %vm690, %v684, 0.0
    %v693 = vsel %vm691, %v685, 0.0
    %v694 = vadd.f32 %v661, %v692
    %v695 = vadd.f32 %v662, %v693
    %696 = vrot.lane.b32.xlu0 %v355, 45
    %v697 = vpop.permute.xlu0 %696
    %698 = vrot.lane.b32.xlu0 %v387, 45
    %v699 = vpop.permute.xlu0 %698
    %700 = vrot.lane.b32.xlu0 %v362, 45
    %v701 = vpop.permute.xlu0 %700
    %702 = vrot.lane.b32.xlu0 %v394, 45
    %v703 = vpop.permute.xlu0 %702
    %vm704 = vcmp.lt.s32.totalorder %v398, 45
    %v705 = vsel %vm704, %v697, %v701
    %v706 = vsel %vm704, %v699, %v703
    %v707 = vsel %vm704, %v701, %v697
    %v708 = vsel %vm704, %v703, %v699
    %s709 = sld [smem:[#allocation2 + $0x6]]
    %v710 = vstv %s709
    %v711 = vmul.f32 %v710, %v707
    %v712 = vmul.f32 %v710, %v705
    %s713 = sld [smem:[#allocation2 + $0x37]]
    %v714 = vstv %s713
    %v715 = vmul.f32 %v714, %v708
    %v716 = vmul.f32 %v714, %v706
    %v717 = vadd.f32 %v711, %v715
    %v718 = vadd.f32 %v712, %v716
    %vm719 = vmand %vm406, %vm496
    %vm720 = vmand %vm407, %vm497
    %v721 = vsel %vm719, 1, 0
    %v722 = vsel %vm720, 1, 0
    %vm723 = vcmp.eq.s32.totalorder %v721, 1
    %vm724 = vcmp.eq.s32.totalorder %v722, 1
    %v725 = vsel %vm723, %v717, 0.0
    %v726 = vsel %vm724, %v718, 0.0
    %v727 = vadd.f32 %v694, %v725
    %v728 = vadd.f32 %v695, %v726
    %729 = vrot.lane.b32.xlu0 %v355, 35
    %v730 = vpop.permute.xlu0 %729
    %731 = vrot.lane.b32.xlu0 %v387, 35
    %v732 = vpop.permute.xlu0 %731
    %733 = vrot.lane.b32.xlu0 %v362, 35
    %v734 = vpop.permute.xlu0 %733
    %735 = vrot.lane.b32.xlu0 %v394, 35
    %v736 = vpop.permute.xlu0 %735
    %vm737 = vcmp.lt.s32.totalorder %v398, 35
    %v738 = vsel %vm737, %v730, %v734
    %v739 = vsel %vm737, %v732, %v736
    %v740 = vsel %vm737, %v734, %v730
    %v741 = vsel %vm737, %v736, %v732
    %s742 = sld [smem:[#allocation2 + $0x7]]
    %v743 = vstv %s742
    %v744 = vmul.f32 %v743, %v740
    %v745 = vmul.f32 %v743, %v738
    %s746 = sld [smem:[#allocation2 + $0x38]]
    %v747 = vstv %s746
    %v748 = vmul.f32 %v747, %v741
    %v749 = vmul.f32 %v747, %v739
    %v750 = vadd.f32 %v744, %v748
    %v751 = vadd.f32 %v745, %v749
    %vm752 = vmand %vm412, %vm450
    %vm753 = vmand %vm413, %vm451
    %v754 = vsel %vm752, 1, 0
    %v755 = vsel %vm753, 1, 0
    %vm756 = vcmp.eq.s32.totalorder %v754, 1
    %vm757 = vcmp.eq.s32.totalorder %v755, 1
    %v758 = vsel %vm756, %v750, 0.0
    %v759 = vsel %vm757, %v751, 0.0
    %v760 = vadd.f32 %v727, %v758
    %v761 = vadd.f32 %v728, %v759
    %762 = vrot.lane.b32.xlu0 %v355, 34
    %v763 = vpop.permute.xlu0 %762
    %764 = vrot.lane.b32.xlu0 %v387, 34
    %v765 = vpop.permute.xlu0 %764
    %766 = vrot.lane.b32.xlu0 %v362, 34
    %v767 = vpop.permute.xlu0 %766
    %768 = vrot.lane.b32.xlu0 %v394, 34
    %v769 = vpop.permute.xlu0 %768
    %vm770 = vcmp.lt.s32.totalorder %v398, 34
    %v771 = vsel %vm770, %v763, %v767
    %v772 = vsel %vm770, %v765, %v769
    %v773 = vsel %vm770, %v767, %v763
    %v774 = vsel %vm770, %v769, %v765
    %s775 = sld [smem:[#allocation2 + $0x8]]
    %v776 = vstv %s775
    %v777 = vmul.f32 %v776, %v773
    %v778 = vmul.f32 %v776, %v771
    %s779 = sld [smem:[#allocation2 + $0x39]]
    %v780 = vstv %s779
    %v781 = vmul.f32 %v780, %v774
    %v782 = vmul.f32 %v780, %v772
    %v783 = vadd.f32 %v777, %v781
    %v784 = vadd.f32 %v778, %v782
    %vm785 = vmand %vm412, %vm458
    %vm786 = vmand %vm413, %vm459
    %v787 = vsel %vm785, 1, 0
    %v788 = vsel %vm786, 1, 0
    %vm789 = vcmp.eq.s32.totalorder %v787, 1
    %vm790 = vcmp.eq.s32.totalorder %v788, 1
    %v791 = vsel %vm789, %v783, 0.0
    %v792 = vsel %vm790, %v784, 0.0
    %v793 = vadd.f32 %v760, %v791
    %v794 = vadd.f32 %v761, %v792
    %795 = vrot.lane.b32.xlu0 %v355, 33
    %v796 = vpop.permute.xlu0 %795
    %797 = vrot.lane.b32.xlu0 %v387, 33
    %v798 = vpop.permute.xlu0 %797
    %799 = vrot.lane.b32.xlu0 %v362, 33
    %v800 = vpop.permute.xlu0 %799
    %801 = vrot.lane.b32.xlu0 %v394, 33
    %v802 = vpop.permute.xlu0 %801
    %vm803 = vcmp.lt.s32.totalorder %v398, 33
    %v804 = vsel %vm803, %v796, %v800
    %v805 = vsel %vm803, %v798, %v802
    %v806 = vsel %vm803, %v800, %v796
    %v807 = vsel %vm803, %v802, %v798
    %s808 = sld [smem:[#allocation2 + $0x9]]
    %v809 = vstv %s808
    %v810 = vmul.f32 %v809, %v806
    %v811 = vmul.f32 %v809, %v804
    %s812 = sld [smem:[#allocation2 + $0x3a]]
    %v813 = vstv %s812
    %v814 = vmul.f32 %v813, %v807
    %v815 = vmul.f32 %v813, %v805
    %v816 = vadd.f32 %v810, %v814
    %v817 = vadd.f32 %v811, %v815
    %vm818 = vmand %vm412, %vm466
    %vm819 = vmand %vm413, %vm467
    %v820 = vsel %vm818, 1, 0
    %v821 = vsel %vm819, 1, 0
    %vm822 = vcmp.eq.s32.totalorder %v820, 1
    %vm823 = vcmp.eq.s32.totalorder %v821, 1
    %v824 = vsel %vm822, %v816, 0.0
    %v825 = vsel %vm823, %v817, 0.0
    %v826 = vadd.f32 %v793, %v824
    %v827 = vadd.f32 %v794, %v825
    %828 = vrot.lane.b32.xlu0 %v355, 32
    %v829 = vpop.permute.xlu0 %828
    %830 = vrot.lane.b32.xlu0 %v387, 32
    %v831 = vpop.permute.xlu0 %830
    %832 = vrot.lane.b32.xlu0 %v362, 32
    %v833 = vpop.permute.xlu0 %832
    %834 = vrot.lane.b32.xlu0 %v394, 32
    %v835 = vpop.permute.xlu0 %834
    %vm836 = vcmp.lt.s32.totalorder %v398, 32
    %v837 = vsel %vm836, %v829, %v833
    %v838 = vsel %vm836, %v831, %v835
    %v839 = vsel %vm836, %v833, %v829
    %v840 = vsel %vm836, %v835, %v831
    %s841 = sld [smem:[#allocation2 + $0xa]]
    %v842 = vstv %s841
    %v843 = vmul.f32 %v842, %v839
    %v844 = vmul.f32 %v842, %v837
    %s845 = sld [smem:[#allocation2 + $0x3b]]
    %v846 = vstv %s845
    %v847 = vmul.f32 %v846, %v840
    %v848 = vmul.f32 %v846, %v838
    %v849 = vadd.f32 %v843, %v847
    %v850 = vadd.f32 %v844, %v848
    %vm851 = vmand %vm412, %vm472
    %vm852 = vmand %vm413, %vm473
    %v853 = vsel %vm851, 1, 0
    %v854 = vsel %vm852, 1, 0
    %vm855 = vcmp.eq.s32.totalorder %v853, 1
    %vm856 = vcmp.eq.s32.totalorder %v854, 1
    %v857 = vsel %vm855, %v849, 0.0
    %v858 = vsel %vm856, %v850, 0.0
    %v859 = vadd.f32 %v826, %v857
    %v860 = vadd.f32 %v827, %v858
    %861 = vrot.lane.b32.xlu0 %v355, 31
    %v862 = vpop.permute.xlu0 %861
    %863 = vrot.lane.b32.xlu0 %v387, 31
    %v864 = vpop.permute.xlu0 %863
    %865 = vrot.lane.b32.xlu0 %v362, 31
    %v866 = vpop.permute.xlu0 %865
    %867 = vrot.lane.b32.xlu0 %v394, 31
    %v868 = vpop.permute.xlu0 %867
    %vm869 = vcmp.lt.s32.totalorder %v398, 31
    %v870 = vsel %vm869, %v862, %v866
    %v871 = vsel %vm869, %v864, %v868
    %v872 = vsel %vm869, %v866, %v862
    %v873 = vsel %vm869, %v868, %v864
    %s874 = sld [smem:[#allocation2 + $0xb]]
    %v875 = vstv %s874
    %v876 = vmul.f32 %v875, %v872
    %v877 = vmul.f32 %v875, %v870
    %s878 = sld [smem:[#allocation2 + $0x3c]]
    %v879 = vstv %s878
    %v880 = vmul.f32 %v879, %v873
    %v881 = vmul.f32 %v879, %v871
    %v882 = vadd.f32 %v876, %v880
    %v883 = vadd.f32 %v877, %v881
    %vm884 = vmand %vm412, %vm480
    %vm885 = vmand %vm413, %vm481
    %v886 = vsel %vm884, 1, 0
    %v887 = vsel %vm885, 1, 0
    %vm888 = vcmp.eq.s32.totalorder %v886, 1
    %vm889 = vcmp.eq.s32.totalorder %v887, 1
    %v890 = vsel %vm888, %v882, 0.0
    %v891 = vsel %vm889, %v883, 0.0
    %v892 = vadd.f32 %v859, %v890
    %v893 = vadd.f32 %v860, %v891
    %894 = vrot.lane.b32.xlu0 %v355, 30
    %v895 = vpop.permute.xlu0 %894
    %896 = vrot.lane.b32.xlu0 %v387, 30
    %v897 = vpop.permute.xlu0 %896
    %898 = vrot.lane.b32.xlu0 %v362, 30
    %v899 = vpop.permute.xlu0 %898
    %900 = vrot.lane.b32.xlu0 %v394, 30
    %v901 = vpop.permute.xlu0 %900
    %vm902 = vcmp.lt.s32.totalorder %v398, 30
    %v903 = vsel %vm902, %v895, %v899
    %v904 = vsel %vm902, %v897, %v901
    %v905 = vsel %vm902, %v899, %v895
    %v906 = vsel %vm902, %v901, %v897
    %s907 = sld [smem:[#allocation2 + $0xc]]
    %v908 = vstv %s907
    %v909 = vmul.f32 %v908, %v905
    %v910 = vmul.f32 %v908, %v903
    %s911 = sld [smem:[#allocation2 + $0x3d]]
    %v912 = vstv %s911
    %v913 = vmul.f32 %v912, %v906
    %v914 = vmul.f32 %v912, %v904
    %v915 = vadd.f32 %v909, %v913
    %v916 = vadd.f32 %v910, %v914
    %vm917 = vmand %vm412, %vm488
    %vm918 = vmand %vm413, %vm489
    %v919 = vsel %vm917, 1, 0
    %v920 = vsel %vm918, 1, 0
    %vm921 = vcmp.eq.s32.totalorder %v919, 1
    %vm922 = vcmp.eq.s32.totalorder %v920, 1
    %v923 = vsel %vm921, %v915, 0.0
    %v924 = vsel %vm922, %v916, 0.0
    %v925 = vadd.f32 %v892, %v923
    %v926 = vadd.f32 %v893, %v924
    %927 = vrot.lane.b32.xlu0 %v355, 29
    %v928 = vpop.permute.xlu0 %927
    %929 = vrot.lane.b32.xlu0 %v387, 29
    %v930 = vpop.permute.xlu0 %929
    %931 = vrot.lane.b32.xlu0 %v362, 29
    %v932 = vpop.permute.xlu0 %931
    %933 = vrot.lane.b32.xlu0 %v394, 29
    %v934 = vpop.permute.xlu0 %933
    %vm935 = vcmp.lt.s32.totalorder %v398, 29
    %v936 = vsel %vm935, %v928, %v932
    %v937 = vsel %vm935, %v930, %v934
    %v938 = vsel %vm935, %v932, %v928
    %v939 = vsel %vm935, %v934, %v930
    %s940 = sld [smem:[#allocation2 + $0xd]]
    %v941 = vstv %s940
    %v942 = vmul.f32 %v941, %v938
    %v943 = vmul.f32 %v941, %v936
    %s944 = sld [smem:[#allocation2 + $0x3e]]
    %v945 = vstv %s944
    %v946 = vmul.f32 %v945, %v939
    %v947 = vmul.f32 %v945, %v937
    %v948 = vadd.f32 %v942, %v946
    %v949 = vadd.f32 %v943, %v947
    %vm950 = vmand %vm412, %vm496
    %vm951 = vmand %vm413, %vm497
    %v952 = vsel %vm950, 1, 0
    %v953 = vsel %vm951, 1, 0
    %vm954 = vcmp.eq.s32.totalorder %v952, 1
    %vm955 = vcmp.eq.s32.totalorder %v953, 1
    %v956 = vsel %vm954, %v948, 0.0
    %v957 = vsel %vm955, %v949, 0.0
    %v958 = vadd.f32 %v925, %v956
    %v959 = vadd.f32 %v926, %v957
    %960 = vrot.lane.b32.xlu0 %v355, 19
    %v961 = vpop.permute.xlu0 %960
    %962 = vrot.lane.b32.xlu0 %v387, 19
    %v963 = vpop.permute.xlu0 %962
    %964 = vrot.lane.b32.xlu0 %v362, 19
    %v965 = vpop.permute.xlu0 %964
    %966 = vrot.lane.b32.xlu0 %v394, 19
    %v967 = vpop.permute.xlu0 %966
    %vm968 = vcmp.lt.s32.totalorder %v398, 19
    %v969 = vsel %vm968, %v961, %v965
    %v970 = vsel %vm968, %v963, %v967
    %v971 = vsel %vm968, %v965, %v961
    %v972 = vsel %vm968, %v967, %v963
    %s973 = sld [smem:[#allocation2 + $0xe]]
    %v974 = vstv %s973
    %v975 = vmul.f32 %v974, %v971
    %v976 = vmul.f32 %v974, %v969
    %s977 = sld [smem:[#allocation2 + $0x3f]]
    %v978 = vstv %s977
    %v979 = vmul.f32 %v978, %v972
    %v980 = vmul.f32 %v978, %v970
    %v981 = vadd.f32 %v975, %v979
    %v982 = vadd.f32 %v976, %v980
    %vm983 = vmand %vm418, %vm450
    %vm984 = vmand %vm419, %vm451
    %v985 = vsel %vm983, 1, 0
    %v986 = vsel %vm984, 1, 0
    %vm987 = vcmp.eq.s32.totalorder %v985, 1
    %vm988 = vcmp.eq.s32.totalorder %v986, 1
    %v989 = vsel %vm987, %v981, 0.0
    %v990 = vsel %vm988, %v982, 0.0
    %v991 = vadd.f32 %v958, %v989
    %v992 = vadd.f32 %v959, %v990
    %993 = vrot.lane.b32.xlu0 %v355, 18
    %v994 = vpop.permute.xlu0 %993
    %995 = vrot.lane.b32.xlu0 %v387, 18
    %v996 = vpop.permute.xlu0 %995
    %997 = vrot.lane.b32.xlu0 %v362, 18
    %v998 = vpop.permute.xlu0 %997
    %999 = vrot.lane.b32.xlu0 %v394, 18
    %v1000 = vpop.permute.xlu0 %999
    %vm1001 = vcmp.lt.s32.totalorder %v398, 18
    %v1002 = vsel %vm1001, %v994, %v998
    %v1003 = vsel %vm1001, %v996, %v1000
    %v1004 = vsel %vm1001, %v998, %v994
    %v1005 = vsel %vm1001, %v1000, %v996
    %s1006 = sld [smem:[#allocation2 + $0xf]]
    %v1007 = vstv %s1006
    %v1008 = vmul.f32 %v1007, %v1004
    %v1009 = vmul.f32 %v1007, %v1002
    %s1010 = sld [smem:[#allocation2 + $0x40]]
    %v1011 = vstv %s1010
    %v1012 = vmul.f32 %v1011, %v1005
    %v1013 = vmul.f32 %v1011, %v1003
    %v1014 = vadd.f32 %v1008, %v1012
    %v1015 = vadd.f32 %v1009, %v1013
    %vm1016 = vmand %vm418, %vm458
    %vm1017 = vmand %vm419, %vm459
    %v1018 = vsel %vm1016, 1, 0
    %v1019 = vsel %vm1017, 1, 0
    %vm1020 = vcmp.eq.s32.totalorder %v1018, 1
    %vm1021 = vcmp.eq.s32.totalorder %v1019, 1
    %v1022 = vsel %vm1020, %v1014, 0.0
    %v1023 = vsel %vm1021, %v1015, 0.0
    %v1024 = vadd.f32 %v991, %v1022
    %v1025 = vadd.f32 %v992, %v1023
    %1026 = vrot.lane.b32.xlu0 %v355, 17
    %v1027 = vpop.permute.xlu0 %1026
    %1028 = vrot.lane.b32.xlu0 %v387, 17
    %v1029 = vpop.permute.xlu0 %1028
    %1030 = vrot.lane.b32.xlu0 %v362, 17
    %v1031 = vpop.permute.xlu0 %1030
    %1032 = vrot.lane.b32.xlu0 %v394, 17
    %v1033 = vpop.permute.xlu0 %1032
    %vm1034 = vcmp.lt.s32.totalorder %v398, 17
    %v1035 = vsel %vm1034, %v1027, %v1031
    %v1036 = vsel %vm1034, %v1029, %v1033
    %v1037 = vsel %vm1034, %v1031, %v1027
    %v1038 = vsel %vm1034, %v1033, %v1029
    %s1039 = sld [smem:[#allocation2 + $0x10]]
    %v1040 = vstv %s1039
    %v1041 = vmul.f32 %v1040, %v1037
    %v1042 = vmul.f32 %v1040, %v1035
    %s1043 = sld [smem:[#allocation2 + $0x41]]
    %v1044 = vstv %s1043
    %v1045 = vmul.f32 %v1044, %v1038
    %v1046 = vmul.f32 %v1044, %v1036
    %v1047 = vadd.f32 %v1041, %v1045
    %v1048 = vadd.f32 %v1042, %v1046
    %vm1049 = vmand %vm418, %vm466
    %vm1050 = vmand %vm419, %vm467
    %v1051 = vsel %vm1049, 1, 0
    %v1052 = vsel %vm1050, 1, 0
    %vm1053 = vcmp.eq.s32.totalorder %v1051, 1
    %vm1054 = vcmp.eq.s32.totalorder %v1052, 1
    %v1055 = vsel %vm1053, %v1047, 0.0
    %v1056 = vsel %vm1054, %v1048, 0.0
    %v1057 = vadd.f32 %v1024, %v1055
    %v1058 = vadd.f32 %v1025, %v1056
    %1059 = vrot.lane.b32.xlu0 %v355, 16
    %v1060 = vpop.permute.xlu0 %1059
    %1061 = vrot.lane.b32.xlu0 %v387, 16
    %v1062 = vpop.permute.xlu0 %1061
    %1063 = vrot.lane.b32.xlu0 %v362, 16
    %v1064 = vpop.permute.xlu0 %1063
    %1065 = vrot.lane.b32.xlu0 %v394, 16
    %v1066 = vpop.permute.xlu0 %1065
    %vm1067 = vcmp.lt.s32.totalorder %v398, 16
    %v1068 = vsel %vm1067, %v1060, %v1064
    %v1069 = vsel %vm1067, %v1062, %v1066
    %v1070 = vsel %vm1067, %v1064, %v1060
    %v1071 = vsel %vm1067, %v1066, %v1062
    %s1072 = sld [smem:[#allocation2 + $0x11]]
    %v1073 = vstv %s1072
    %v1074 = vmul.f32 %v1073, %v1070
    %v1075 = vmul.f32 %v1073, %v1068
    %s1076 = sld [smem:[#allocation2 + $0x42]]
    %v1077 = vstv %s1076
    %v1078 = vmul.f32 %v1077, %v1071
    %v1079 = vmul.f32 %v1077, %v1069
    %v1080 = vadd.f32 %v1074, %v1078
    %v1081 = vadd.f32 %v1075, %v1079
    %vm1082 = vmand %vm418, %vm472
    %vm1083 = vmand %vm419, %vm473
    %v1084 = vsel %vm1082, 1, 0
    %v1085 = vsel %vm1083, 1, 0
    %vm1086 = vcmp.eq.s32.totalorder %v1084, 1
    %vm1087 = vcmp.eq.s32.totalorder %v1085, 1
    %v1088 = vsel %vm1086, %v1080, 0.0
    %v1089 = vsel %vm1087, %v1081, 0.0
    %v1090 = vadd.f32 %v1057, %v1088
    %v1091 = vadd.f32 %v1058, %v1089
    %1092 = vrot.lane.b32.xlu0 %v355, 15
    %v1093 = vpop.permute.xlu0 %1092
    %1094 = vrot.lane.b32.xlu0 %v387, 15
    %v1095 = vpop.permute.xlu0 %1094
    %1096 = vrot.lane.b32.xlu0 %v362, 15
    %v1097 = vpop.permute.xlu0 %1096
    %1098 = vrot.lane.b32.xlu0 %v394, 15
    %v1099 = vpop.permute.xlu0 %1098
    %vm1100 = vcmp.lt.s32.totalorder %v398, 15
    %v1101 = vsel %vm1100, %v1093, %v1097
    %v1102 = vsel %vm1100, %v1095, %v1099
    %v1103 = vsel %vm1100, %v1097, %v1093
    %v1104 = vsel %vm1100, %v1099, %v1095
    %s1105 = sld [smem:[#allocation2 + $0x12]]
    %v1106 = vstv %s1105
    %v1107 = vmul.f32 %v1106, %v1103
    %v1108 = vmul.f32 %v1106, %v1101
    %s1109 = sld [smem:[#allocation2 + $0x43]]
    %v1110 = vstv %s1109
    %v1111 = vmul.f32 %v1110, %v1104
    %v1112 = vmul.f32 %v1110, %v1102
    %v1113 = vadd.f32 %v1107, %v1111
    %v1114 = vadd.f32 %v1108, %v1112
    %vm1115 = vmand %vm418, %vm480
    %vm1116 = vmand %vm419, %vm481
    %v1117 = vsel %vm1115, 1, 0
    %v1118 = vsel %vm1116, 1, 0
    %vm1119 = vcmp.eq.s32.totalorder %v1117, 1
    %vm1120 = vcmp.eq.s32.totalorder %v1118, 1
    %v1121 = vsel %vm1119, %v1113, 0.0
    %v1122 = vsel %vm1120, %v1114, 0.0
    %v1123 = vadd.f32 %v1090, %v1121
    %v1124 = vadd.f32 %v1091, %v1122
    %1125 = vrot.lane.b32.xlu0 %v355, 14
    %v1126 = vpop.permute.xlu0 %1125
    %1127 = vrot.lane.b32.xlu0 %v387, 14
    %v1128 = vpop.permute.xlu0 %1127
    %1129 = vrot.lane.b32.xlu0 %v362, 14
    %v1130 = vpop.permute.xlu0 %1129
    %1131 = vrot.lane.b32.xlu0 %v394, 14
    %v1132 = vpop.permute.xlu0 %1131
    %vm1133 = vcmp.lt.s32.totalorder %v398, 14
    %v1134 = vsel %vm1133, %v1126, %v1130
    %v1135 = vsel %vm1133, %v1128, %v1132
    %v1136 = vsel %vm1133, %v1130, %v1126
    %v1137 = vsel %vm1133, %v1132, %v1128
    %s1138 = sld [smem:[#allocation2 + $0x13]]
    %v1139 = vstv %s1138
    %v1140 = vmul.f32 %v1139, %v1136
    %v1141 = vmul.f32 %v1139, %v1134
    %s1142 = sld [smem:[#allocation2 + $0x44]]
    %v1143 = vstv %s1142
    %v1144 = vmul.f32 %v1143, %v1137
    %v1145 = vmul.f32 %v1143, %v1135
    %v1146 = vadd.f32 %v1140, %v1144
    %v1147 = vadd.f32 %v1141, %v1145
    %vm1148 = vmand %vm418, %vm488
    %vm1149 = vmand %vm419, %vm489
    %v1150 = vsel %vm1148, 1, 0
    %v1151 = vsel %vm1149, 1, 0
    %vm1152 = vcmp.eq.s32.totalorder %v1150, 1
    %vm1153 = vcmp.eq.s32.totalorder %v1151, 1
    %v1154 = vsel %vm1152, %v1146, 0.0
    %v1155 = vsel %vm1153, %v1147, 0.0
    %v1156 = vadd.f32 %v1123, %v1154
    %v1157 = vadd.f32 %v1124, %v1155
    %1158 = vrot.lane.b32.xlu0 %v355, 13
    %v1159 = vpop.permute.xlu0 %1158
    %1160 = vrot.lane.b32.xlu0 %v387, 13
    %v1161 = vpop.permute.xlu0 %1160
    %1162 = vrot.lane.b32.xlu0 %v362, 13
    %v1163 = vpop.permute.xlu0 %1162
    %1164 = vrot.lane.b32.xlu0 %v394, 13
    %v1165 = vpop.permute.xlu0 %1164
    %vm1166 = vcmp.lt.s32.totalorder %v398, 13
    %v1167 = vsel %vm1166, %v1159, %v1163
    %v1168 = vsel %vm1166, %v1161, %v1165
    %v1169 = vsel %vm1166, %v1163, %v1159
    %v1170 = vsel %vm1166, %v1165, %v1161
    %s1171 = sld [smem:[#allocation2 + $0x14]]
    %v1172 = vstv %s1171
    %v1173 = vmul.f32 %v1172, %v1169
    %v1174 = vmul.f32 %v1172, %v1167
    %s1175 = sld [smem:[#allocation2 + $0x45]]
    %v1176 = vstv %s1175
    %v1177 = vmul.f32 %v1176, %v1170
    %v1178 = vmul.f32 %v1176, %v1168
    %v1179 = vadd.f32 %v1173, %v1177
    %v1180 = vadd.f32 %v1174, %v1178
    %vm1181 = vmand %vm418, %vm496
    %vm1182 = vmand %vm419, %vm497
    %v1183 = vsel %vm1181, 1, 0
    %v1184 = vsel %vm1182, 1, 0
    %vm1185 = vcmp.eq.s32.totalorder %v1183, 1
    %vm1186 = vcmp.eq.s32.totalorder %v1184, 1
    %v1187 = vsel %vm1185, %v1179, 0.0
    %v1188 = vsel %vm1186, %v1180, 0.0
    %v1189 = vadd.f32 %v1156, %v1187
    %v1190 = vadd.f32 %v1157, %v1188
    %1191 = vrot.lane.b32.xlu0 %v355, 3
    %v1192 = vpop.permute.xlu0 %1191
    %1193 = vrot.lane.b32.xlu0 %v387, 3
    %v1194 = vpop.permute.xlu0 %1193
    %1195 = vrot.lane.b32.xlu0 %v362, 3
    %v1196 = vpop.permute.xlu0 %1195
    %1197 = vrot.lane.b32.xlu0 %v394, 3
    %v1198 = vpop.permute.xlu0 %1197
    %vm1199 = vcmp.lt.s32.totalorder %v398, 3
    %v1200 = vsel %vm1199, %v1192, %v1196
    %v1201 = vsel %vm1199, %v1194, %v1198
    %v1202 = vsel %vm1199, %v1196, %v1192
    %v1203 = vsel %vm1199, %v1198, %v1194
    %s1204 = sld [smem:[#allocation2 + $0x15]]
    %v1205 = vstv %s1204
    %v1206 = vmul.f32 %v1205, %v1202
    %v1207 = vmul.f32 %v1205, %v1200
    %s1208 = sld [smem:[#allocation2 + $0x46]]
    %v1209 = vstv %s1208
    %v1210 = vmul.f32 %v1209, %v1203
    %v1211 = vmul.f32 %v1209, %v1201
    %v1212 = vadd.f32 %v1206, %v1210
    %v1213 = vadd.f32 %v1207, %v1211
    %vm1214 = vmand %vm424, %vm450
    %vm1215 = vmand %vm425, %vm451
    %v1216 = vsel %vm1214, 1, 0
    %v1217 = vsel %vm1215, 1, 0
    %vm1218 = vcmp.eq.s32.totalorder %v1216, 1
    %vm1219 = vcmp.eq.s32.totalorder %v1217, 1
    %v1220 = vsel %vm1218, %v1212, 0.0
    %v1221 = vsel %vm1219, %v1213, 0.0
    %v1222 = vadd.f32 %v1189, %v1220
    %v1223 = vadd.f32 %v1190, %v1221
    %1224 = vrot.lane.b32.xlu0 %v355, 2
    %v1225 = vpop.permute.xlu0 %1224
    %1226 = vrot.lane.b32.xlu0 %v387, 2
    %v1227 = vpop.permute.xlu0 %1226
    %1228 = vrot.lane.b32.xlu0 %v362, 2
    %v1229 = vpop.permute.xlu0 %1228
    %1230 = vrot.lane.b32.xlu0 %v394, 2
    %v1231 = vpop.permute.xlu0 %1230
    %vm1232 = vcmp.lt.s32.totalorder %v398, 2
    %v1233 = vsel %vm1232, %v1225, %v1229
    %v1234 = vsel %vm1232, %v1227, %v1231
    %v1235 = vsel %vm1232, %v1229, %v1225
    %v1236 = vsel %vm1232, %v1231, %v1227
    %s1237 = sld [smem:[#allocation2 + $0x16]]
    %v1238 = vstv %s1237
    %v1239 = vmul.f32 %v1238, %v1235
    %v1240 = vmul.f32 %v1238, %v1233
    %s1241 = sld [smem:[#allocation2 + $0x47]]
    %v1242 = vstv %s1241
    %v1243 = vmul.f32 %v1242, %v1236
    %v1244 = vmul.f32 %v1242, %v1234
    %v1245 = vadd.f32 %v1239, %v1243
    %v1246 = vadd.f32 %v1240, %v1244
    %vm1247 = vmand %vm424, %vm458
    %vm1248 = vmand %vm425, %vm459
    %v1249 = vsel %vm1247, 1, 0
    %v1250 = vsel %vm1248, 1, 0
    %vm1251 = vcmp.eq.s32.totalorder %v1249, 1
    %vm1252 = vcmp.eq.s32.totalorder %v1250, 1
    %v1253 = vsel %vm1251, %v1245, 0.0
    %v1254 = vsel %vm1252, %v1246, 0.0
    %v1255 = vadd.f32 %v1222, %v1253
    %v1256 = vadd.f32 %v1223, %v1254
    %1257 = vrot.lane.b32.xlu0 %v355, 1
    %v1258 = vpop.permute.xlu0 %1257
    %1259 = vrot.lane.b32.xlu0 %v387, 1
    %v1260 = vpop.permute.xlu0 %1259
    %1261 = vrot.lane.b32.xlu0 %v362, 1
    %v1262 = vpop.permute.xlu0 %1261
    %1263 = vrot.lane.b32.xlu0 %v394, 1
    %v1264 = vpop.permute.xlu0 %1263
    %vm1265 = vcmp.lt.s32.totalorder %v398, 1
    %v1266 = vsel %vm1265, %v1258, %v1262
    %v1267 = vsel %vm1265, %v1260, %v1264
    %v1268 = vsel %vm1265, %v1262, %v1258
    %v1269 = vsel %vm1265, %v1264, %v1260
    %s1270 = sld [smem:[#allocation2 + $0x17]]
    %v1271 = vstv %s1270
    %v1272 = vmul.f32 %v1271, %v1268
    %v1273 = vmul.f32 %v1271, %v1266
    %s1274 = sld [smem:[#allocation2 + $0x48]]
    %v1275 = vstv %s1274
    %v1276 = vmul.f32 %v1275, %v1269
    %v1277 = vmul.f32 %v1275, %v1267
    %v1278 = vadd.f32 %v1272, %v1276
    %v1279 = vadd.f32 %v1273, %v1277
    %vm1280 = vmand %vm424, %vm466
    %vm1281 = vmand %vm425, %vm467
    %v1282 = vsel %vm1280, 1, 0
    %v1283 = vsel %vm1281, 1, 0
    %vm1284 = vcmp.eq.s32.totalorder %v1282, 1
    %vm1285 = vcmp.eq.s32.totalorder %v1283, 1
    %v1286 = vsel %vm1284, %v1278, 0.0
    %v1287 = vsel %vm1285, %v1279, 0.0
    %v1288 = vadd.f32 %v1255, %v1286
    %v1289 = vadd.f32 %v1256, %v1287
    %s1290 = sld [smem:[#allocation2 + $0x18]]
    %v1291 = vstv %s1290
    %v1292 = vmul.f32 %v1291, %v355
    %v1293 = vmul.f32 %v1291, %v362
    %s1294 = sld [smem:[#allocation2 + $0x49]]
    %v1295 = vstv %s1294
    %v1296 = vmul.f32 %v1295, %v387
    %v1297 = vmul.f32 %v1295, %v394
    %v1298 = vadd.f32 %v1292, %v1296
    %v1299 = vadd.f32 %v1293, %v1297
    %vm1300 = vmand %vm424, %vm472
    %vm1301 = vmand %vm425, %vm473
    %v1302 = vsel %vm1300, 1, 0
    %v1303 = vsel %vm1301, 1, 0
    %vm1304 = vcmp.eq.s32.totalorder %v1302, 1
    %vm1305 = vcmp.eq.s32.totalorder %v1303, 1
    %v1306 = vsel %vm1304, %v1298, 0.0
    %v1307 = vsel %vm1305, %v1299, 0.0
    %v1308 = vadd.f32 %v1288, %v1306
    %v1309 = vadd.f32 %v1289, %v1307
    %1310 = vrot.lane.b32.xlu0 %v355, 127
    %v1311 = vpop.permute.xlu0 %1310
    %1312 = vrot.lane.b32.xlu0 %v387, 127
    %v1313 = vpop.permute.xlu0 %1312
    %1314 = vrot.lane.b32.xlu0 %v362, 127
    %v1315 = vpop.permute.xlu0 %1314
    %1316 = vrot.lane.b32.xlu0 %v394, 127
    %v1317 = vpop.permute.xlu0 %1316
    %vm1318 = vcmp.lt.s32.totalorder %v398, 127
    %v1319 = vsel %vm1318, %v1311, %v1315
    %v1320 = vsel %vm1318, %v1313, %v1317
    %v1321 = vsel %vm1318, %v1315, %v1311
    %v1322 = vsel %vm1318, %v1317, %v1313
    %s1323 = sld [smem:[#allocation2 + $0x19]]
    %v1324 = vstv %s1323
    %v1325 = vmul.f32 %v1324, %v1319
    %v1326 = vmul.f32 %v1324, %v1321
    %s1327 = sld [smem:[#allocation2 + $0x4a]]
    %v1328 = vstv %s1327
    %v1329 = vmul.f32 %v1328, %v1320
    %v1330 = vmul.f32 %v1328, %v1322
    %v1331 = vadd.f32 %v1325, %v1329
    %v1332 = vadd.f32 %v1326, %v1330
    %vm1333 = vmand %vm424, %vm480
    %vm1334 = vmand %vm425, %vm481
    %v1335 = vsel %vm1333, 1, 0
    %v1336 = vsel %vm1334, 1, 0
    %vm1337 = vcmp.eq.s32.totalorder %v1335, 1
    %vm1338 = vcmp.eq.s32.totalorder %v1336, 1
    %v1339 = vsel %vm1337, %v1331, 0.0
    %v1340 = vsel %vm1338, %v1332, 0.0
    %v1341 = vadd.f32 %v1308, %v1339
    %v1342 = vadd.f32 %v1309, %v1340
    %1343 = vrot.lane.b32.xlu0 %v355, 126
    %v1344 = vpop.permute.xlu0 %1343
    %1345 = vrot.lane.b32.xlu0 %v387, 126
    %v1346 = vpop.permute.xlu0 %1345
    %1347 = vrot.lane.b32.xlu0 %v362, 126
    %v1348 = vpop.permute.xlu0 %1347
    %1349 = vrot.lane.b32.xlu0 %v394, 126
    %v1350 = vpop.permute.xlu0 %1349
    %vm1351 = vcmp.lt.s32.totalorder %v398, 126
    %v1352 = vsel %vm1351, %v1344, %v1348
    %v1353 = vsel %vm1351, %v1346, %v1350
    %v1354 = vsel %vm1351, %v1348, %v1344
    %v1355 = vsel %vm1351, %v1350, %v1346
    %s1356 = sld [smem:[#allocation2 + $0x1a]]
    %v1357 = vstv %s1356
    %v1358 = vmul.f32 %v1357, %v1352
    %v1359 = vmul.f32 %v1357, %v1354
    %s1360 = sld [smem:[#allocation2 + $0x4b]]
    %v1361 = vstv %s1360
    %v1362 = vmul.f32 %v1361, %v1353
    %v1363 = vmul.f32 %v1361, %v1355
    %v1364 = vadd.f32 %v1358, %v1362
    %v1365 = vadd.f32 %v1359, %v1363
    %vm1366 = vmand %vm424, %vm488
    %vm1367 = vmand %vm425, %vm489
    %v1368 = vsel %vm1366, 1, 0
    %v1369 = vsel %vm1367, 1, 0
    %vm1370 = vcmp.eq.s32.totalorder %v1368, 1
    %vm1371 = vcmp.eq.s32.totalorder %v1369, 1
    %v1372 = vsel %vm1370, %v1364, 0.0
    %v1373 = vsel %vm1371, %v1365, 0.0
    %v1374 = vadd.f32 %v1341, %v1372
    %v1375 = vadd.f32 %v1342, %v1373
    %1376 = vrot.lane.b32.xlu0 %v355, 125
    %v1377 = vpop.permute.xlu0 %1376
    %1378 = vrot.lane.b32.xlu0 %v387, 125
    %v1379 = vpop.permute.xlu0 %1378
    %1380 = vrot.lane.b32.xlu0 %v362, 125
    %v1381 = vpop.permute.xlu0 %1380
    %1382 = vrot.lane.b32.xlu0 %v394, 125
    %v1383 = vpop.permute.xlu0 %1382
    %vm1384 = vcmp.lt.s32.totalorder %v398, 125
    %v1385 = vsel %vm1384, %v1377, %v1381
    %v1386 = vsel %vm1384, %v1379, %v1383
    %v1387 = vsel %vm1384, %v1381, %v1377
    %v1388 = vsel %vm1384, %v1383, %v1379
    %s1389 = sld [smem:[#allocation2 + $0x1b]]
    %v1390 = vstv %s1389
    %v1391 = vmul.f32 %v1390, %v1385
    %v1392 = vmul.f32 %v1390, %v1387
    %s1393 = sld [smem:[#allocation2 + $0x4c]]
    %v1394 = vstv %s1393
    %v1395 = vmul.f32 %v1394, %v1386
    %v1396 = vmul.f32 %v1394, %v1388
    %v1397 = vadd.f32 %v1391, %v1395
    %v1398 = vadd.f32 %v1392, %v1396
    %vm1399 = vmand %vm424, %vm496
    %vm1400 = vmand %vm425, %vm497
    %v1401 = vsel %vm1399, 1, 0
    %v1402 = vsel %vm1400, 1, 0
    %vm1403 = vcmp.eq.s32.totalorder %v1401, 1
    %vm1404 = vcmp.eq.s32.totalorder %v1402, 1
    %v1405 = vsel %vm1403, %v1397, 0.0
    %v1406 = vsel %vm1404, %v1398, 0.0
    %v1407 = vadd.f32 %v1374, %v1405
    %v1408 = vadd.f32 %v1375, %v1406
    %1409 = vrot.lane.b32.xlu0 %v355, 115
    %v1410 = vpop.permute.xlu0 %1409
    %1411 = vrot.lane.b32.xlu0 %v387, 115
    %v1412 = vpop.permute.xlu0 %1411
    %1413 = vrot.lane.b32.xlu0 %v362, 115
    %v1414 = vpop.permute.xlu0 %1413
    %1415 = vrot.lane.b32.xlu0 %v394, 115
    %v1416 = vpop.permute.xlu0 %1415
    %vm1417 = vcmp.lt.s32.totalorder %v398, 115
    %v1418 = vsel %vm1417, %v1410, %v1414
    %v1419 = vsel %vm1417, %v1412, %v1416
    %v1420 = vsel %vm1417, %v1414, %v1410
    %v1421 = vsel %vm1417, %v1416, %v1412
    %s1422 = sld [smem:[#allocation2 + $0x1c]]
    %v1423 = vstv %s1422
    %v1424 = vmul.f32 %v1423, %v1418
    %v1425 = vmul.f32 %v1423, %v1420
    %s1426 = sld [smem:[#allocation2 + $0x4d]]
    %v1427 = vstv %s1426
    %v1428 = vmul.f32 %v1427, %v1419
    %v1429 = vmul.f32 %v1427, %v1421
    %v1430 = vadd.f32 %v1424, %v1428
    %v1431 = vadd.f32 %v1425, %v1429
    %vm1432 = vmand %vm430, %vm450
    %vm1433 = vmand %vm431, %vm451
    %v1434 = vsel %vm1432, 1, 0
    %v1435 = vsel %vm1433, 1, 0
    %vm1436 = vcmp.eq.s32.totalorder %v1434, 1
    %vm1437 = vcmp.eq.s32.totalorder %v1435, 1
    %v1438 = vsel %vm1436, %v1430, 0.0
    %v1439 = vsel %vm1437, %v1431, 0.0
    %v1440 = vadd.f32 %v1407, %v1438
    %v1441 = vadd.f32 %v1408, %v1439
    %1442 = vrot.lane.b32.xlu0 %v355, 114
    %v1443 = vpop.permute.xlu0 %1442
    %1444 = vrot.lane.b32.xlu0 %v387, 114
    %v1445 = vpop.permute.xlu0 %1444
    %1446 = vrot.lane.b32.xlu0 %v362, 114
    %v1447 = vpop.permute.xlu0 %1446
    %1448 = vrot.lane.b32.xlu0 %v394, 114
    %v1449 = vpop.permute.xlu0 %1448
    %vm1450 = vcmp.lt.s32.totalorder %v398, 114
    %v1451 = vsel %vm1450, %v1443, %v1447
    %v1452 = vsel %vm1450, %v1445, %v1449
    %v1453 = vsel %vm1450, %v1447, %v1443
    %v1454 = vsel %vm1450, %v1449, %v1445
    %s1455 = sld [smem:[#allocation2 + $0x1d]]
    %v1456 = vstv %s1455
    %v1457 = vmul.f32 %v1456, %v1451
    %v1458 = vmul.f32 %v1456, %v1453
    %s1459 = sld [smem:[#allocation2 + $0x4e]]
    %v1460 = vstv %s1459
    %v1461 = vmul.f32 %v1460, %v1452
    %v1462 = vmul.f32 %v1460, %v1454
    %v1463 = vadd.f32 %v1457, %v1461
    %v1464 = vadd.f32 %v1458, %v1462
    %vm1465 = vmand %vm430, %vm458
    %vm1466 = vmand %vm431, %vm459
    %v1467 = vsel %vm1465, 1, 0
    %v1468 = vsel %vm1466, 1, 0
    %vm1469 = vcmp.eq.s32.totalorder %v1467, 1
    %vm1470 = vcmp.eq.s32.totalorder %v1468, 1
    %v1471 = vsel %vm1469, %v1463, 0.0
    %v1472 = vsel %vm1470, %v1464, 0.0
    %v1473 = vadd.f32 %v1440, %v1471
    %v1474 = vadd.f32 %v1441, %v1472
    %1475 = vrot.lane.b32.xlu0 %v355, 113
    %v1476 = vpop.permute.xlu0 %1475
    %1477 = vrot.lane.b32.xlu0 %v387, 113
    %v1478 = vpop.permute.xlu0 %1477
    %1479 = vrot.lane.b32.xlu0 %v362, 113
    %v1480 = vpop.permute.xlu0 %1479
    %1481 = vrot.lane.b32.xlu0 %v394, 113
    %v1482 = vpop.permute.xlu0 %1481
    %vm1483 = vcmp.lt.s32.totalorder %v398, 113
    %v1484 = vsel %vm1483, %v1476, %v1480
    %v1485 = vsel %vm1483, %v1478, %v1482
    %v1486 = vsel %vm1483, %v1480, %v1476
    %v1487 = vsel %vm1483, %v1482, %v1478
    %s1488 = sld [smem:[#allocation2 + $0x1e]]
    %v1489 = vstv %s1488
    %v1490 = vmul.f32 %v1489, %v1484
    %v1491 = vmul.f32 %v1489, %v1486
    %s1492 = sld [smem:[#allocation2 + $0x4f]]
    %v1493 = vstv %s1492
    %v1494 = vmul.f32 %v1493, %v1485
    %v1495 = vmul.f32 %v1493, %v1487
    %v1496 = vadd.f32 %v1490, %v1494
    %v1497 = vadd.f32 %v1491, %v1495
    %vm1498 = vmand %vm430, %vm466
    %vm1499 = vmand %vm431, %vm467
    %v1500 = vsel %vm1498, 1, 0
    %v1501 = vsel %vm1499, 1, 0
    %vm1502 = vcmp.eq.s32.totalorder %v1500, 1
    %vm1503 = vcmp.eq.s32.totalorder %v1501, 1
    %v1504 = vsel %vm1502, %v1496, 0.0
    %v1505 = vsel %vm1503, %v1497, 0.0
    %v1506 = vadd.f32 %v1473, %v1504
    %v1507 = vadd.f32 %v1474, %v1505
    %1508 = vrot.lane.b32.xlu0 %v355, 112
    %v1509 = vpop.permute.xlu0 %1508
    %1510 = vrot.lane.b32.xlu0 %v387, 112
    %v1511 = vpop.permute.xlu0 %1510
    %1512 = vrot.lane.b32.xlu0 %v362, 112
    %v1513 = vpop.permute.xlu0 %1512
    %1514 = vrot.lane.b32.xlu0 %v394, 112
    %v1515 = vpop.permute.xlu0 %1514
    %vm1516 = vcmp.lt.s32.totalorder %v398, 112
    %v1517 = vsel %vm1516, %v1509, %v1513
    %v1518 = vsel %vm1516, %v1511, %v1515
    %v1519 = vsel %vm1516, %v1513, %v1509
    %v1520 = vsel %vm1516, %v1515, %v1511
    %s1521 = sld [smem:[#allocation2 + $0x1f]]
    %v1522 = vstv %s1521
    %v1523 = vmul.f32 %v1522, %v1517
    %v1524 = vmul.f32 %v1522, %v1519
    %s1525 = sld [smem:[#allocation2 + $0x50]]
    %v1526 = vstv %s1525
    %v1527 = vmul.f32 %v1526, %v1518
    %v1528 = vmul.f32 %v1526, %v1520
    %v1529 = vadd.f32 %v1523, %v1527
    %v1530 = vadd.f32 %v1524, %v1528
    %vm1531 = vmand %vm430, %vm472
    %vm1532 = vmand %vm431, %vm473
    %v1533 = vsel %vm1531, 1, 0
    %v1534 = vsel %vm1532, 1, 0
    %vm1535 = vcmp.eq.s32.totalorder %v1533, 1
    %vm1536 = vcmp.eq.s32.totalorder %v1534, 1
    %v1537 = vsel %vm1535, %v1529, 0.0
    %v1538 = vsel %vm1536, %v1530, 0.0
    %v1539 = vadd.f32 %v1506, %v1537
    %v1540 = vadd.f32 %v1507, %v1538
    %1541 = vrot.lane.b32.xlu0 %v355, 111
    %v1542 = vpop.permute.xlu0 %1541
    %1543 = vrot.lane.b32.xlu0 %v387, 111
    %v1544 = vpop.permute.xlu0 %1543
    %1545 = vrot.lane.b32.xlu0 %v362, 111
    %v1546 = vpop.permute.xlu0 %1545
    %1547 = vrot.lane.b32.xlu0 %v394, 111
    %v1548 = vpop.permute.xlu0 %1547
    %vm1549 = vcmp.lt.s32.totalorder %v398, 111
    %v1550 = vsel %vm1549, %v1542, %v1546
    %v1551 = vsel %vm1549, %v1544, %v1548
    %v1552 = vsel %vm1549, %v1546, %v1542
    %v1553 = vsel %vm1549, %v1548, %v1544
    %s1554 = sld [smem:[#allocation2 + $0x20]]
    %v1555 = vstv %s1554
    %v1556 = vmul.f32 %v1555, %v1550
    %v1557 = vmul.f32 %v1555, %v1552
    %s1558 = sld [smem:[#allocation2 + $0x51]]
    %v1559 = vstv %s1558
    %v1560 = vmul.f32 %v1559, %v1551
    %v1561 = vmul.f32 %v1559, %v1553
    %v1562 = vadd.f32 %v1556, %v1560
    %v1563 = vadd.f32 %v1557, %v1561
    %vm1564 = vmand %vm430, %vm480
    %vm1565 = vmand %vm431, %vm481
    %v1566 = vsel %vm1564, 1, 0
    %v1567 = vsel %vm1565, 1, 0
    %vm1568 = vcmp.eq.s32.totalorder %v1566, 1
    %vm1569 = vcmp.eq.s32.totalorder %v1567, 1
    %v1570 = vsel %vm1568, %v1562, 0.0
    %v1571 = vsel %vm1569, %v1563, 0.0
    %v1572 = vadd.f32 %v1539, %v1570
    %v1573 = vadd.f32 %v1540, %v1571
    %1574 = vrot.lane.b32.xlu0 %v355, 110
    %v1575 = vpop.permute.xlu0 %1574
    %1576 = vrot.lane.b32.xlu0 %v387, 110
    %v1577 = vpop.permute.xlu0 %1576
    %1578 = vrot.lane.b32.xlu0 %v362, 110
    %v1579 = vpop.permute.xlu0 %1578
    %1580 = vrot.lane.b32.xlu0 %v394, 110
    %v1581 = vpop.permute.xlu0 %1580
    %vm1582 = vcmp.lt.s32.totalorder %v398, 110
    %v1583 = vsel %vm1582, %v1575, %v1579
    %v1584 = vsel %vm1582, %v1577, %v1581
    %v1585 = vsel %vm1582, %v1579, %v1575
    %v1586 = vsel %vm1582, %v1581, %v1577
    %s1587 = sld [smem:[#allocation2 + $0x21]]
    %v1588 = vstv %s1587
    %v1589 = vmul.f32 %v1588, %v1583
    %v1590 = vmul.f32 %v1588, %v1585
    %s1591 = sld [smem:[#allocation2 + $0x52]]
    %v1592 = vstv %s1591
    %v1593 = vmul.f32 %v1592, %v1584
    %v1594 = vmul.f32 %v1592, %v1586
    %v1595 = vadd.f32 %v1589, %v1593
    %v1596 = vadd.f32 %v1590, %v1594
    %vm1597 = vmand %vm430, %vm488
    %vm1598 = vmand %vm431, %vm489
    %v1599 = vsel %vm1597, 1, 0
    %v1600 = vsel %vm1598, 1, 0
    %vm1601 = vcmp.eq.s32.totalorder %v1599, 1
    %vm1602 = vcmp.eq.s32.totalorder %v1600, 1
    %v1603 = vsel %vm1601, %v1595, 0.0
    %v1604 = vsel %vm1602, %v1596, 0.0
    %v1605 = vadd.f32 %v1572, %v1603
    %v1606 = vadd.f32 %v1573, %v1604
    %1607 = vrot.lane.b32.xlu0 %v355, 109
    %v1608 = vpop.permute.xlu0 %1607
    %1609 = vrot.lane.b32.xlu0 %v387, 109
    %v1610 = vpop.permute.xlu0 %1609
    %1611 = vrot.lane.b32.xlu0 %v362, 109
    %v1612 = vpop.permute.xlu0 %1611
    %1613 = vrot.lane.b32.xlu0 %v394, 109
    %v1614 = vpop.permute.xlu0 %1613
    %vm1615 = vcmp.lt.s32.totalorder %v398, 109
    %v1616 = vsel %vm1615, %v1608, %v1612
    %v1617 = vsel %vm1615, %v1610, %v1614
    %v1618 = vsel %vm1615, %v1612, %v1608
    %v1619 = vsel %vm1615, %v1614, %v1610
    %s1620 = sld [smem:[#allocation2 + $0x22]]
    %v1621 = vstv %s1620
    %v1622 = vmul.f32 %v1621, %v1616
    %v1623 = vmul.f32 %v1621, %v1618
    %s1624 = sld [smem:[#allocation2 + $0x53]]
    %v1625 = vstv %s1624
    %v1626 = vmul.f32 %v1625, %v1617
    %v1627 = vmul.f32 %v1625, %v1619
    %v1628 = vadd.f32 %v1622, %v1626
    %v1629 = vadd.f32 %v1623, %v1627
    %vm1630 = vmand %vm430, %vm496
    %vm1631 = vmand %vm431, %vm497
    %v1632 = vsel %vm1630, 1, 0
    %v1633 = vsel %vm1631, 1, 0
    %vm1634 = vcmp.eq.s32.totalorder %v1632, 1
    %vm1635 = vcmp.eq.s32.totalorder %v1633, 1
    %v1636 = vsel %vm1634, %v1628, 0.0
    %v1637 = vsel %vm1635, %v1629, 0.0
    %v1638 = vadd.f32 %v1605, %v1636
    %v1639 = vadd.f32 %v1606, %v1637
    %1640 = vrot.lane.b32.xlu0 %v355, 99
    %v1641 = vpop.permute.xlu0 %1640
    %1642 = vrot.lane.b32.xlu0 %v387, 99
    %v1643 = vpop.permute.xlu0 %1642
    %1644 = vrot.lane.b32.xlu0 %v362, 99
    %v1645 = vpop.permute.xlu0 %1644
    %1646 = vrot.lane.b32.xlu0 %v394, 99
    %v1647 = vpop.permute.xlu0 %1646
    %vm1648 = vcmp.lt.s32.totalorder %v398, 99
    %v1649 = vsel %vm1648, %v1641, %v1645
    %v1650 = vsel %vm1648, %v1643, %v1647
    %v1651 = vsel %vm1648, %v1645, %v1641
    %v1652 = vsel %vm1648, %v1647, %v1643
    %s1653 = sld [smem:[#allocation2 + $0x23]]
    %v1654 = vstv %s1653
    %v1655 = vmul.f32 %v1654, %v1649
    %v1656 = vmul.f32 %v1654, %v1651
    %s1657 = sld [smem:[#allocation2 + $0x54]]
    %v1658 = vstv %s1657
    %v1659 = vmul.f32 %v1658, %v1650
    %v1660 = vmul.f32 %v1658, %v1652
    %v1661 = vadd.f32 %v1655, %v1659
    %v1662 = vadd.f32 %v1656, %v1660
    %vm1663 = vmand %vm436, %vm450
    %vm1664 = vmand %vm437, %vm451
    %v1665 = vsel %vm1663, 1, 0
    %v1666 = vsel %vm1664, 1, 0
    %vm1667 = vcmp.eq.s32.totalorder %v1665, 1
    %vm1668 = vcmp.eq.s32.totalorder %v1666, 1
    %v1669 = vsel %vm1667, %v1661, 0.0
    %v1670 = vsel %vm1668, %v1662, 0.0
    %v1671 = vadd.f32 %v1638, %v1669
    %v1672 = vadd.f32 %v1639, %v1670
    %1673 = vrot.lane.b32.xlu0 %v355, 98
    %v1674 = vpop.permute.xlu0 %1673
    %1675 = vrot.lane.b32.xlu0 %v387, 98
    %v1676 = vpop.permute.xlu0 %1675
    %1677 = vrot.lane.b32.xlu0 %v362, 98
    %v1678 = vpop.permute.xlu0 %1677
    %1679 = vrot.lane.b32.xlu0 %v394, 98
    %v1680 = vpop.permute.xlu0 %1679
    %vm1681 = vcmp.lt.s32.totalorder %v398, 98
    %v1682 = vsel %vm1681, %v1674, %v1678
    %v1683 = vsel %vm1681, %v1676, %v1680
    %v1684 = vsel %vm1681, %v1678, %v1674
    %v1685 = vsel %vm1681, %v1680, %v1676
    %s1686 = sld [smem:[#allocation2 + $0x24]]
    %v1687 = vstv %s1686
    %v1688 = vmul.f32 %v1687, %v1682
    %v1689 = vmul.f32 %v1687, %v1684
    %s1690 = sld [smem:[#allocation2 + $0x55]]
    %v1691 = vstv %s1690
    %v1692 = vmul.f32 %v1691, %v1683
    %v1693 = vmul.f32 %v1691, %v1685
    %v1694 = vadd.f32 %v1688, %v1692
    %v1695 = vadd.f32 %v1689, %v1693
    %vm1696 = vmand %vm436, %vm458
    %vm1697 = vmand %vm437, %vm459
    %v1698 = vsel %vm1696, 1, 0
    %v1699 = vsel %vm1697, 1, 0
    %vm1700 = vcmp.eq.s32.totalorder %v1698, 1
    %vm1701 = vcmp.eq.s32.totalorder %v1699, 1
    %v1702 = vsel %vm1700, %v1694, 0.0
    %v1703 = vsel %vm1701, %v1695, 0.0
    %v1704 = vadd.f32 %v1671, %v1702
    %v1705 = vadd.f32 %v1672, %v1703
    %1706 = vrot.lane.b32.xlu0 %v355, 97
    %v1707 = vpop.permute.xlu0 %1706
    %1708 = vrot.lane.b32.xlu0 %v387, 97
    %v1709 = vpop.permute.xlu0 %1708
    %1710 = vrot.lane.b32.xlu0 %v362, 97
    %v1711 = vpop.permute.xlu0 %1710
    %1712 = vrot.lane.b32.xlu0 %v394, 97
    %v1713 = vpop.permute.xlu0 %1712
    %vm1714 = vcmp.lt.s32.totalorder %v398, 97
    %v1715 = vsel %vm1714, %v1707, %v1711
    %v1716 = vsel %vm1714, %v1709, %v1713
    %v1717 = vsel %vm1714, %v1711, %v1707
    %v1718 = vsel %vm1714, %v1713, %v1709
    %s1719 = sld [smem:[#allocation2 + $0x25]]
    %v1720 = vstv %s1719
    %v1721 = vmul.f32 %v1720, %v1715
    %v1722 = vmul.f32 %v1720, %v1717
    %s1723 = sld [smem:[#allocation2 + $0x56]]
    %v1724 = vstv %s1723
    %v1725 = vmul.f32 %v1724, %v1716
    %v1726 = vmul.f32 %v1724, %v1718
    %v1727 = vadd.f32 %v1721, %v1725
    %v1728 = vadd.f32 %v1722, %v1726
    %vm1729 = vmand %vm436, %vm466
    %vm1730 = vmand %vm437, %vm467
    %v1731 = vsel %vm1729, 1, 0
    %v1732 = vsel %vm1730, 1, 0
    %vm1733 = vcmp.eq.s32.totalorder %v1731, 1
    %vm1734 = vcmp.eq.s32.totalorder %v1732, 1
    %v1735 = vsel %vm1733, %v1727, 0.0
    %v1736 = vsel %vm1734, %v1728, 0.0
    %v1737 = vadd.f32 %v1704, %v1735
    %v1738 = vadd.f32 %v1705, %v1736
    %1739 = vrot.lane.b32.xlu0 %v355, 96
    %v1740 = vpop.permute.xlu0 %1739
    %1741 = vrot.lane.b32.xlu0 %v387, 96
    %v1742 = vpop.permute.xlu0 %1741
    %1743 = vrot.lane.b32.xlu0 %v362, 96
    %v1744 = vpop.permute.xlu0 %1743
    %1745 = vrot.lane.b32.xlu0 %v394, 96
    %v1746 = vpop.permute.xlu0 %1745
    %vm1747 = vcmp.lt.s32.totalorder %v398, 96
    %v1748 = vsel %vm1747, %v1740, %v1744
    %v1749 = vsel %vm1747, %v1742, %v1746
    %v1750 = vsel %vm1747, %v1744, %v1740
    %v1751 = vsel %vm1747, %v1746, %v1742
    %s1752 = sld [smem:[#allocation2 + $0x26]]
    %v1753 = vstv %s1752
    %v1754 = vmul.f32 %v1753, %v1748
    %v1755 = vmul.f32 %v1753, %v1750
    %s1756 = sld [smem:[#allocation2 + $0x57]]
    %v1757 = vstv %s1756
    %v1758 = vmul.f32 %v1757, %v1749
    %v1759 = vmul.f32 %v1757, %v1751
    %v1760 = vadd.f32 %v1754, %v1758
    %v1761 = vadd.f32 %v1755, %v1759
    %vm1762 = vmand %vm436, %vm472
    %vm1763 = vmand %vm437, %vm473
    %v1764 = vsel %vm1762, 1, 0
    %v1765 = vsel %vm1763, 1, 0
    %vm1766 = vcmp.eq.s32.totalorder %v1764, 1
    %vm1767 = vcmp.eq.s32.totalorder %v1765, 1
    %v1768 = vsel %vm1766, %v1760, 0.0
    %v1769 = vsel %vm1767, %v1761, 0.0
    %v1770 = vadd.f32 %v1737, %v1768
    %v1771 = vadd.f32 %v1738, %v1769
    %1772 = vrot.lane.b32.xlu0 %v355, 95
    %v1773 = vpop.permute.xlu0 %1772
    %1774 = vrot.lane.b32.xlu0 %v387, 95
    %v1775 = vpop.permute.xlu0 %1774
    %1776 = vrot.lane.b32.xlu0 %v362, 95
    %v1777 = vpop.permute.xlu0 %1776
    %1778 = vrot.lane.b32.xlu0 %v394, 95
    %v1779 = vpop.permute.xlu0 %1778
    %vm1780 = vcmp.lt.s32.totalorder %v398, 95
    %v1781 = vsel %vm1780, %v1773, %v1777
    %v1782 = vsel %vm1780, %v1775, %v1779
    %v1783 = vsel %vm1780, %v1777, %v1773
    %v1784 = vsel %vm1780, %v1779, %v1775
    %s1785 = sld [smem:[#allocation2 + $0x27]]
    %v1786 = vstv %s1785
    %v1787 = vmul.f32 %v1786, %v1781
    %v1788 = vmul.f32 %v1786, %v1783
    %s1789 = sld [smem:[#allocation2 + $0x58]]
    %v1790 = vstv %s1789
    %v1791 = vmul.f32 %v1790, %v1782
    %v1792 = vmul.f32 %v1790, %v1784
    %v1793 = vadd.f32 %v1787, %v1791
    %v1794 = vadd.f32 %v1788, %v1792
    %vm1795 = vmand %vm436, %vm480
    %vm1796 = vmand %vm437, %vm481
    %v1797 = vsel %vm1795, 1, 0
    %v1798 = vsel %vm1796, 1, 0
    %vm1799 = vcmp.eq.s32.totalorder %v1797, 1
    %vm1800 = vcmp.eq.s32.totalorder %v1798, 1
    %v1801 = vsel %vm1799, %v1793, 0.0
    %v1802 = vsel %vm1800, %v1794, 0.0
    %v1803 = vadd.f32 %v1770, %v1801
    %v1804 = vadd.f32 %v1771, %v1802
    %1805 = vrot.lane.b32.xlu0 %v355, 94
    %v1806 = vpop.permute.xlu0 %1805
    %1807 = vrot.lane.b32.xlu0 %v387, 94
    %v1808 = vpop.permute.xlu0 %1807
    %1809 = vrot.lane.b32.xlu0 %v362, 94
    %v1810 = vpop.permute.xlu0 %1809
    %1811 = vrot.lane.b32.xlu0 %v394, 94
    %v1812 = vpop.permute.xlu0 %1811
    %vm1813 = vcmp.lt.s32.totalorder %v398, 94
    %v1814 = vsel %vm1813, %v1806, %v1810
    %v1815 = vsel %vm1813, %v1808, %v1812
    %v1816 = vsel %vm1813, %v1810, %v1806
    %v1817 = vsel %vm1813, %v1812, %v1808
    %s1818 = sld [smem:[#allocation2 + $0x28]]
    %v1819 = vstv %s1818
    %v1820 = vmul.f32 %v1819, %v1814
    %v1821 = vmul.f32 %v1819, %v1816
    %s1822 = sld [smem:[#allocation2 + $0x59]]
    %v1823 = vstv %s1822
    %v1824 = vmul.f32 %v1823, %v1815
    %v1825 = vmul.f32 %v1823, %v1817
    %v1826 = vadd.f32 %v1820, %v1824
    %v1827 = vadd.f32 %v1821, %v1825
    %vm1828 = vmand %vm436, %vm488
    %vm1829 = vmand %vm437, %vm489
    %v1830 = vsel %vm1828, 1, 0
    %v1831 = vsel %vm1829, 1, 0
    %vm1832 = vcmp.eq.s32.totalorder %v1830, 1
    %vm1833 = vcmp.eq.s32.totalorder %v1831, 1
    %v1834 = vsel %vm1832, %v1826, 0.0
    %v1835 = vsel %vm1833, %v1827, 0.0
    %v1836 = vadd.f32 %v1803, %v1834
    %v1837 = vadd.f32 %v1804, %v1835
    %1838 = vrot.lane.b32.xlu0 %v355, 93
    %v1839 = vpop.permute.xlu0 %1838
    %1840 = vrot.lane.b32.xlu0 %v387, 93
    %v1841 = vpop.permute.xlu0 %1840
    %1842 = vrot.lane.b32.xlu0 %v362, 93
    %v1843 = vpop.permute.xlu0 %1842
    %1844 = vrot.lane.b32.xlu0 %v394, 93
    %v1845 = vpop.permute.xlu0 %1844
    %vm1846 = vcmp.lt.s32.totalorder %v398, 93
    %v1847 = vsel %vm1846, %v1839, %v1843
    %v1848 = vsel %vm1846, %v1841, %v1845
    %v1849 = vsel %vm1846, %v1843, %v1839
    %v1850 = vsel %vm1846, %v1845, %v1841
    %s1851 = sld [smem:[#allocation2 + $0x29]]
    %v1852 = vstv %s1851
    %v1853 = vmul.f32 %v1852, %v1847
    %v1854 = vmul.f32 %v1852, %v1849
    %s1855 = sld [smem:[#allocation2 + $0x5a]]
    %v1856 = vstv %s1855
    %v1857 = vmul.f32 %v1856, %v1848
    %v1858 = vmul.f32 %v1856, %v1850
    %v1859 = vadd.f32 %v1853, %v1857
    %v1860 = vadd.f32 %v1854, %v1858
    %vm1861 = vmand %vm436, %vm496
    %vm1862 = vmand %vm437, %vm497
    %v1863 = vsel %vm1861, 1, 0
    %v1864 = vsel %vm1862, 1, 0
    %vm1865 = vcmp.eq.s32.totalorder %v1863, 1
    %vm1866 = vcmp.eq.s32.totalorder %v1864, 1
    %v1867 = vsel %vm1865, %v1859, 0.0
    %v1868 = vsel %vm1866, %v1860, 0.0
    %v1869 = vadd.f32 %v1836, %v1867
    %v1870 = vadd.f32 %v1837, %v1868
    %1871 = vrot.lane.b32.xlu0 %v355, 83
    %v1872 = vpop.permute.xlu0 %1871
    %1873 = vrot.lane.b32.xlu0 %v387, 83
    %v1874 = vpop.permute.xlu0 %1873
    %1875 = vrot.lane.b32.xlu0 %v362, 83
    %v1876 = vpop.permute.xlu0 %1875
    %1877 = vrot.lane.b32.xlu0 %v394, 83
    %v1878 = vpop.permute.xlu0 %1877
    %vm1879 = vcmp.lt.s32.totalorder %v398, 83
    %v1880 = vsel %vm1879, %v1872, %v1876
    %v1881 = vsel %vm1879, %v1874, %v1878
    %v1882 = vsel %vm1879, %v1876, %v1872
    %v1883 = vsel %vm1879, %v1878, %v1874
    %s1884 = sld [smem:[#allocation2 + $0x2a]]
    %v1885 = vstv %s1884
    %v1886 = vmul.f32 %v1885, %v1880
    %v1887 = vmul.f32 %v1885, %v1882
    %s1888 = sld [smem:[#allocation2 + $0x5b]]
    %v1889 = vstv %s1888
    %v1890 = vmul.f32 %v1889, %v1881
    %v1891 = vmul.f32 %v1889, %v1883
    %v1892 = vadd.f32 %v1886, %v1890
    %v1893 = vadd.f32 %v1887, %v1891
    %vm1894 = vmand %vm442, %vm450
    %vm1895 = vmand %vm443, %vm451
    %v1896 = vsel %vm1894, 1, 0
    %v1897 = vsel %vm1895, 1, 0
    %vm1898 = vcmp.eq.s32.totalorder %v1896, 1
    %vm1899 = vcmp.eq.s32.totalorder %v1897, 1
    %v1900 = vsel %vm1898, %v1892, 0.0
    %v1901 = vsel %vm1899, %v1893, 0.0
    %v1902 = vadd.f32 %v1869, %v1900
    %v1903 = vadd.f32 %v1870, %v1901
    %1904 = vrot.lane.b32.xlu0 %v355, 82
    %v1905 = vpop.permute.xlu0 %1904
    %1906 = vrot.lane.b32.xlu0 %v387, 82
    %v1907 = vpop.permute.xlu0 %1906
    %1908 = vrot.lane.b32.xlu0 %v362, 82
    %v1909 = vpop.permute.xlu0 %1908
    %1910 = vrot.lane.b32.xlu0 %v394, 82
    %v1911 = vpop.permute.xlu0 %1910
    %vm1912 = vcmp.lt.s32.totalorder %v398, 82
    %v1913 = vsel %vm1912, %v1905, %v1909
    %v1914 = vsel %vm1912, %v1907, %v1911
    %v1915 = vsel %vm1912, %v1909, %v1905
    %v1916 = vsel %vm1912, %v1911, %v1907
    %s1917 = sld [smem:[#allocation2 + $0x2b]]
    %v1918 = vstv %s1917
    %v1919 = vmul.f32 %v1918, %v1913
    %v1920 = vmul.f32 %v1918, %v1915
    %s1921 = sld [smem:[#allocation2 + $0x5c]]
    %v1922 = vstv %s1921
    %v1923 = vmul.f32 %v1922, %v1914
    %v1924 = vmul.f32 %v1922, %v1916
    %v1925 = vadd.f32 %v1919, %v1923
    %v1926 = vadd.f32 %v1920, %v1924
    %vm1927 = vmand %vm442, %vm458
    %vm1928 = vmand %vm443, %vm459
    %v1929 = vsel %vm1927, 1, 0
    %v1930 = vsel %vm1928, 1, 0
    %vm1931 = vcmp.eq.s32.totalorder %v1929, 1
    %vm1932 = vcmp.eq.s32.totalorder %v1930, 1
    %v1933 = vsel %vm1931, %v1925, 0.0
    %v1934 = vsel %vm1932, %v1926, 0.0
    %v1935 = vadd.f32 %v1902, %v1933
    %v1936 = vadd.f32 %v1903, %v1934
    %1937 = vrot.lane.b32.xlu0 %v355, 81
    %v1938 = vpop.permute.xlu0 %1937
    %1939 = vrot.lane.b32.xlu0 %v387, 81
    %v1940 = vpop.permute.xlu0 %1939
    %1941 = vrot.lane.b32.xlu0 %v362, 81
    %v1942 = vpop.permute.xlu0 %1941
    %1943 = vrot.lane.b32.xlu0 %v394, 81
    %v1944 = vpop.permute.xlu0 %1943
    %vm1945 = vcmp.lt.s32.totalorder %v398, 81
    %v1946 = vsel %vm1945, %v1938, %v1942
    %v1947 = vsel %vm1945, %v1940, %v1944
    %v1948 = vsel %vm1945, %v1942, %v1938
    %v1949 = vsel %vm1945, %v1944, %v1940
    %s1950 = sld [smem:[#allocation2 + $0x2c]]
    %v1951 = vstv %s1950
    %v1952 = vmul.f32 %v1951, %v1946
    %v1953 = vmul.f32 %v1951, %v1948
    %s1954 = sld [smem:[#allocation2 + $0x5d]]
    %v1955 = vstv %s1954
    %v1956 = vmul.f32 %v1955, %v1947
    %v1957 = vmul.f32 %v1955, %v1949
    %v1958 = vadd.f32 %v1952, %v1956
    %v1959 = vadd.f32 %v1953, %v1957
    %vm1960 = vmand %vm442, %vm466
    %vm1961 = vmand %vm443, %vm467
    %v1962 = vsel %vm1960, 1, 0
    %v1963 = vsel %vm1961, 1, 0
    %vm1964 = vcmp.eq.s32.totalorder %v1962, 1
    %vm1965 = vcmp.eq.s32.totalorder %v1963, 1
    %v1966 = vsel %vm1964, %v1958, 0.0
    %v1967 = vsel %vm1965, %v1959, 0.0
    %v1968 = vadd.f32 %v1935, %v1966
    %v1969 = vadd.f32 %v1936, %v1967
    %1970 = vrot.lane.b32.xlu0 %v355, 80
    %v1971 = vpop.permute.xlu0 %1970
    %1972 = vrot.lane.b32.xlu0 %v387, 80
    %v1973 = vpop.permute.xlu0 %1972
    %1974 = vrot.lane.b32.xlu0 %v362, 80
    %v1975 = vpop.permute.xlu0 %1974
    %1976 = vrot.lane.b32.xlu0 %v394, 80
    %v1977 = vpop.permute.xlu0 %1976
    %vm1978 = vcmp.lt.s32.totalorder %v398, 80
    %v1979 = vsel %vm1978, %v1971, %v1975
    %v1980 = vsel %vm1978, %v1973, %v1977
    %v1981 = vsel %vm1978, %v1975, %v1971
    %v1982 = vsel %vm1978, %v1977, %v1973
    %s1983 = sld [smem:[#allocation2 + $0x2d]]
    %v1984 = vstv %s1983
    %v1985 = vmul.f32 %v1984, %v1979
    %v1986 = vmul.f32 %v1984, %v1981
    %s1987 = sld [smem:[#allocation2 + $0x5e]]
    %v1988 = vstv %s1987
    %v1989 = vmul.f32 %v1988, %v1980
    %v1990 = vmul.f32 %v1988, %v1982
    %v1991 = vadd.f32 %v1985, %v1989
    %v1992 = vadd.f32 %v1986, %v1990
    %vm1993 = vmand %vm442, %vm472
    %vm1994 = vmand %vm443, %vm473
    %v1995 = vsel %vm1993, 1, 0
    %v1996 = vsel %vm1994, 1, 0
    %vm1997 = vcmp.eq.s32.totalorder %v1995, 1
    %vm1998 = vcmp.eq.s32.totalorder %v1996, 1
    %v1999 = vsel %vm1997, %v1991, 0.0
    %v2000 = vsel %vm1998, %v1992, 0.0
    %v2001 = vadd.f32 %v1968, %v1999
    %v2002 = vadd.f32 %v1969, %v2000
    %2003 = vrot.lane.b32.xlu0 %v355, 79
    %v2004 = vpop.permute.xlu0 %2003
    %2005 = vrot.lane.b32.xlu0 %v387, 79
    %v2006 = vpop.permute.xlu0 %2005
    %2007 = vrot.lane.b32.xlu0 %v362, 79
    %v2008 = vpop.permute.xlu0 %2007
    %2009 = vrot.lane.b32.xlu0 %v394, 79
    %v2010 = vpop.permute.xlu0 %2009
    %vm2011 = vcmp.lt.s32.totalorder %v398, 79
    %v2012 = vsel %vm2011, %v2004, %v2008
    %v2013 = vsel %vm2011, %v2006, %v2010
    %v2014 = vsel %vm2011, %v2008, %v2004
    %v2015 = vsel %vm2011, %v2010, %v2006
    %s2016 = sld [smem:[#allocation2 + $0x2e]]
    %v2017 = vstv %s2016
    %v2018 = vmul.f32 %v2017, %v2012
    %v2019 = vmul.f32 %v2017, %v2014
    %s2020 = sld [smem:[#allocation2 + $0x5f]]
    %v2021 = vstv %s2020
    %v2022 = vmul.f32 %v2021, %v2013
    %v2023 = vmul.f32 %v2021, %v2015
    %v2024 = vadd.f32 %v2018, %v2022
    %v2025 = vadd.f32 %v2019, %v2023
    %vm2026 = vmand %vm442, %vm480
    %vm2027 = vmand %vm443, %vm481
    %v2028 = vsel %vm2026, 1, 0
    %v2029 = vsel %vm2027, 1, 0
    %vm2030 = vcmp.eq.s32.totalorder %v2028, 1
    %vm2031 = vcmp.eq.s32.totalorder %v2029, 1
    %v2032 = vsel %vm2030, %v2024, 0.0
    %v2033 = vsel %vm2031, %v2025, 0.0
    %v2034 = vadd.f32 %v2001, %v2032
    %v2035 = vadd.f32 %v2002, %v2033
    %2036 = vrot.lane.b32.xlu0 %v355, 78
    %v2037 = vpop.permute.xlu0 %2036
    %2038 = vrot.lane.b32.xlu0 %v387, 78
    %v2039 = vpop.permute.xlu0 %2038
    %2040 = vrot.lane.b32.xlu0 %v362, 78
    %v2041 = vpop.permute.xlu0 %2040
    %2042 = vrot.lane.b32.xlu0 %v394, 78
    %v2043 = vpop.permute.xlu0 %2042
    %vm2044 = vcmp.lt.s32.totalorder %v398, 78
    %v2045 = vsel %vm2044, %v2037, %v2041
    %v2046 = vsel %vm2044, %v2039, %v2043
    %v2047 = vsel %vm2044, %v2041, %v2037
    %v2048 = vsel %vm2044, %v2043, %v2039
    %s2049 = sld [smem:[#allocation2 + $0x2f]]
    %v2050 = vstv %s2049
    %v2051 = vmul.f32 %v2050, %v2045
    %v2052 = vmul.f32 %v2050, %v2047
    %s2053 = sld [smem:[#allocation2 + $0x60]]
    %v2054 = vstv %s2053
    %v2055 = vmul.f32 %v2054, %v2046
    %v2056 = vmul.f32 %v2054, %v2048
    %v2057 = vadd.f32 %v2051, %v2055
    %v2058 = vadd.f32 %v2052, %v2056
    %vm2059 = vmand %vm442, %vm488
    %vm2060 = vmand %vm443, %vm489
    %v2061 = vsel %vm2059, 1, 0
    %v2062 = vsel %vm2060, 1, 0
    %vm2063 = vcmp.eq.s32.totalorder %v2061, 1
    %vm2064 = vcmp.eq.s32.totalorder %v2062, 1
    %v2065 = vsel %vm2063, %v2057, 0.0
    %v2066 = vsel %vm2064, %v2058, 0.0
    %v2067 = vadd.f32 %v2034, %v2065
    %v2068 = vadd.f32 %v2035, %v2066
    %2069 = vrot.lane.b32.xlu0 %v355, 77
    %v2070 = vpop.permute.xlu0 %2069
    %2071 = vrot.lane.b32.xlu0 %v387, 77
    %v2072 = vpop.permute.xlu0 %2071
    %2073 = vrot.lane.b32.xlu0 %v362, 77
    %v2074 = vpop.permute.xlu0 %2073
    %2075 = vrot.lane.b32.xlu0 %v394, 77
    %v2076 = vpop.permute.xlu0 %2075
    %vm2077 = vcmp.lt.s32.totalorder %v398, 77
    %v2078 = vsel %vm2077, %v2070, %v2074
    %v2079 = vsel %vm2077, %v2072, %v2076
    %v2080 = vsel %vm2077, %v2074, %v2070
    %v2081 = vsel %vm2077, %v2076, %v2072
    %s2082 = sld [smem:[#allocation2 + $0x30]]
    %v2083 = vstv %s2082
    %v2084 = vmul.f32 %v2083, %v2078
    %v2085 = vmul.f32 %v2083, %v2080
    %s2086 = sld [smem:[#allocation2 + $0x61]]
    %v2087 = vstv %s2086
    %v2088 = vmul.f32 %v2087, %v2079
    %v2089 = vmul.f32 %v2087, %v2081
    %v2090 = vadd.f32 %v2084, %v2088
    %v2091 = vadd.f32 %v2085, %v2089
    %vm2092 = vmand %vm442, %vm496
    %vm2093 = vmand %vm443, %vm497
    %v2094 = vsel %vm2092, 1, 0
    %v2095 = vsel %vm2093, 1, 0
    %vm2096 = vcmp.eq.s32.totalorder %v2094, 1
    %vm2097 = vcmp.eq.s32.totalorder %v2095, 1
    %v2098 = vsel %vm2096, %v2090, 0.0
    %v2099 = vsel %vm2097, %v2091, 0.0
    %v2100 = vadd.f32 %v2067, %v2098
    %v2101 = vadd.f32 %v2068, %v2099
    %v2102 = vxor.u32 %v2100, 2147483648
    %v2103 = vxor.u32 %v2101, 2147483648
    %v2104 = vmul.f32 %v2102, 1.442695
    %v2105 = vpow.pop %v2104
    %v2106 = vmul.f32 %v2103, 1.442695
    %v2107 = vpow.pop %v2106
    %v2108 = vadd.f32 %v2105, 1.0
    %v2109 = vadd.f32 %v2107, 1.0
    %v2110 = vrcp.pop %v2108
    %v2111 = vmul.f32 1.0, %v2110
    %v2112 = vrcp.pop %v2109
    %v2113 = vmul.f32 1.0, %v2112
    %v2116 = vcombine.low %v2111, %v2113
    %v2117 = vcombine.high %v2111, %v2113
    %v2119 = vunpack.c.l.s4 1966171168
    %v2120 = vunpack.c.0.s8 %v2119
    %v2121 = vlaneseq
    %v2122 = vshrl.u32 %v2121, 7
    %v2123 = vsub.s32 %v2120, %v2122
    %v2124 = vrot.slane %v2116, %v2123
    %v2126 = vunpack.c.l.s4 1966171168
    %v2127 = vunpack.c.0.s8 %v2126
    %v2128 = vlaneseq
    %v2129 = vshrl.u32 %v2128, 7
    %v2130 = vsub.s32 %v2127, %v2129
    %v2131 = vrot.slane %v2117, %v2130
    %v2132 = vcombine.high %v2124, %v2124
    %v2133 = vcombine.high %v2131, %v2131
    %v2135 = vunpack.c.l.s4 1966171168
    %v2136 = vunpack.c.0.s8 %v2135
    %v2137 = vlaneseq
    %v2138 = vshrl.u32 %v2137, 7
    %v2139 = vsub.s32 %v2136, %v2138
    %v2140 = vrot.slane %v2124, %v2139
    %v2142 = vunpack.c.l.s4 1966171168
    %v2143 = vunpack.c.0.s8 %v2142
    %v2144 = vlaneseq
    %v2145 = vshrl.u32 %v2144, 7
    %v2146 = vsub.s32 %v2143, %v2145
    %v2147 = vrot.slane %v2131, %v2146
    %v2149 = vunpack.c.l.s4 1966171168
    %v2150 = vunpack.c.0.s8 %v2149
    %v2151 = vlaneseq
    %v2152 = vshrl.u32 %v2151, 7
    %v2153 = vsub.s32 %v2150, %v2152
    %v2154 = vrot.slane %v2132, %v2153
    %v2156 = vunpack.c.l.s4 1966171168
    %v2157 = vunpack.c.0.s8 %v2156
    %v2158 = vlaneseq
    %v2159 = vshrl.u32 %v2158, 7
    %v2160 = vsub.s32 %v2157, %v2159
    %v2161 = vrot.slane %v2133, %v2160
    %v2162 = vcombine.high %v2140, %v2140
    %v2163 = vcombine.high %v2147, %v2147
    %v2164 = vcombine.high %v2154, %v2154
    %v2165 = vcombine.high %v2161, %v2161
    %v2166 = vlaneseq
    %v2167 = vshrl.u32 %v2166, 7
    %v2168 = vsub.s32 0, %v2167
    %v2169 = vrot.slane %v2140, %v2168
    %v2170 = vlaneseq
    %v2171 = vshrl.u32 %v2170, 7
    %v2172 = vsub.s32 1, %v2171
    %v2173 = vrot.slane %v2140, %v2172
    %v2174 = vlaneseq
    %v2175 = vshrl.u32 %v2174, 7
    %v2176 = vsub.s32 0, %v2175
    %v2177 = vrot.slane %v2154, %v2176
    %v2178 = vlaneseq
    %v2179 = vshrl.u32 %v2178, 7
    %v2180 = vsub.s32 1, %v2179
    %v2181 = vrot.slane %v2154, %v2180
    %v2182 = vlaneseq
    %v2183 = vshrl.u32 %v2182, 7
    %v2184 = vsub.s32 0, %v2183
    %v2185 = vrot.slane %v2162, %v2184
    %v2186 = vlaneseq
    %v2187 = vshrl.u32 %v2186, 7
    %v2188 = vsub.s32 1, %v2187
    %v2189 = vrot.slane %v2162, %v2188
    %v2190 = vlaneseq
    %v2191 = vshrl.u32 %v2190, 7
    %v2192 = vsub.s32 0, %v2191
    %v2193 = vrot.slane %v2164, %v2192
    %v2194 = vlaneseq
    %v2195 = vshrl.u32 %v2194, 7
    %v2196 = vsub.s32 1, %v2195
    %v2197 = vrot.slane %v2164, %v2196
    %v2198 = vlaneseq
    %v2199 = vshrl.u32 %v2198, 7
    %v2200 = vsub.s32 0, %v2199
    %v2201 = vrot.slane %v2147, %v2200
    %v2202 = vlaneseq
    %v2203 = vshrl.u32 %v2202, 7
    %v2204 = vsub.s32 1, %v2203
    %v2205 = vrot.slane %v2147, %v2204
    %v2206 = vlaneseq
    %v2207 = vshrl.u32 %v2206, 7
    %v2208 = vsub.s32 0, %v2207
    %v2209 = vrot.slane %v2161, %v2208
    %v2210 = vlaneseq
    %v2211 = vshrl.u32 %v2210, 7
    %v2212 = vsub.s32 1, %v2211
    %v2213 = vrot.slane %v2161, %v2212
    %v2214 = vlaneseq
    %v2215 = vshrl.u32 %v2214, 7
    %v2216 = vsub.s32 0, %v2215
    %v2217 = vrot.slane %v2163, %v2216
    %v2218 = vlaneseq
    %v2219 = vshrl.u32 %v2218, 7
    %v2220 = vsub.s32 1, %v2219
    %v2221 = vrot.slane %v2163, %v2220
    %v2222 = vlaneseq
    %v2223 = vshrl.u32 %v2222, 7
    %v2224 = vsub.s32 0, %v2223
    %v2225 = vrot.slane %v2165, %v2224
    %v2226 = vlaneseq
    %v2227 = vshrl.u32 %v2226, 7
    %v2228 = vsub.s32 1, %v2227
    %v2229 = vrot.slane %v2165, %v2228
    %v2230 = vcombine.low %v2169, %v2173
    %v2231 = vcombine.low %v2177, %v2181
    %v2232 = vcombine.low %v2185, %v2189
    %v2233 = vcombine.low %v2193, %v2197
    %v2234 = vcombine.low %v2201, %v2205
    %v2235 = vcombine.low %v2209, %v2213
    %v2236 = vcombine.low %v2217, %v2221
    %v2237 = vcombine.low %v2225, %v2229
    %v2246 = vmul.f32 %v37, %v2230
    %v2247 = vmul.f32 %v38, %v2231
    %v2248 = vmul.f32 %v39, %v2232
    %v2249 = vmul.f32 %v40, %v2233
    %v2250 = vmul.f32 %v41, %v2234
    %v2251 = vmul.f32 %v42, %v2235
    %v2252 = vmul.f32 %v43, %v2236
    %v2253 = vmul.f32 %v44, %v2237
    %2254 = vst [vmem:[#allocation7] sm:$0xff] %v2246
    %2255 = vst [vmem:[#allocation7 + $0x8] sm:$0xff] %v2247
    %2256 = vst [vmem:[#allocation7 + $0x10] sm:$0xff] %v2248
    %2257 = vst [vmem:[#allocation7 + $0x18] sm:$0xff] %v2249
    %2258 = vst [vmem:[#allocation7 + $0x20] sm:$0xff] %v2250
    %2259 = vst [vmem:[#allocation7 + $0x28] sm:$0xff] %v2251
    %2260 = vst [vmem:[#allocation7 + $0x30] sm:$0xff] %v2252
    %2261 = vst [vmem:[#allocation7 + $0x38] sm:$0xff] %v2253
    // Predicated region
    $region18: #{tpu_custom_call.1} parent=1 // pred_check
      _
    $region19: #{tpu_custom_call.1} parent=1 // pred_check_branch
      %2263 = sbr.rel (0) target = $region21
    $region20: #{tpu_custom_call.1} parent=1 // pred_region
      %s2265 = ssub.s32 1024, 1024
      %2266 = vsyncadd [#allocation4], %s2265
      %s2267 = sshll.u32 [#allocation7], 4
      %s2268 = int_to_ptr.vmem [resolvable:$true] %s2267
      %2273 = dma.vmem_to_hbm [thread:$0]  %s2268, 1024, %s2, [#allocation4], 128, 128, 8
    $region21: #{tpu_custom_call.1} parent=1 // pred_fallthru
      _
    // Predicated region
    $region22: #{tpu_custom_call.1} parent=1 // pred_check
      _
    $region23: #{tpu_custom_call.1} parent=1 // pred_check_branch
      %2275 = sbr.rel (0) target = $region25
    $region24: #{tpu_custom_call.1} parent=1 // pred_region
      %2276 = dma.done [#allocation4], 1024
    $region25: #{tpu_custom_call.1} parent=1 // pred_fallthru
      _
    %2277 = vsyncpa [#allocation3], 1
    %2278 = vsyncpa [#allocation4], 1
    %2279 = vsyncpa [#allocation5], 1

</llo_original>
